<compile_context>
chip_gen: v7x
topology: tpu7x:2x2x1
jax: 0.10.0
libtpu: 0.0.40
codegen_flags: <defaults>
</compile_context>

<pallas_src>
import numpy as np
import jax
import jax.numpy as jnp
from jax.experimental import pallas as pl
from jax.experimental.pallas import tpu as pltpu

LANE = 128                      # TPU lane width; channel padding target
_VMEM_LIMIT = 32 * 1024 * 1024  # explicit scoped-VMEM limit (safe on v5e/v6e/v7x)


def _round_up(n, m):
    return ((n + m - 1) // m) * m


# ------------- fused conv3x3 + prev-BN-affine + this-BN partial stats kernel ------------- #
def _conv3x3_bn_kernel(x_ref, w_ref, scale_ref, shift_ref,
                       y_ref, sum_ref, ssq_ref, band_ref):
    # x_ref    : (1, H, W, Cp_in)       full-height image slab (fetched once per image)
    # w_ref    : (3, 3, Cp_in, Cp_out)  bf16 HWIO weights (channel-padded)
    # scale_ref: (1, Cp_in) f32         previous rep's BN scale (identity for rep 0)
    # shift_ref: (1, Cp_in) f32         previous rep's BN shift (zero for rep 0)
    # y_ref    : (1, TH, W, Cp_out)     bf16 conv output row-tile
    # sum_ref  : (1, 1, 1, Cp_out) f32  per-tile channel sums of the f32 conv output
    # ssq_ref  : (1, 1, 1, Cp_out) f32  per-tile channel sums of squares
    # band_ref : (TH+2, W+2, Cp_in) bf16  zero-padded, affine-applied input band
    i = pl.program_id(1)
    n_tiles = pl.num_programs(1)
    W = x_ref.shape[2]
    Cin = x_ref.shape[3]
    TH = y_ref.shape[1]
    Cout = y_ref.shape[3]

    scale = scale_ref[0, :]
    shift = shift_ref[0, :]

    def affine(v):
        # previous rep's BN affine in f32, single cast to the bf16 band dtype
        return (v.astype(jnp.float32) * scale + shift).astype(band_ref.dtype)

    r0 = pl.multiple_of(i * TH, TH)

    # zero only the 1-column left/right pad slivers (the interior is fully overwritten)
    band_ref[:, 0:1, :] = jnp.zeros((TH + 2, 1, Cin), band_ref.dtype)
    band_ref[:, W + 1:W + 2, :] = jnp.zeros((TH + 2, 1, Cin), band_ref.dtype)

    # body rows, with the previous rep's BN affine fused in
    band_ref[1:TH + 1, 1:W + 1, :] = affine(x_ref[0, pl.ds(r0, TH)])

    # top halo row: previous image row, or zero padding at the top edge
    @pl.when(i > 0)
    def _():
        band_ref[0:1, 1:W + 1, :] = affine(x_ref[0, pl.ds(r0 - 1, 1)])

    @pl.when(i == 0)
    def _():
        band_ref[0:1, 1:W + 1, :] = jnp.zeros((1, W, Cin), band_ref.dtype)

    # bottom halo row: next image row, or zero padding at the bottom edge
    @pl.when(i < n_tiles - 1)
    def _():
        band_ref[TH + 1:TH + 2, 1:W + 1, :] = affine(x_ref[0, pl.ds(r0 + TH, 1)])

    @pl.when(i == n_tiles - 1)
    def _():
        band_ref[TH + 1:TH + 2, 1:W + 1, :] = jnp.zeros((1, W, Cin), band_ref.dtype)

    # 3x3 taps as 9 shifted-window MXU matmuls (K = Cp_in = 128-aligned after channel
    # padding), f32 accumulation in registers, single store of y / stats at the end.
    # Conv bias intentionally omitted: train-mode BN cancels a per-channel constant.
    acc = jnp.zeros((TH * W, Cout), jnp.float32)
    for dh in range(3):
        for dw in range(3):
            patch = band_ref[dh:dh + TH, dw:dw + W, :].reshape(TH * W, Cin)
            acc = acc + jnp.dot(patch, w_ref[dh, dw],
                                preferred_element_type=jnp.float32)

    # fused BN partial statistics (cross-tile / cross-batch reduction finished in XLA)
    sum_ref[...] = jnp.sum(acc, axis=0).reshape(1, 1, 1, Cout)
    ssq_ref[...] = jnp.sum(acc * acc, axis=0).reshape(1, 1, 1, Cout)
    y_ref[...] = acc.reshape(1, TH, W, Cout).astype(y_ref.dtype)


def conv3x3_bn_fused(x_nhwc, w_packed_bf16, scale_in, shift_in, tile_h):
    """Conv3x3 (s1, p1) with the previous BN affine fused into the input band and this
    conv's BN partial statistics emitted as extra (lane-dense) outputs."""
    N, H, W, Cin_p = x_nhwc.shape
    Cout_p = w_packed_bf16.shape[-1]
    TH = tile_h
    assert H % TH == 0, (H, TH)
    n_tiles = H // TH

    return pl.pallas_call(
        _conv3x3_bn_kernel,
        out_shape=(
            jax.ShapeDtypeStruct((N, H, W, Cout_p), jnp.bfloat16),
            jax.ShapeDtypeStruct((N, n_tiles, 1, Cout_p), jnp.float32),
            jax.ShapeDtypeStruct((N, n_tiles, 1, Cout_p), jnp.float32),
        ),
        grid=(N, n_tiles),
        in_specs=[
            # full-height slab; index constant across i -> fetched once per image n
            pl.BlockSpec((1, H, W, Cin_p), lambda n, i: (n, 0, 0, 0)),
            pl.BlockSpec((3, 3, Cin_p, Cout_p), lambda n, i: (0, 0, 0, 0)),
            pl.BlockSpec((1, Cin_p), lambda n, i: (0, 0)),
            pl.BlockSpec((1, Cin_p), lambda n, i: (0, 0)),
        ],
        out_specs=(
            pl.BlockSpec((1, TH, W, Cout_p), lambda n, i: (n, i, 0, 0)),
            pl.BlockSpec((1, 1, 1, Cout_p), lambda n, i: (n, i, 0, 0)),
            pl.BlockSpec((1, 1, 1, Cout_p), lambda n, i: (n, i, 0, 0)),
        ),
        scratch_shapes=[pltpu.VMEM((TH + 2, W + 2, Cin_p), jnp.bfloat16)],
        compiler_params=pltpu.CompilerParams(
            dimension_semantics=("parallel", "parallel"),
            vmem_limit_bytes=_VMEM_LIMIT),
    )(x_nhwc, w_packed_bf16,
      scale_in.reshape(1, Cin_p), shift_in.reshape(1, Cin_p))


# ---------- final BN affine + channel un-pad + NHWC->NCHW fold (lane-dense out) ---------- #
def _bn_apply_nchw_kernel(x_ref, scale_ref, shift_ref, o_ref):
    # x_ref : (1, TH, W, Cp) bf16 ; o_ref : (1, Cout, TH*W) f32  (NCHW, HW flattened)
    TH = x_ref.shape[1]
    W = x_ref.shape[2]
    Cp = x_ref.shape[3]
    Cout = o_ref.shape[1]
    v = x_ref[0].astype(jnp.float32) * scale_ref[0, :] + shift_ref[0, :]   # (TH, W, Cp)
    vt = jnp.transpose(v.reshape(TH * W, Cp))                              # (Cp, TH*W)
    o_ref[...] = vt[:Cout, :].reshape(1, Cout, TH * W)


def bn_apply_to_nchw(y_nhwc, scale, shift, out_channels, tile_h):
    N, H, W, Cp = y_nhwc.shape
    TH = tile_h
    assert H % TH == 0, (H, TH)
    n_tiles = H // TH
    out = pl.pallas_call(
        _bn_apply_nchw_kernel,
        out_shape=jax.ShapeDtypeStruct((N, out_channels, H * W), jnp.float32),
        grid=(N, n_tiles),
        in_specs=[
            pl.BlockSpec((1, TH, W, Cp), lambda n, i: (n, i, 0, 0)),
            pl.BlockSpec((1, Cp), lambda n, i: (0, 0)),
            pl.BlockSpec((1, Cp), lambda n, i: (0, 0)),
        ],
        out_specs=pl.BlockSpec((1, out_channels, TH * W), lambda n, i: (n, 0, i)),
        compiler_params=pltpu.CompilerParams(
            dimension_semantics=("parallel", "parallel"),
            vmem_limit_bytes=_VMEM_LIMIT),
    )(y_nhwc, scale.reshape(1, Cp), shift.reshape(1, Cp))
    return out.reshape(N, out_channels, H, W)


# ----------------------------------- tile selection ----------------------------------- #
def _pick_tile_h(N, H, W, cout_p, acc_budget_bytes=128 * 1024):
    """Largest row-tile whose f32 accumulator (TH*W x Cp_out) stays within ~32 vregs,
    keeping >= 2 grid steps where possible so the v7x megacore can split the grid."""
    cands = [t for t in range(1, H + 1)
             if H % t == 0 and t * W * cout_p * 4 <= acc_budget_bytes]
    if not cands:
        return 1
    th = max(cands)
    if N * (H // th) < 2:
        smaller = [t for t in cands if H // t >= 2]
        if smaller:
            th = max(smaller)
    return th


def _pick_apply_tile_h(H, W, cp, budget_bytes=1 << 20):
    """Row-tile for the final pass; (TH*W) kept a multiple of 128 so the transposed
    (Cout, TH*W) output block is lane-dense."""
    cands = [t for t in range(1, H + 1)
             if H % t == 0 and ((t * W) % 128 == 0 or t == H)
             and t * W * cp * 4 <= budget_bytes]
    return max(cands) if cands else H


# ----------------------------------- Conv3x3 forward ----------------------------------- #
def conv3x3_module_forward(x_nchw, params, eps=1e-5, tile_h=None):
    """Forward of Conv3x3: reps x (conv3x3 s1 p1 -> train-mode BatchNorm2d -> Identity
    -> Dropout2d(0.0)). Input/output are NCHW (PyTorch layout)."""
    N, Cin, H, W = x_nchw.shape
    Cout = params[-1][2].shape[0]
    cin_p = _round_up(Cin, LANE)

    # NCHW -> NHWC, zero-pad channels to the lane width (padded channels stay exactly
    # zero through every conv + train-mode BN rep, so real-channel results are unchanged).
    x = jnp.transpose(x_nchw, (0, 2, 3, 1)).astype(jnp.float32)
    x = jnp.pad(x, ((0, 0), (0, 0), (0, 0), (0, cin_p - Cin)))

    n_total = float(N * H * W)
    scale = jnp.ones((cin_p,), jnp.float32)    # identity affine feeding the first conv
    shift = jnp.zeros((cin_p,), jnp.float32)

    cur_cin_p = cin_p
    for (w_hwio, _bias, gamma, beta) in params:
        _, _, cin_r, cout_r = w_hwio.shape
        cout_p = _round_up(cout_r, LANE)
        if tile_h is not None and H % tile_h == 0:
            th = tile_h
        else:
            th = _pick_tile_h(N, H, W, cout_p)

        # zero-pad weights to (3, 3, cur_cin_p, cout_p) and cast to bf16 (MXU-native).
        w_p = jnp.zeros((3, 3, cur_cin_p, cout_p), jnp.float32)
        w_p = w_p.at[:, :, :cin_r, :cout_r].set(w_hwio)

        # NOTE: conv bias is dropped on purpose: train-mode BN cancels a per-channel
        # constant exactly (the pure-XLA reference keeps it and still matches).
        y, s1, s2 = conv3x3_bn_fused(x, w_p.astype(jnp.bfloat16), scale, shift, th)

        mean = jnp.sum(s1, axis=(0, 1, 2)) / n_total
        ex2 = jnp.sum(s2, axis=(0, 1, 2)) / n_total
        var = jnp.maximum(ex2 - mean * mean, 0.0)            # biased batch variance
        gamma_p = jnp.ones((cout_p,), jnp.float32).at[:cout_r].set(gamma)
        beta_p = jnp.zeros((cout_p,), jnp.float32).at[:cout_r].set(beta)
        scale = gamma_p * jax.lax.rsqrt(var + eps)            # fused into the NEXT conv
        shift = beta_p - mean * scale

        x = y                                                 # bf16, channel-padded
        cur_cin_p = cout_p
        # activation = Identity; Dropout2d(0.0) = identity.
        # TODO(synk): BatchNorm2d running-mean/var buffer updates (training side effect)
        # are not materialized; only the forward output is produced.

    th_apply = _pick_apply_tile_h(H, W, cur_cin_p)
    # last rep's BN affine + channel un-pad + NHWC->NCHW, all in one lane-dense pass
    return bn_apply_to_nchw(x, scale, shift, Cout, th_apply)


# --------------------------------- params / reference --------------------------------- #
def make_params(key, in_channels, out_channels, reps):
    params = []
    cin = in_channels
    for _ in range(reps):
        key, k1, k2, k3, k4 = jax.random.split(key, 5)
        fan_in = cin * 9
        bound = 1.0 / np.sqrt(fan_in)
        w_oihw = jax.random.uniform(k1, (out_channels, cin, 3, 3), jnp.float32, -bound, bound)
        b = jax.random.uniform(k2, (out_channels,), jnp.float32, -bound, bound)
        w_hwio = jnp.transpose(w_oihw, (2, 3, 1, 0))
        # PyTorch default BN init is gamma=1, beta=0; randomized here to exercise the
        # fused scale/shift path (the reference uses the same values).
        gamma = jax.random.uniform(k3, (out_channels,), jnp.float32, 0.5, 1.5)
        beta = 0.1 * jax.random.normal(k4, (out_channels,), jnp.float32)
        params.append((w_hwio, b, gamma, beta))
        cin = out_channels
    return params


def reference_forward(x_nchw, params, eps=1e-5):
    x = jnp.transpose(x_nchw, (0, 2, 3, 1))
    for (w, b, gamma, beta) in params:
        y = jax.lax.conv_general_dilated(
            x, w, window_strides=(1, 1), padding="SAME",
            dimension_numbers=("NHWC", "HWIO", "NHWC")) + b
        mean = jnp.mean(y, axis=(0, 1, 2))
        var = jnp.mean((y - mean) ** 2, axis=(0, 1, 2))
        x = (y - mean) / jnp.sqrt(var + eps) * gamma + beta
    return jnp.transpose(x, (0, 3, 1, 2))


if __name__ == "__main__":
    key = jax.random.PRNGKey(0)
    N, Cin, H, W = 2, 4, 16, 16
    Cout, reps = 8, 2

    kx, kp = jax.random.split(key)
    x = jax.random.normal(kx, (N, Cin, H, W), jnp.float32)
    params = make_params(kp, Cin, Cout, reps)

    # tile_h=8 -> 2 row-tiles per image so the halo code path is exercised.
    out = conv3x3_module_forward(x, params, tile_h=8)
    out = jax.block_until_ready(out)
    assert out.shape == (N, Cout, H, W)

    ref = jax.block_until_ready(reference_forward(x, params))
    # bf16 MXU inputs / bf16 intermediate activations + one-pass batch statistics ->
    # compare against the pure-f32 reference with a correspondingly loose tolerance.
    np.testing.assert_allclose(np.asarray(out), np.asarray(ref), rtol=3e-2, atol=3e-2)
    print("KERNEL_OK")
</pallas_src>

<mosaic_0001>
module attributes {stable_mosaic.version = 11 : i64} {
  func.func @_conv3x3_bn_kernel(%arg0: i32, %arg1: i32, %arg2: memref<1x16x16x128xf32, #tpu.memory_space<vmem>>, %arg3: memref<3x3x128x128xbf16, #tpu.memory_space<vmem>>, %arg4: memref<1x128xf32, #tpu.memory_space<vmem>>, %arg5: memref<1x128xf32, #tpu.memory_space<vmem>>, %arg6: memref<1x8x16x128xbf16, #tpu.memory_space<vmem>>, %arg7: memref<1x1x1x128xf32, #tpu.memory_space<vmem>>, %arg8: memref<1x1x1x128xf32, #tpu.memory_space<vmem>>, %arg9: memref<10x18x128xbf16, #tpu.memory_space<vmem>>) attributes {dimension_semantics = [#tpu.dimension_semantics<parallel>, #tpu.dimension_semantics<parallel>], iteration_bounds = array<i64: 2, 2>, scalar_prefetch = 0 : i64, scratch_operands = 1 : i64, tpu.core_type = #tpu.core_type<tc>, window_params = [{transform_indices = @transform_0, window_bounds = array<i64: 1, 16, 16, 128>}, {pipeline_mode = #tpu.pipeline_mode<synchronous>, transform_indices = @transform_1, window_bounds = array<i64: 3, 3, 128, 128>}, {pipeline_mode = #tpu.pipeline_mode<synchronous>, transform_indices = @transform_2, window_bounds = array<i64: 1, 128>}, {pipeline_mode = #tpu.pipeline_mode<synchronous>, transform_indices = @transform_3, window_bounds = array<i64: 1, 128>}, {transform_indices = @transform_4, window_bounds = array<i64: 1, 8, 16, 128>}, {transform_indices = @transform_5, window_bounds = array<i64: 1, 1, 1, 128>}, {transform_indices = @transform_6, window_bounds = array<i64: 1, 1, 1, 128>}]} {
    %c0 = arith.constant 0 : index
    %c0_0 = arith.constant 0 : index
    %0 = vector.load %arg4[%c0, %c0_0] : memref<1x128xf32, #tpu.memory_space<vmem>>, vector<1x128xf32>
    %1 = vector.shape_cast %0 : vector<1x128xf32> to vector<128xf32>
    %c0_1 = arith.constant 0 : index
    %c0_2 = arith.constant 0 : index
    %2 = vector.load %arg5[%c0_1, %c0_2] : memref<1x128xf32, #tpu.memory_space<vmem>>, vector<1x128xf32>
    %3 = vector.shape_cast %2 : vector<1x128xf32> to vector<128xf32>
    %c8_i32 = arith.constant 8 : i32
    %4 = arith.muli %arg1, %c8_i32 : i32
    %5 = tpu.assume_multiple %4, 8 : i32
    %cst = arith.constant 0.000000e+00 : bf16
    %6 = vector.broadcast %cst : bf16 to vector<10x1x128xbf16>
    %c0_3 = arith.constant 0 : index
    %c0_4 = arith.constant 0 : index
    %c0_5 = arith.constant 0 : index
    %7 = vector.load %arg9[%c0_3, %c0_4, %c0_5] : memref<10x18x128xbf16, #tpu.memory_space<vmem>>, vector<10x1x128xbf16>
    tpu.vector_store %arg9[%c0_3, %c0_4, %c0_5], %6 {strides = array<i32>} : memref<10x18x128xbf16, #tpu.memory_space<vmem>>, vector<10x1x128xbf16>,
    %cst_6 = arith.constant 0.000000e+00 : bf16
    %8 = vector.broadcast %cst_6 : bf16 to vector<10x1x128xbf16>
    %c0_7 = arith.constant 0 : index
    %c17 = arith.constant 17 : index
    %c0_8 = arith.constant 0 : index
    %9 = vector.load %arg9[%c0_7, %c17, %c0_8] : memref<10x18x128xbf16, #tpu.memory_space<vmem>>, vector<10x1x128xbf16>
    tpu.vector_store %arg9[%c0_7, %c17, %c0_8], %8 {strides = array<i32>} : memref<10x18x128xbf16, #tpu.memory_space<vmem>>, vector<10x1x128xbf16>,
    %c0_9 = arith.constant 0 : index
    %10 = arith.index_cast %5 : i32 to index
    %c0_10 = arith.constant 0 : index
    %c0_11 = arith.constant 0 : index
    %11 = vector.load %arg2[%c0_9, %10, %c0_10, %c0_11] : memref<1x16x16x128xf32, #tpu.memory_space<vmem>>, vector<1x8x16x128xf32>
    %12 = vector.shape_cast %11 : vector<1x8x16x128xf32> to vector<8x16x128xf32>
    %13 = vector.shape_cast %1 : vector<128xf32> to vector<1x1x128xf32>
    %14 = vector.broadcast %13 : vector<1x1x128xf32> to vector<8x16x128xf32>
    %15 = arith.mulf %12, %14 : vector<8x16x128xf32>
    %16 = vector.shape_cast %3 : vector<128xf32> to vector<1x1x128xf32>
    %17 = vector.broadcast %16 : vector<1x1x128xf32> to vector<8x16x128xf32>
    %18 = arith.addf %15, %17 : vector<8x16x128xf32>
    %19 = arith.truncf %18 : vector<8x16x128xf32> to vector<8x16x128xbf16>
    %c1 = arith.constant 1 : index
    %c1_12 = arith.constant 1 : index
    %c0_13 = arith.constant 0 : index
    %20 = vector.load %arg9[%c1, %c1_12, %c0_13] : memref<10x18x128xbf16, #tpu.memory_space<vmem>>, vector<8x16x128xbf16>
    tpu.vector_store %arg9[%c1, %c1_12, %c0_13], %19 {strides = array<i32>} : memref<10x18x128xbf16, #tpu.memory_space<vmem>>, vector<8x16x128xbf16>,
    %c0_i32 = arith.constant 0 : i32
    %21 = arith.cmpi sgt, %arg1, %c0_i32 : i32
    %22 = arith.extui %21 : i1 to i32
    %c0_i32_14 = arith.constant 0 : i32
    %23 = arith.cmpi ne, %22, %c0_i32_14 : i32
    scf.if %23 {
      %c1_i32_106 = arith.constant 1 : i32
      %98 = arith.subi %5, %c1_i32_106 : i32
      %c0_107 = arith.constant 0 : index
      %99 = arith.index_cast %98 : i32 to index
      %c0_108 = arith.constant 0 : index
      %c0_109 = arith.constant 0 : index
      %100 = vector.load %arg2[%c0_107, %99, %c0_108, %c0_109] : memref<1x16x16x128xf32, #tpu.memory_space<vmem>>, vector<1x1x16x128xf32>
      %101 = vector.shape_cast %100 : vector<1x1x16x128xf32> to vector<1x16x128xf32>
      %102 = vector.shape_cast %1 : vector<128xf32> to vector<1x1x128xf32>
      %103 = vector.broadcast %102 : vector<1x1x128xf32> to vector<1x16x128xf32>
      %104 = arith.mulf %101, %103 : vector<1x16x128xf32>
      %105 = vector.shape_cast %3 : vector<128xf32> to vector<1x1x128xf32>
      %106 = vector.broadcast %105 : vector<1x1x128xf32> to vector<1x16x128xf32>
      %107 = arith.addf %104, %106 : vector<1x16x128xf32>
      %108 = arith.truncf %107 : vector<1x16x128xf32> to vector<1x16x128xbf16>
      %c0_110 = arith.constant 0 : index
      %c1_111 = arith.constant 1 : index
      %c0_112 = arith.constant 0 : index
      %109 = vector.load %arg9[%c0_110, %c1_111, %c0_112] : memref<10x18x128xbf16, #tpu.memory_space<vmem>>, vector<1x16x128xbf16>
      tpu.vector_store %arg9[%c0_110, %c1_111, %c0_112], %108 {strides = array<i32>} : memref<10x18x128xbf16, #tpu.memory_space<vmem>>, vector<1x16x128xbf16>,
    } else {
    }
    %c0_i32_15 = arith.constant 0 : i32
    %24 = arith.cmpi eq, %arg1, %c0_i32_15 : i32
    %25 = arith.extui %24 : i1 to i32
    %c0_i32_16 = arith.constant 0 : i32
    %26 = arith.cmpi ne, %25, %c0_i32_16 : i32
    scf.if %26 {
      %cst_106 = arith.constant 0.000000e+00 : bf16
      %98 = vector.broadcast %cst_106 : bf16 to vector<1x16x128xbf16>
      %c0_107 = arith.constant 0 : index
      %c1_108 = arith.constant 1 : index
      %c0_109 = arith.constant 0 : index
      %99 = vector.load %arg9[%c0_107, %c1_108, %c0_109] : memref<10x18x128xbf16, #tpu.memory_space<vmem>>, vector<1x16x128xbf16>
      tpu.vector_store %arg9[%c0_107, %c1_108, %c0_109], %98 {strides = array<i32>} : memref<10x18x128xbf16, #tpu.memory_space<vmem>>, vector<1x16x128xbf16>,
    } else {
    }
    %c1_i32 = arith.constant 1 : i32
    %27 = arith.cmpi slt, %arg1, %c1_i32 : i32
    %28 = arith.extui %27 : i1 to i32
    %c0_i32_17 = arith.constant 0 : i32
    %29 = arith.cmpi ne, %28, %c0_i32_17 : i32
    scf.if %29 {
      %c8_i32_106 = arith.constant 8 : i32
      %98 = arith.addi %5, %c8_i32_106 : i32
      %c0_107 = arith.constant 0 : index
      %99 = arith.index_cast %98 : i32 to index
      %c0_108 = arith.constant 0 : index
      %c0_109 = arith.constant 0 : index
      %100 = vector.load %arg2[%c0_107, %99, %c0_108, %c0_109] : memref<1x16x16x128xf32, #tpu.memory_space<vmem>>, vector<1x1x16x128xf32>
      %101 = vector.shape_cast %100 : vector<1x1x16x128xf32> to vector<1x16x128xf32>
      %102 = vector.shape_cast %1 : vector<128xf32> to vector<1x1x128xf32>
      %103 = vector.broadcast %102 : vector<1x1x128xf32> to vector<1x16x128xf32>
      %104 = arith.mulf %101, %103 : vector<1x16x128xf32>
      %105 = vector.shape_cast %3 : vector<128xf32> to vector<1x1x128xf32>
      %106 = vector.broadcast %105 : vector<1x1x128xf32> to vector<1x16x128xf32>
      %107 = arith.addf %104, %106 : vector<1x16x128xf32>
      %108 = arith.truncf %107 : vector<1x16x128xf32> to vector<1x16x128xbf16>
      %c9 = arith.constant 9 : index
      %c1_110 = arith.constant 1 : index
      %c0_111 = arith.constant 0 : index
      %109 = vector.load %arg9[%c9, %c1_110, %c0_111] : memref<10x18x128xbf16, #tpu.memory_space<vmem>>, vector<1x16x128xbf16>
      tpu.vector_store %arg9[%c9, %c1_110, %c0_111], %108 {strides = array<i32>} : memref<10x18x128xbf16, #tpu.memory_space<vmem>>, vector<1x16x128xbf16>,
    } else {
    }
    %c1_i32_18 = arith.constant 1 : i32
    %30 = arith.cmpi eq, %arg1, %c1_i32_18 : i32
    %31 = arith.extui %30 : i1 to i32
    %c0_i32_19 = arith.constant 0 : i32
    %32 = arith.cmpi ne, %31, %c0_i32_19 : i32
    scf.if %32 {
      %cst_106 = arith.constant 0.000000e+00 : bf16
      %98 = vector.broadcast %cst_106 : bf16 to vector<1x16x128xbf16>
      %c9 = arith.constant 9 : index
      %c1_107 = arith.constant 1 : index
      %c0_108 = arith.constant 0 : index
      %99 = vector.load %arg9[%c9, %c1_107, %c0_108] : memref<10x18x128xbf16, #tpu.memory_space<vmem>>, vector<1x16x128xbf16>
      tpu.vector_store %arg9[%c9, %c1_107, %c0_108], %98 {strides = array<i32>} : memref<10x18x128xbf16, #tpu.memory_space<vmem>>, vector<1x16x128xbf16>,
    } else {
    }
    %cst_20 = arith.constant 0.000000e+00 : f32
    %33 = vector.broadcast %cst_20 : f32 to vector<128x128xf32>
    %c0_21 = arith.constant 0 : index
    %c0_22 = arith.constant 0 : index
    %c0_23 = arith.constant 0 : index
    %34 = vector.load %arg9[%c0_21, %c0_22, %c0_23] : memref<10x18x128xbf16, #tpu.memory_space<vmem>>, vector<8x16x128xbf16>
    %35 = vector.shape_cast %34 : vector<8x16x128xbf16> to vector<128x128xbf16>
    %c0_24 = arith.constant 0 : index
    %c0_25 = arith.constant 0 : index
    %c0_26 = arith.constant 0 : index
    %c0_27 = arith.constant 0 : index
    %36 = vector.load %arg3[%c0_24, %c0_25, %c0_26, %c0_27] : memref<3x3x128x128xbf16, #tpu.memory_space<vmem>>, vector<1x1x128x128xbf16>
    %37 = vector.shape_cast %36 : vector<1x1x128x128xbf16> to vector<128x128xbf16>
    %cst_28 = arith.constant dense<0.000000e+00> : vector<128x128xf32>
    %38 = tpu.matmul %35, %37, %cst_28 {dimension_numbers = #tpu.dot_dimension_numbers<[1], [0], [0], [1], [0, 0, 1, 1], [], []>} : vector<128x128xbf16>, vector<128x128xbf16>, vector<128x128xf32> -> vector<128x128xf32>
    %39 = arith.addf %33, %38 : vector<128x128xf32>
    %c0_29 = arith.constant 0 : index
    %c1_30 = arith.constant 1 : index
    %c0_31 = arith.constant 0 : index
    %40 = vector.load %arg9[%c0_29, %c1_30, %c0_31] : memref<10x18x128xbf16, #tpu.memory_space<vmem>>, vector<8x16x128xbf16>
    %41 = vector.shape_cast %40 : vector<8x16x128xbf16> to vector<128x128xbf16>
    %c0_32 = arith.constant 0 : index
    %c1_33 = arith.constant 1 : index
    %c0_34 = arith.constant 0 : index
    %c0_35 = arith.constant 0 : index
    %42 = vector.load %arg3[%c0_32, %c1_33, %c0_34, %c0_35] : memref<3x3x128x128xbf16, #tpu.memory_space<vmem>>, vector<1x1x128x128xbf16>
    %43 = vector.shape_cast %42 : vector<1x1x128x128xbf16> to vector<128x128xbf16>
    %cst_36 = arith.constant dense<0.000000e+00> : vector<128x128xf32>
    %44 = tpu.matmul %41, %43, %cst_36 {dimension_numbers = #tpu.dot_dimension_numbers<[1], [0], [0], [1], [0, 0, 1, 1], [], []>} : vector<128x128xbf16>, vector<128x128xbf16>, vector<128x128xf32> -> vector<128x128xf32>
    %45 = arith.addf %39, %44 : vector<128x128xf32>
    %c0_37 = arith.constant 0 : index
    %c2 = arith.constant 2 : index
    %c0_38 = arith.constant 0 : index
    %46 = vector.load %arg9[%c0_37, %c2, %c0_38] : memref<10x18x128xbf16, #tpu.memory_space<vmem>>, vector<8x16x128xbf16>
    %47 = vector.shape_cast %46 : vector<8x16x128xbf16> to vector<128x128xbf16>
    %c0_39 = arith.constant 0 : index
    %c2_40 = arith.constant 2 : index
    %c0_41 = arith.constant 0 : index
    %c0_42 = arith.constant 0 : index
    %48 = vector.load %arg3[%c0_39, %c2_40, %c0_41, %c0_42] : memref<3x3x128x128xbf16, #tpu.memory_space<vmem>>, vector<1x1x128x128xbf16>
    %49 = vector.shape_cast %48 : vector<1x1x128x128xbf16> to vector<128x128xbf16>
    %cst_43 = arith.constant dense<0.000000e+00> : vector<128x128xf32>
    %50 = tpu.matmul %47, %49, %cst_43 {dimension_numbers = #tpu.dot_dimension_numbers<[1], [0], [0], [1], [0, 0, 1, 1], [], []>} : vector<128x128xbf16>, vector<128x128xbf16>, vector<128x128xf32> -> vector<128x128xf32>
    %51 = arith.addf %45, %50 : vector<128x128xf32>
    %c1_44 = arith.constant 1 : index
    %c0_45 = arith.constant 0 : index
    %c0_46 = arith.constant 0 : index
    %52 = vector.load %arg9[%c1_44, %c0_45, %c0_46] : memref<10x18x128xbf16, #tpu.memory_space<vmem>>, vector<8x16x128xbf16>
    %53 = vector.shape_cast %52 : vector<8x16x128xbf16> to vector<128x128xbf16>
    %c1_47 = arith.constant 1 : index
    %c0_48 = arith.constant 0 : index
    %c0_49 = arith.constant 0 : index
    %c0_50 = arith.constant 0 : index
    %54 = vector.load %arg3[%c1_47, %c0_48, %c0_49, %c0_50] : memref<3x3x128x128xbf16, #tpu.memory_space<vmem>>, vector<1x1x128x128xbf16>
    %55 = vector.shape_cast %54 : vector<1x1x128x128xbf16> to vector<128x128xbf16>
    %cst_51 = arith.constant dense<0.000000e+00> : vector<128x128xf32>
    %56 = tpu.matmul %53, %55, %cst_51 {dimension_numbers = #tpu.dot_dimension_numbers<[1], [0], [0], [1], [0, 0, 1, 1], [], []>} : vector<128x128xbf16>, vector<128x128xbf16>, vector<128x128xf32> -> vector<128x128xf32>
    %57 = arith.addf %51, %56 : vector<128x128xf32>
    %c1_52 = arith.constant 1 : index
    %c1_53 = arith.constant 1 : index
    %c0_54 = arith.constant 0 : index
    %58 = vector.load %arg9[%c1_52, %c1_53, %c0_54] : memref<10x18x128xbf16, #tpu.memory_space<vmem>>, vector<8x16x128xbf16>
    %59 = vector.shape_cast %58 : vector<8x16x128xbf16> to vector<128x128xbf16>
    %c1_55 = arith.constant 1 : index
    %c1_56 = arith.constant 1 : index
    %c0_57 = arith.constant 0 : index
    %c0_58 = arith.constant 0 : index
    %60 = vector.load %arg3[%c1_55, %c1_56, %c0_57, %c0_58] : memref<3x3x128x128xbf16, #tpu.memory_space<vmem>>, vector<1x1x128x128xbf16>
    %61 = vector.shape_cast %60 : vector<1x1x128x128xbf16> to vector<128x128xbf16>
    %cst_59 = arith.constant dense<0.000000e+00> : vector<128x128xf32>
    %62 = tpu.matmul %59, %61, %cst_59 {dimension_numbers = #tpu.dot_dimension_numbers<[1], [0], [0], [1], [0, 0, 1, 1], [], []>} : vector<128x128xbf16>, vector<128x128xbf16>, vector<128x128xf32> -> vector<128x128xf32>
    %63 = arith.addf %57, %62 : vector<128x128xf32>
    %c1_60 = arith.constant 1 : index
    %c2_61 = arith.constant 2 : index
    %c0_62 = arith.constant 0 : index
    %64 = vector.load %arg9[%c1_60, %c2_61, %c0_62] : memref<10x18x128xbf16, #tpu.memory_space<vmem>>, vector<8x16x128xbf16>
    %65 = vector.shape_cast %64 : vector<8x16x128xbf16> to vector<128x128xbf16>
    %c1_63 = arith.constant 1 : index
    %c2_64 = arith.constant 2 : index
    %c0_65 = arith.constant 0 : index
    %c0_66 = arith.constant 0 : index
    %66 = vector.load %arg3[%c1_63, %c2_64, %c0_65, %c0_66] : memref<3x3x128x128xbf16, #tpu.memory_space<vmem>>, vector<1x1x128x128xbf16>
    %67 = vector.shape_cast %66 : vector<1x1x128x128xbf16> to vector<128x128xbf16>
    %cst_67 = arith.constant dense<0.000000e+00> : vector<128x128xf32>
    %68 = tpu.matmul %65, %67, %cst_67 {dimension_numbers = #tpu.dot_dimension_numbers<[1], [0], [0], [1], [0, 0, 1, 1], [], []>} : vector<128x128xbf16>, vector<128x128xbf16>, vector<128x128xf32> -> vector<128x128xf32>
    %69 = arith.addf %63, %68 : vector<128x128xf32>
    %c2_68 = arith.constant 2 : index
    %c0_69 = arith.constant 0 : index
    %c0_70 = arith.constant 0 : index
    %70 = vector.load %arg9[%c2_68, %c0_69, %c0_70] : memref<10x18x128xbf16, #tpu.memory_space<vmem>>, vector<8x16x128xbf16>
    %71 = vector.shape_cast %70 : vector<8x16x128xbf16> to vector<128x128xbf16>
    %c2_71 = arith.constant 2 : index
    %c0_72 = arith.constant 0 : index
    %c0_73 = arith.constant 0 : index
    %c0_74 = arith.constant 0 : index
    %72 = vector.load %arg3[%c2_71, %c0_72, %c0_73, %c0_74] : memref<3x3x128x128xbf16, #tpu.memory_space<vmem>>, vector<1x1x128x128xbf16>
    %73 = vector.shape_cast %72 : vector<1x1x128x128xbf16> to vector<128x128xbf16>
    %cst_75 = arith.constant dense<0.000000e+00> : vector<128x128xf32>
    %74 = tpu.matmul %71, %73, %cst_75 {dimension_numbers = #tpu.dot_dimension_numbers<[1], [0], [0], [1], [0, 0, 1, 1], [], []>} : vector<128x128xbf16>, vector<128x128xbf16>, vector<128x128xf32> -> vector<128x128xf32>
    %75 = arith.addf %69, %74 : vector<128x128xf32>
    %c2_76 = arith.constant 2 : index
    %c1_77 = arith.constant 1 : index
    %c0_78 = arith.constant 0 : index
    %76 = vector.load %arg9[%c2_76, %c1_77, %c0_78] : memref<10x18x128xbf16, #tpu.memory_space<vmem>>, vector<8x16x128xbf16>
    %77 = vector.shape_cast %76 : vector<8x16x128xbf16> to vector<128x128xbf16>
    %c2_79 = arith.constant 2 : index
    %c1_80 = arith.constant 1 : index
    %c0_81 = arith.constant 0 : index
    %c0_82 = arith.constant 0 : index
    %78 = vector.load %arg3[%c2_79, %c1_80, %c0_81, %c0_82] : memref<3x3x128x128xbf16, #tpu.memory_space<vmem>>, vector<1x1x128x128xbf16>
    %79 = vector.shape_cast %78 : vector<1x1x128x128xbf16> to vector<128x128xbf16>
    %cst_83 = arith.constant dense<0.000000e+00> : vector<128x128xf32>
    %80 = tpu.matmul %77, %79, %cst_83 {dimension_numbers = #tpu.dot_dimension_numbers<[1], [0], [0], [1], [0, 0, 1, 1], [], []>} : vector<128x128xbf16>, vector<128x128xbf16>, vector<128x128xf32> -> vector<128x128xf32>
    %81 = arith.addf %75, %80 : vector<128x128xf32>
    %c2_84 = arith.constant 2 : index
    %c2_85 = arith.constant 2 : index
    %c0_86 = arith.constant 0 : index
    %82 = vector.load %arg9[%c2_84, %c2_85, %c0_86] : memref<10x18x128xbf16, #tpu.memory_space<vmem>>, vector<8x16x128xbf16>
    %83 = vector.shape_cast %82 : vector<8x16x128xbf16> to vector<128x128xbf16>
    %c2_87 = arith.constant 2 : index
    %c2_88 = arith.constant 2 : index
    %c0_89 = arith.constant 0 : index
    %c0_90 = arith.constant 0 : index
    %84 = vector.load %arg3[%c2_87, %c2_88, %c0_89, %c0_90] : memref<3x3x128x128xbf16, #tpu.memory_space<vmem>>, vector<1x1x128x128xbf16>
    %85 = vector.shape_cast %84 : vector<1x1x128x128xbf16> to vector<128x128xbf16>
    %cst_91 = arith.constant dense<0.000000e+00> : vector<128x128xf32>
    %86 = tpu.matmul %83, %85, %cst_91 {dimension_numbers = #tpu.dot_dimension_numbers<[1], [0], [0], [1], [0, 0, 1, 1], [], []>} : vector<128x128xbf16>, vector<128x128xbf16>, vector<128x128xf32> -> vector<128x128xf32>
    %87 = arith.addf %81, %86 : vector<128x128xf32>
    %cst_92 = arith.constant dense<0.000000e+00> : vector<128xf32>
    %88 = vector.multi_reduction <add>, %87, %cst_92 [0] : vector<128x128xf32> to vector<128xf32>
    %89 = vector.shape_cast %88 : vector<128xf32> to vector<1x1x1x128xf32>
    %c0_93 = arith.constant 0 : index
    %c0_94 = arith.constant 0 : index
    %c0_95 = arith.constant 0 : index
    %c0_96 = arith.constant 0 : index
    %90 = vector.load %arg7[%c0_93, %c0_94, %c0_95, %c0_96] : memref<1x1x1x128xf32, #tpu.memory_space<vmem>>, vector<1x1x1x128xf32>
    tpu.vector_store %arg7[%c0_93, %c0_94, %c0_95, %c0_96], %89 {strides = array<i32>} : memref<1x1x1x128xf32, #tpu.memory_space<vmem>>, vector<1x1x1x128xf32>,
    %91 = arith.mulf %87, %87 : vector<128x128xf32>
    %cst_97 = arith.constant dense<0.000000e+00> : vector<128xf32>
    %92 = vector.multi_reduction <add>, %91, %cst_97 [0] : vector<128x128xf32> to vector<128xf32>
    %93 = vector.shape_cast %92 : vector<128xf32> to vector<1x1x1x128xf32>
    %c0_98 = arith.constant 0 : index
    %c0_99 = arith.constant 0 : index
    %c0_100 = arith.constant 0 : index
    %c0_101 = arith.constant 0 : index
    %94 = vector.load %arg8[%c0_98, %c0_99, %c0_100, %c0_101] : memref<1x1x1x128xf32, #tpu.memory_space<vmem>>, vector<1x1x1x128xf32>
    tpu.vector_store %arg8[%c0_98, %c0_99, %c0_100, %c0_101], %93 {strides = array<i32>} : memref<1x1x1x128xf32, #tpu.memory_space<vmem>>, vector<1x1x1x128xf32>,
    %95 = vector.shape_cast %87 : vector<128x128xf32> to vector<1x8x16x128xf32>
    %96 = arith.truncf %95 : vector<1x8x16x128xf32> to vector<1x8x16x128xbf16>
    %c0_102 = arith.constant 0 : index
    %c0_103 = arith.constant 0 : index
    %c0_104 = arith.constant 0 : index
    %c0_105 = arith.constant 0 : index
    %97 = vector.load %arg6[%c0_102, %c0_103, %c0_104, %c0_105] : memref<1x8x16x128xbf16, #tpu.memory_space<vmem>>, vector<1x8x16x128xbf16>
    tpu.vector_store %arg6[%c0_102, %c0_103, %c0_104, %c0_105], %96 {strides = array<i32>} : memref<1x8x16x128xbf16, #tpu.memory_space<vmem>>, vector<1x8x16x128xbf16>,
    return
  }
  func.func @transform_0(%arg0: i32, %arg1: i32) -> (i32, i32, i32, i32) {
    %c0_i32 = arith.constant 0 : i32
    %c0_i32_0 = arith.constant 0 : i32
    %c0_i32_1 = arith.constant 0 : i32
    %c0_i32_2 = arith.constant 0 : i32
    return %arg0, %c0_i32, %c0_i32_0, %c0_i32_1 : i32, i32, i32, i32
  }
  func.func @transform_1(%arg0: i32, %arg1: i32) -> (i32, i32, i32, i32) {
    %c0_i32 = arith.constant 0 : i32
    %c0_i32_0 = arith.constant 0 : i32
    %c0_i32_1 = arith.constant 0 : i32
    %c0_i32_2 = arith.constant 0 : i32
    %c0_i32_3 = arith.constant 0 : i32
    return %c0_i32, %c0_i32_0, %c0_i32_1, %c0_i32_2 : i32, i32, i32, i32
  }
  func.func @transform_2(%arg0: i32, %arg1: i32) -> (i32, i32) {
    %c0_i32 = arith.constant 0 : i32
    %c0_i32_0 = arith.constant 0 : i32
    %c0_i32_1 = arith.constant 0 : i32
    return %c0_i32, %c0_i32_0 : i32, i32
  }
  func.func @transform_3(%arg0: i32, %arg1: i32) -> (i32, i32) {
    %c0_i32 = arith.constant 0 : i32
    %c0_i32_0 = arith.constant 0 : i32
    %c0_i32_1 = arith.constant 0 : i32
    return %c0_i32, %c0_i32_0 : i32, i32
  }
  func.func @transform_4(%arg0: i32, %arg1: i32) -> (i32, i32, i32, i32) {
    %c0_i32 = arith.constant 0 : i32
    %c0_i32_0 = arith.constant 0 : i32
    %c0_i32_1 = arith.constant 0 : i32
    return %arg0, %arg1, %c0_i32, %c0_i32_0 : i32, i32, i32, i32
  }
  func.func @transform_5(%arg0: i32, %arg1: i32) -> (i32, i32, i32, i32) {
    %c0_i32 = arith.constant 0 : i32
    %c0_i32_0 = arith.constant 0 : i32
    %c0_i32_1 = arith.constant 0 : i32
    return %arg0, %arg1, %c0_i32, %c0_i32_0 : i32, i32, i32, i32
  }
  func.func @transform_6(%arg0: i32, %arg1: i32) -> (i32, i32, i32, i32) {
    %c0_i32 = arith.constant 0 : i32
    %c0_i32_0 = arith.constant 0 : i32
    %c0_i32_1 = arith.constant 0 : i32
    return %arg0, %arg1, %c0_i32, %c0_i32_0 : i32, i32, i32, i32
  }
}

</mosaic_0001>

<llo_original>
// kernel: tpu_custom_call.1
$region0: #{tpu_custom_call.1}
  #allocation0 [shape = 'u32[]', space=smem, size = 0x4, offset = 0x4, fixed_abs, tag = 'smem constant byte address 0x4 - core index']
  #allocation1 [shape = 'u32[144,128]{1,0:T(1,128)}', space=vmem, size = 0x12000, scoped, tag = 'internal scratch']
  #allocation2 [shape = 'bf16[10,18,128]{2,1,0:T(8,128)(2,1)}', space=vmem, size = 0xf000, scoped, tag = 'scratch operand']
  %s0 = inlined_call_operand.hbm [shape: f32[2,16,16,128], index: 0, kind: input, shape index: {}]
  %s1 = inlined_call_operand.hbm [shape: bf16[3,3,128,128], index: 1, kind: input, shape index: {}]
  %s2 = inlined_call_operand.vmem [shape: f32[1,128], index: 2, kind: input, shape index: {}]
  %s3 = inlined_call_operand.vmem [shape: f32[1,128], index: 3, kind: input, shape index: {}]
  %s4 = inlined_call_operand.hbm [shape: bf16[2,16,16,128], index: 4, kind: output, shape index: {0}]
  %s5 = inlined_call_operand.hbm [shape: f32[2,2,1,128], index: 5, kind: output, shape index: {1}]
  %s6 = inlined_call_operand.hbm [shape: f32[2,2,1,128], index: 6, kind: output, shape index: {2}]
  %7 = xla_tuple %s4, %s5, %s6
  %s8 = sld [smem:[#allocation0]]
  $region89: #{tpu_custom_call.1} parent=0
    _
  %s10 = ssub.s32 1, %s8
  %s11 = scalar_select 0, %s10, %s8
  $region1: #{tpu_custom_call.1} parent=0
    #allocation3 [shape = 'u8[262144]{0}', space=vmem, size = 0x40000, scoped, tag = 'input window, operand 0']
    #allocation4 [shape = 's32[2]{0}', space=sflag, size = 0x8, scoped, tag = 'scoped memory for tpu_custom_call.1']
    #allocation5 [shape = 's32[2]{0}', space=sflag, size = 0x8, scoped, tag = 'scoped memory for tpu_custom_call.1']
    #allocation6 [shape = 'u8[294912]{0}', space=vmem, size = 0x48000, scoped, tag = 'input window, operand 1, single buffered']
    #allocation7 [shape = 's32[1]{0}', space=sflag, size = 0x4, scoped, tag = 'scoped memory for tpu_custom_call.1']
    #allocation8 [shape = 'u8[65536]{0}', space=vmem, size = 0x10000, scoped, tag = 'output window, operand 0']
    #allocation9 [shape = 'u8[1024]{0}', space=vmem, size = 0x400, scoped, tag = 'output window, operand 1']
    #allocation10 [shape = 's32[2]{0}', space=sflag, size = 0x8, scoped, tag = 'scoped memory for tpu_custom_call.1']
    #allocation11 [shape = 'u8[1024]{0}', space=vmem, size = 0x400, scoped, tag = 'output window, operand 2']
    %12 = vsyncpa [#allocation4], 0
    %s13 = scalar_lea.sflag [#allocation4], 1
    %14 = vsyncpa %s13, 0
    %15 = vsyncpa [#allocation7], 0
    %16 = vsyncpa [#allocation5], 0
    %s17 = scalar_lea.sflag [#allocation5], 1
    %18 = vsyncpa %s17, 0
    %19 = vsyncpa [#allocation10], 0
    %s20 = scalar_lea.sflag [#allocation10], 1
    %21 = vsyncpa %s20, 0
    loop: start=0, step=1, limit=6
    $region2: #{tpu_custom_call.1} parent=1 // loop_pre_header
      _
    $region3: #{tpu_custom_call.1} parent=1 // loop_header
      %s23 = sphi 0, %s27
      %p24 = scmp.ge.s32.totalorder %s23, 6
      %s30 = sphi 0, %s42
      %s31 = sphi 0, %s38
      %s32 = sphi 0, %s30
      %s33 = sphi 0, %s31
      %s34 = sphi 0, %s32
      %s35 = sphi 0, %s33
      %s45 = sphi 0, %s47
      %s48 = sphi 0, %s45
      %s49 = sphi 0, %s48
      %s65 = sphi 0, %s49
      %s69 = sphi 0, %s69
      %s71 = sphi 0, %s69
      %s72 = sphi 0, %s71
      %s86 = sphi 0, %s72
      %s90 = sphi 0, %s90
      %s92 = sphi 0, %s90
      %s93 = sphi 0, %s92
      %s107 = sphi 0, %s93
      %s111 = sphi 0, %s111
      %s113 = sphi 0, %s111
      %s114 = sphi 0, %s113
      %s128 = sphi 0, %s114
      %s136 = sphi 0, %s138
      %s139 = sphi 0, %s136
      %s140 = sphi 0, %s139
      %s156 = sphi 0, %s140
      %s164 = sphi 0, %s166
      %s167 = sphi 0, %s164
      %s168 = sphi 0, %s167
      %s184 = sphi 0, %s168
      %s192 = sphi 0, %s194
      %s195 = sphi 0, %s192
      %s196 = sphi 0, %s195
      %s212 = sphi 0, %s196
    $region4: #{tpu_custom_call.1} parent=1 // loop_header_branch
      %26 = sbr.rel (%p24) target = $region8
    $region5: #{tpu_custom_call.1} parent=1 // loop_body
      %s28 = ssub.s32 %s23, 1
      %s29 = ssub.s32 %s23, 2
      %s36 = sadd.s32 1, %s31
      %p37 = scmp.ge.s32.totalorder %s36, 2
      %s38 = scalar_select %p37, 0, %s36
      %s39 = sadd.s32 1, %s30
      %s40 = scalar_select %p37, %s39, %s30
      %p41 = scmp.ge.s32.totalorder %s40, 2
      %s42 = scalar_select %p41, 0, %s40
      %s43 = ssub.s32 %s30, %s42
      %p44 = scmp.eq.s32.totalorder %s43, 0
      %s46 = sadd.s32 %s45, 1
      %s47 = scalar_select %p44, %s45, %s46
      %p50 = pneg %p44
      %p51 = scmp.eq.s32.totalorder %s23, 3
      %p52 = por %p50, %p51
      %p53 = scmp.ne.s32.totalorder %s45, %s48
      %p54 = scmp.eq.s32.totalorder %s23, 0
      %p55 = por %p53, %p54
      %p56 = scmp.ne.s32.totalorder %s45, %s48
      %p57 = scmp.eq.s32.totalorder %s28, 3
      %p58 = por %p56, %p57
      %p59 = scmp.ne.s32.totalorder %s48, %s49
      %p60 = scmp.eq.s32.totalorder %s28, 0
      %p61 = por %p59, %p60
      %p62 = scmp.ne.s32.totalorder %s48, %s49
      %p63 = scmp.eq.s32.totalorder %s29, 3
      %p64 = por %p62, %p63
      %p66 = scmp.ne.s32.totalorder %s49, %s65
      %p67 = scmp.eq.s32.totalorder %s29, 0
      %p68 = por %p66, %p67
      %s70 = sadd.s32 %s69, 1
      %p73 = scmp.eq.s32.totalorder %s23, 3
      %p74 = scmp.ne.s32.totalorder %s69, %s71
      %p75 = scmp.eq.s32.totalorder %s23, 0
      %p76 = por %p74, %p75
      %p77 = scmp.ne.s32.totalorder %s69, %s71
      %p78 = scmp.eq.s32.totalorder %s28, 3
      %p79 = por %p77, %p78
      %p80 = scmp.ne.s32.totalorder %s71, %s72
      %p81 = scmp.eq.s32.totalorder %s28, 0
      %p82 = por %p80, %p81
      %p83 = scmp.ne.s32.totalorder %s71, %s72
      %p84 = scmp.eq.s32.totalorder %s29, 3
      %p85 = por %p83, %p84
      %p87 = scmp.ne.s32.totalorder %s72, %s86
      %p88 = scmp.eq.s32.totalorder %s29, 0
      %p89 = por %p87, %p88
      %s91 = sadd.s32 %s90, 1
      %p94 = scmp.eq.s32.totalorder %s23, 3
      %p95 = scmp.ne.s32.totalorder %s90, %s92
      %p96 = scmp.eq.s32.totalorder %s23, 0
      %p97 = por %p95, %p96
      %p98 = scmp.ne.s32.totalorder %s90, %s92
      %p99 = scmp.eq.s32.totalorder %s28, 3
      %p100 = por %p98, %p99
      %p101 = scmp.ne.s32.totalorder %s92, %s93
      %p102 = scmp.eq.s32.totalorder %s28, 0
      %p103 = por %p101, %p102
      %p104 = scmp.ne.s32.totalorder %s92, %s93
      %p105 = scmp.eq.s32.totalorder %s29, 3
      %p106 = por %p104, %p105
      %p108 = scmp.ne.s32.totalorder %s93, %s107
      %p109 = scmp.eq.s32.totalorder %s29, 0
      %p110 = por %p108, %p109
      %s112 = sadd.s32 %s111, 1
      %p115 = scmp.eq.s32.totalorder %s23, 3
      %p116 = scmp.ne.s32.totalorder %s111, %s113
      %p117 = scmp.eq.s32.totalorder %s23, 0
      %p118 = por %p116, %p117
      %p119 = scmp.ne.s32.totalorder %s111, %s113
      %p120 = scmp.eq.s32.totalorder %s28, 3
      %p121 = por %p119, %p120
      %p122 = scmp.ne.s32.totalorder %s113, %s114
      %p123 = scmp.eq.s32.totalorder %s28, 0
      %p124 = por %p122, %p123
      %p125 = scmp.ne.s32.totalorder %s113, %s114
      %p126 = scmp.eq.s32.totalorder %s29, 3
      %p127 = por %p125, %p126
      %p129 = scmp.ne.s32.totalorder %s114, %s128
      %p130 = scmp.eq.s32.totalorder %s29, 0
      %p131 = por %p129, %p130
      %s132 = ssub.s32 %s30, %s42
      %s133 = ssub.s32 %s31, %s38
      %s134 = sor.u32 %s132, %s133
      %p135 = scmp.eq.s32.totalorder %s134, 0
      %s137 = sadd.s32 %s136, 1
      %s138 = scalar_select %p135, %s136, %s137
      %p141 = pneg %p135
      %p142 = scmp.eq.s32.totalorder %s23, 3
      %p143 = por %p141, %p142
      %p144 = scmp.ne.s32.totalorder %s136, %s139
      %p145 = scmp.eq.s32.totalorder %s23, 0
      %p146 = por %p144, %p145
      %p147 = scmp.ne.s32.totalorder %s136, %s139
      %p148 = scmp.eq.s32.totalorder %s28, 3
      %p149 = por %p147, %p148
      %p150 = scmp.ne.s32.totalorder %s139, %s140
      %p151 = scmp.eq.s32.totalorder %s28, 0
      %p152 = por %p150, %p151
      %p153 = scmp.ne.s32.totalorder %s139, %s140
      %p154 = scmp.eq.s32.totalorder %s29, 3
      %p155 = por %p153, %p154
      %p157 = scmp.ne.s32.totalorder %s140, %s156
      %p158 = scmp.eq.s32.totalorder %s29, 0
      %p159 = por %p157, %p158
      %s160 = ssub.s32 %s30, %s42
      %s161 = ssub.s32 %s31, %s38
      %s162 = sor.u32 %s160, %s161
      %p163 = scmp.eq.s32.totalorder %s162, 0
      %s165 = sadd.s32 %s164, 1
      %s166 = scalar_select %p163, %s164, %s165
      %p169 = pneg %p163
      %p170 = scmp.eq.s32.totalorder %s23, 3
      %p171 = por %p169, %p170
      %p172 = scmp.ne.s32.totalorder %s164, %s167
      %p173 = scmp.eq.s32.totalorder %s23, 0
      %p174 = por %p172, %p173
      %p175 = scmp.ne.s32.totalorder %s164, %s167
      %p176 = scmp.eq.s32.totalorder %s28, 3
      %p177 = por %p175, %p176
      %p178 = scmp.ne.s32.totalorder %s167, %s168
      %p179 = scmp.eq.s32.totalorder %s28, 0
      %p180 = por %p178, %p179
      %p181 = scmp.ne.s32.totalorder %s167, %s168
      %p182 = scmp.eq.s32.totalorder %s29, 3
      %p183 = por %p181, %p182
      %p185 = scmp.ne.s32.totalorder %s168, %s184
      %p186 = scmp.eq.s32.totalorder %s29, 0
      %p187 = por %p185, %p186
      %s188 = ssub.s32 %s30, %s42
      %s189 = ssub.s32 %s31, %s38
      %s190 = sor.u32 %s188, %s189
      %p191 = scmp.eq.s32.totalorder %s190, 0
      %s193 = sadd.s32 %s192, 1
      %s194 = scalar_select %p191, %s192, %s193
      %p197 = pneg %p191
      %p198 = scmp.eq.s32.totalorder %s23, 3
      %p199 = por %p197, %p198
      %p200 = scmp.ne.s32.totalorder %s192, %s195
      %p201 = scmp.eq.s32.totalorder %s23, 0
      %p202 = por %p200, %p201
      %p203 = scmp.ne.s32.totalorder %s192, %s195
      %p204 = scmp.eq.s32.totalorder %s28, 3
      %p205 = por %p203, %p204
      %p206 = scmp.ne.s32.totalorder %s195, %s196
      %p207 = scmp.eq.s32.totalorder %s28, 0
      %p208 = por %p206, %p207
      %p209 = scmp.ne.s32.totalorder %s195, %s196
      %p210 = scmp.eq.s32.totalorder %s29, 3
      %p211 = por %p209, %p210
      %p213 = scmp.ne.s32.totalorder %s196, %s212
      %p214 = scmp.eq.s32.totalorder %s29, 0
      %p215 = por %p213, %p214
      %p216 = scmp.le.s32.totalorder 1, %s23
      %p217 = scmp.lt.s32.totalorder %s23, 5
      %p218 = pnand %p216, %p217
      %p219 = pneg %p218
      // Predicated region
      $region9: #{tpu_custom_call.1} parent=5 // pred_check
        _
      $region10: #{tpu_custom_call.1} parent=5 // pred_check_branch
        %221 = sbr.rel (%p218) target = $region12
      $region11: #{tpu_custom_call.1} parent=5 // pred_region
        %s222 = ssub.s32 %s23, 1
        // Predicated region
        $region13: #{tpu_custom_call.1} parent=11 // pred_check
          %p223 = pneg %p82
        $region14: #{tpu_custom_call.1} parent=11 // pred_check_branch
          %225 = sbr.rel (%p223) target = $region16
        $region15: #{tpu_custom_call.1} parent=11 // pred_region
          %s227 = ssub.s32 9216, 9216
          %228 = vsyncadd [#allocation7], %s227
          %s229 = sshll.u32 [#allocation6], 4
          %s230 = int_to_ptr.vmem [resolvable:$true] %s229
          %235 = dma.hbm_to_vmem [thread:$0]  %s1, 9216, %s230, [#allocation7], 64, 64, 4
        $region16: #{tpu_custom_call.1} parent=11 // pred_fallthru
          _
        // Predicated region
        $region17: #{tpu_custom_call.1} parent=11 // pred_check
          %p236 = pneg %p103
        $region18: #{tpu_custom_call.1} parent=11 // pred_check_branch
          %238 = sbr.rel (%p236) target = $region20
        $region19: #{tpu_custom_call.1} parent=11 // pred_region
          _
        $region20: #{tpu_custom_call.1} parent=11 // pred_fallthru
          _
        // Predicated region
        $region21: #{tpu_custom_call.1} parent=11 // pred_check
          %p239 = pneg %p124
        $region22: #{tpu_custom_call.1} parent=11 // pred_check_branch
          %241 = sbr.rel (%p239) target = $region24
        $region23: #{tpu_custom_call.1} parent=11 // pred_region
          _
        $region24: #{tpu_custom_call.1} parent=11 // pred_fallthru
          _
      $region12: #{tpu_custom_call.1} parent=5 // pred_fallthru
        _
      %p242 = scmp.lt.s32.totalorder %s23, 4
      // Predicated region
      $region25: #{tpu_custom_call.1} parent=5 // pred_check
        %p243 = pneg %p242
      $region26: #{tpu_custom_call.1} parent=5 // pred_check_branch
        %245 = sbr.rel (%p243) target = $region28
      $region27: #{tpu_custom_call.1} parent=5 // pred_region
        // Predicated region
        $region29: #{tpu_custom_call.1} parent=27 // pred_check
          %p246 = pneg %p55
        $region30: #{tpu_custom_call.1} parent=27 // pred_check_branch
          %248 = sbr.rel (%p246) target = $region32
        $region31: #{tpu_custom_call.1} parent=27 // pred_region
          %s249 = sand.u32 %s45, 1
          %s250 = scalar_lea.sflag [#allocation4], %s249
          %s251 = sand.u32 %s45, 1
          %s252 = smul.addr %s251, 256
          %s253 = scalar_lea.vmem [#allocation3], %s252
          %s255 = ssub.s32 4096, 4096
          %256 = vsyncadd %s250, %s255
          %s257 = smul.addr %s30, 32
          %s258 = smul.addr %s257, 128
          %s259 = scalar_lea.hbm %s0, %s258
          %s260 = sshll.u32 %s253, 4
          %s261 = int_to_ptr.vmem [resolvable:$true] %s260
          %266 = dma.hbm_to_vmem [thread:$0]  %s259, 4096, %s261, %s250, 128, 128, 8
        $region32: #{tpu_custom_call.1} parent=27 // pred_fallthru
          _
      $region28: #{tpu_custom_call.1} parent=5 // pred_fallthru
        _
      %p267 = scmp.le.s32.totalorder 1, %s23
      %p268 = scmp.lt.s32.totalorder %s23, 5
      %p269 = pnand %p267, %p268
      %p270 = pneg %p269
      // Predicated region
      $region33: #{tpu_custom_call.1} parent=5 // pred_check
        _
      $region34: #{tpu_custom_call.1} parent=5 // pred_check_branch
        %272 = sbr.rel (%p269) target = $region36
      $region35: #{tpu_custom_call.1} parent=5 // pred_region
        %s273 = ssub.s32 %s23, 1
        %s274 = sand.u32 %s48, 1
        %s275 = scalar_lea.sflag [#allocation4], %s274
        %s276 = sand.u32 %s48, 1
        %s277 = smul.addr %s276, 256
        %s278 = scalar_lea.vmem [#allocation3], %s277
        // Predicated region
        $region37: #{tpu_custom_call.1} parent=35 // pred_check
          %p279 = pneg %p61
        $region38: #{tpu_custom_call.1} parent=35 // pred_check_branch
          %281 = sbr.rel (%p279) target = $region40
        $region39: #{tpu_custom_call.1} parent=35 // pred_region
          %282 = dma.done %s275, 4096
        $region40: #{tpu_custom_call.1} parent=35 // pred_fallthru
          _
        // Predicated region
        $region41: #{tpu_custom_call.1} parent=35 // pred_check
          %p283 = pneg %p82
        $region42: #{tpu_custom_call.1} parent=35 // pred_check_branch
          %285 = sbr.rel (%p283) target = $region44
        $region43: #{tpu_custom_call.1} parent=35 // pred_region
          %286 = dma.done [#allocation7], 9216
        $region44: #{tpu_custom_call.1} parent=35 // pred_fallthru
          _
        %s287 = sand.u32 %s48, 1
        %s288 = scalar_lea.sflag [#allocation4], %s287
        %s289 = sand.u32 %s48, 1
        %s290 = smul.addr %s289, 256
        %s291 = scalar_lea.vmem [#allocation3], %s290
        %p292 = pneg %p61
        %p293 = pneg %p58
        %p294 = pneg %p82
        %p295 = pneg %p79
        %p296 = pneg %p103
        %p297 = pneg %p100
        %p298 = pneg %p124
        %p299 = pneg %p121
        %p300 = pneg %p152
        %p301 = pneg %p149
        %s302 = sand.u32 %s139, 1
        %s303 = scalar_lea.sflag [#allocation5], %s302
        %s304 = sand.u32 %s139, 1
        %s305 = smul.addr %s304, 64
        %s306 = scalar_lea.vmem [#allocation8], %s305
        %p307 = pneg %p180
        %p308 = pneg %p177
        %s309 = sand.u32 %s28, 1
        %s310 = scalar_lea.sflag [#allocation10], %s309
        %s311 = sand.u32 %s167, 1
        %s312 = scalar_lea.vmem [#allocation9], %s311
        %p313 = pneg %p208
        %p314 = pneg %p205
        %s315 = sand.u32 %s28, 1
        %s316 = scalar_lea.sflag [#allocation10], %s315
        %s317 = sand.u32 %s195, 1
        %s318 = scalar_lea.vmem [#allocation11], %s317
        %s319 = smul.u32 8, %s33
        %v321 = vld [vmem:[%s2] sm:$0x1]
        %v322 = vld [vmem:[%s3] sm:$0x1]
        %s323 = smul.u32 %s33, 8
        %vm324 = vcmask 1040384
        %vm325 = vsmask.f32 256
        %vm326 = vmand %vm324, %vm325
        %v327 = vld [vmem:[#allocation2] sm:$0x1]
        %v328 = vsel %vm326, 0, %v327
        %329 = vst [vmem:[#allocation2] sm:$0x1] %v328
        %v330 = vld [vmem:[#allocation2 + $0xc] sm:$0x1]
        %v331 = vsel %vm326, 0, %v330
        %332 = vst [vmem:[#allocation2 + $0xc] sm:$0x1] %v331
        %v333 = vld [vmem:[#allocation2 + $0x18] sm:$0x1]
        %v334 = vsel %vm326, 0, %v333
        %335 = vst [vmem:[#allocation2 + $0x18] sm:$0x1] %v334
        %v336 = vld [vmem:[#allocation2 + $0x24] sm:$0x1]
        %v337 = vsel %vm326, 0, %v336
        %338 = vst [vmem:[#allocation2 + $0x24] sm:$0x1] %v337
        %v339 = vld [vmem:[#allocation2 + $0x30] sm:$0x1]
        %v340 = vsel %vm326, 0, %v339
        %341 = vst [vmem:[#allocation2 + $0x30] sm:$0x1] %v340
        %v342 = vld [vmem:[#allocation2 + $0x3c] sm:$0x1]
        %v343 = vsel %vm326, 0, %v342
        %344 = vst [vmem:[#allocation2 + $0x3c] sm:$0x1] %v343
        %v345 = vld [vmem:[#allocation2 + $0x48] sm:$0x1]
        %v346 = vsel %vm326, 0, %v345
        %347 = vst [vmem:[#allocation2 + $0x48] sm:$0x1] %v346
        %v348 = vld [vmem:[#allocation2 + $0x54] sm:$0x1]
        %v349 = vsel %vm326, 0, %v348
        %350 = vst [vmem:[#allocation2 + $0x54] sm:$0x1] %v349
        %v351 = vld [vmem:[#allocation2 + $0x60] sm:$0x1]
        %v352 = vsel %vm326, 0, %v351
        %353 = vst [vmem:[#allocation2 + $0x60] sm:$0x1] %v352
        %v354 = vld [vmem:[#allocation2 + $0x6c] sm:$0x1]
        %v355 = vsel %vm326, 0, %v354
        %356 = vst [vmem:[#allocation2 + $0x6c] sm:$0x1] %v355
        %vm357 = vsmask.f32 7938
        %vm358 = vmand %vm324, %vm357
        %v359 = vld [vmem:[#allocation2 + $0x8] sm:$0x1]
        %v360 = vsel %vm358, 0, %v359
        %361 = vst [vmem:[#allocation2 + $0x8] sm:$0x1] %v360
        %v362 = vld [vmem:[#allocation2 + $0x14] sm:$0x1]
        %v363 = vsel %vm358, 0, %v362
        %364 = vst [vmem:[#allocation2 + $0x14] sm:$0x1] %v363
        %v365 = vld [vmem:[#allocation2 + $0x20] sm:$0x1]
        %v366 = vsel %vm358, 0, %v365
        %367 = vst [vmem:[#allocation2 + $0x20] sm:$0x1] %v366
        %v368 = vld [vmem:[#allocation2 + $0x2c] sm:$0x1]
        %v369 = vsel %vm358, 0, %v368
        %370 = vst [vmem:[#allocation2 + $0x2c] sm:$0x1] %v369
        %v371 = vld [vmem:[#allocation2 + $0x38] sm:$0x1]
        %v372 = vsel %vm358, 0, %v371
        %373 = vst [vmem:[#allocation2 + $0x38] sm:$0x1] %v372
        %v374 = vld [vmem:[#allocation2 + $0x44] sm:$0x1]
        %v375 = vsel %vm358, 0, %v374
        %376 = vst [vmem:[#allocation2 + $0x44] sm:$0x1] %v375
        %v377 = vld [vmem:[#allocation2 + $0x50] sm:$0x1]
        %v378 = vsel %vm358, 0, %v377
        %379 = vst [vmem:[#allocation2 + $0x50] sm:$0x1] %v378
        %v380 = vld [vmem:[#allocation2 + $0x5c] sm:$0x1]
        %v381 = vsel %vm358, 0, %v380
        %382 = vst [vmem:[#allocation2 + $0x5c] sm:$0x1] %v381
        %v383 = vld [vmem:[#allocation2 + $0x68] sm:$0x1]
        %v384 = vsel %vm358, 0, %v383
        %385 = vst [vmem:[#allocation2 + $0x68] sm:$0x1] %v384
        %v386 = vld [vmem:[#allocation2 + $0x74] sm:$0x1]
        %v387 = vsel %vm358, 0, %v386
        %388 = vst [vmem:[#allocation2 + $0x74] sm:$0x1] %v387
        %s389 = smul.u32 %s323, 16
        %s390 = scalar_lea.vmem %s278, %s389 [#allocation3]
        %v391 = vld [vmem:[%s390] sm:$0xff]
        %v392 = vld [vmem:[%s390 + $0x8] sm:$0xff]
        %v393 = vld [vmem:[%s390 + $0x10] sm:$0xff]
        %v394 = vld [vmem:[%s390 + $0x18] sm:$0xff]
        %v395 = vld [vmem:[%s390 + $0x20] sm:$0xff]
        %v396 = vld [vmem:[%s390 + $0x28] sm:$0xff]
        %v397 = vld [vmem:[%s390 + $0x30] sm:$0xff]
        %v398 = vld [vmem:[%s390 + $0x38] sm:$0xff]
        %v399 = vld [vmem:[%s390 + $0x40] sm:$0xff]
        %v400 = vld [vmem:[%s390 + $0x48] sm:$0xff]
        %v401 = vld [vmem:[%s390 + $0x50] sm:$0xff]
        %v402 = vld [vmem:[%s390 + $0x58] sm:$0xff]
        %v403 = vld [vmem:[%s390 + $0x60] sm:$0xff]
        %v404 = vld [vmem:[%s390 + $0x68] sm:$0xff]
        %v405 = vld [vmem:[%s390 + $0x70] sm:$0xff]
        %v406 = vld [vmem:[%s390 + $0x78] sm:$0xff]
        %v408 = vlaneseq
        %v409 = vshrl.u32 %v408, 7
        %v410 = vsub.s32 0, %v409
        %v411 = vrot.slane %v321, %v410
        %v413 = vmul.f32 %v391, %v411
        %v414 = vmul.f32 %v392, %v411
        %v415 = vmul.f32 %v393, %v411
        %v416 = vmul.f32 %v394, %v411
        %v417 = vmul.f32 %v395, %v411
        %v418 = vmul.f32 %v396, %v411
        %v419 = vmul.f32 %v397, %v411
        %v420 = vmul.f32 %v398, %v411
        %v421 = vmul.f32 %v399, %v411
        %v422 = vmul.f32 %v400, %v411
        %v423 = vmul.f32 %v401, %v411
        %v424 = vmul.f32 %v402, %v411
        %v425 = vmul.f32 %v403, %v411
        %v426 = vmul.f32 %v404, %v411
        %v427 = vmul.f32 %v405, %v411
        %v428 = vmul.f32 %v406, %v411
        %v430 = vlaneseq
        %v431 = vshrl.u32 %v430, 7
        %v432 = vsub.s32 0, %v431
        %v433 = vrot.slane %v322, %v432
        %v435 = vadd.f32 %v413, %v433
        %v436 = vadd.f32 %v414, %v433
        %v437 = vadd.f32 %v415, %v433
        %v438 = vadd.f32 %v416, %v433
        %v439 = vadd.f32 %v417, %v433
        %v440 = vadd.f32 %v418, %v433
        %v441 = vadd.f32 %v419, %v433
        %v442 = vadd.f32 %v420, %v433
        %v443 = vadd.f32 %v421, %v433
        %v444 = vadd.f32 %v422, %v433
        %v445 = vadd.f32 %v423, %v433
        %v446 = vadd.f32 %v424, %v433
        %v447 = vadd.f32 %v425, %v433
        %v448 = vadd.f32 %v426, %v433
        %v449 = vadd.f32 %v427, %v433
        %v450 = vadd.f32 %v428, %v433
        %v451 = vpack.c.bf16 %v436, %v435
        %v452 = vpack.c.bf16 %v438, %v437
        %v453 = vpack.c.bf16 %v440, %v439
        %v454 = vpack.c.bf16 %v442, %v441
        %v455 = vpack.c.bf16 %v444, %v443
        %v456 = vpack.c.bf16 %v446, %v445
        %v457 = vpack.c.bf16 %v448, %v447
        %v458 = vpack.c.bf16 %v450, %v449
        %v467 = vunpack.c.l.b16 %v451
        %v468 = vunpack.c.h.b16 %v451
        %v469 = vunpack.c.l.b16 %v452
        %v470 = vunpack.c.h.b16 %v452
        %v471 = vunpack.c.l.b16 %v453
        %v472 = vunpack.c.h.b16 %v453
        %v473 = vunpack.c.l.b16 %v454
        %v474 = vunpack.c.h.b16 %v454
        %v475 = vunpack.c.l.b16 %v455
        %v476 = vunpack.c.h.b16 %v455
        %v477 = vunpack.c.l.b16 %v456
        %v478 = vunpack.c.h.b16 %v456
        %v479 = vunpack.c.l.b16 %v457
        %v480 = vunpack.c.h.b16 %v457
        %v481 = vunpack.c.l.b16 %v458
        %v482 = vunpack.c.h.b16 %v458
        %v483 = vpack.c.b16 %v467, %v467
        %v484 = vpack.c.b16 %v468, %v468
        %v485 = vpack.c.b16 %v469, %v469
        %v486 = vpack.c.b16 %v470, %v470
        %v487 = vpack.c.b16 %v471, %v471
        %v488 = vpack.c.b16 %v472, %v472
        %v489 = vpack.c.b16 %v473, %v473
        %v490 = vpack.c.b16 %v474, %v474
        %v491 = vpack.c.b16 %v475, %v475
        %v492 = vpack.c.b16 %v476, %v476
        %v493 = vpack.c.b16 %v477, %v477
        %v494 = vpack.c.b16 %v478, %v478
        %v495 = vpack.c.b16 %v479, %v479
        %v496 = vpack.c.b16 %v480, %v480
        %v497 = vpack.c.b16 %v481, %v481
        %v498 = vpack.c.b16 %v482, %v482
        %vm499 = vsmask.f32 4368
        %vm500 = vmor %vm325, %vm499
        %v502 = vshrl.u32 %v483, 16
        %v504 = vrot.slane %v502, 7
        %v505 = vshll.u32 %v483, 16
        %v507 = vor.u32 %v504, %v505
        %v508 = vrot.slane %v504, 4
        %v510 = vshrl.u32 %v484, 16
        %v512 = vrot.slane %v510, 7
        %v513 = vshll.u32 %v484, 16
        %v515 = vor.u32 %v512, %v513
        %v516 = vsel %vm500, %v508, %v515
        %v517 = vrot.slane %v512, 4
        %v519 = vshrl.u32 %v485, 16
        %v521 = vrot.slane %v519, 7
        %v522 = vshll.u32 %v485, 16
        %v524 = vor.u32 %v521, %v522
        %v525 = vrot.slane %v521, 4
        %v527 = vshrl.u32 %v486, 16
        %v529 = vrot.slane %v527, 7
        %v530 = vshll.u32 %v486, 16
        %v532 = vor.u32 %v529, %v530
        %v533 = vsel %vm500, %v525, %v532
        %v534 = vrot.slane %v529, 4
        %v536 = vshrl.u32 %v487, 16
        %v538 = vrot.slane %v536, 7
        %v539 = vshll.u32 %v487, 16
        %v541 = vor.u32 %v538, %v539
        %v542 = vrot.slane %v538, 4
        %v544 = vshrl.u32 %v488, 16
        %v546 = vrot.slane %v544, 7
        %v547 = vshll.u32 %v488, 16
        %v549 = vor.u32 %v546, %v547
        %v550 = vsel %vm500, %v542, %v549
        %v551 = vrot.slane %v546, 4
        %v553 = vshrl.u32 %v489, 16
        %v555 = vrot.slane %v553, 7
        %v556 = vshll.u32 %v489, 16
        %v558 = vor.u32 %v555, %v556
        %v559 = vrot.slane %v555, 4
        %v561 = vshrl.u32 %v490, 16
        %v563 = vrot.slane %v561, 7
        %v564 = vshll.u32 %v490, 16
        %v566 = vor.u32 %v563, %v564
        %v567 = vsel %vm500, %v559, %v566
        %v568 = vrot.slane %v563, 4
        %v570 = vshrl.u32 %v491, 16
        %v572 = vrot.slane %v570, 7
        %v573 = vshll.u32 %v491, 16
        %v575 = vor.u32 %v572, %v573
        %v576 = vrot.slane %v572, 4
        %v578 = vshrl.u32 %v492, 16
        %v580 = vrot.slane %v578, 7
        %v581 = vshll.u32 %v492, 16
        %v583 = vor.u32 %v580, %v581
        %v584 = vsel %vm500, %v576, %v583
        %v585 = vrot.slane %v580, 4
        %v587 = vshrl.u32 %v493, 16
        %v589 = vrot.slane %v587, 7
        %v590 = vshll.u32 %v493, 16
        %v592 = vor.u32 %v589, %v590
        %v593 = vrot.slane %v589, 4
        %v595 = vshrl.u32 %v494, 16
        %v597 = vrot.slane %v595, 7
        %v598 = vshll.u32 %v494, 16
        %v600 = vor.u32 %v597, %v598
        %v601 = vsel %vm500, %v593, %v600
        %v602 = vrot.slane %v597, 4
        %v604 = vshrl.u32 %v495, 16
        %v606 = vrot.slane %v604, 7
        %v607 = vshll.u32 %v495, 16
        %v609 = vor.u32 %v606, %v607
        %v610 = vrot.slane %v606, 4
        %v612 = vshrl.u32 %v496, 16
        %v614 = vrot.slane %v612, 7
        %v615 = vshll.u32 %v496, 16
        %v617 = vor.u32 %v614, %v615
        %v618 = vsel %vm500, %v610, %v617
        %v619 = vrot.slane %v614, 4
        %v621 = vshrl.u32 %v497, 16
        %v623 = vrot.slane %v621, 7
        %v624 = vshll.u32 %v497, 16
        %v626 = vor.u32 %v623, %v624
        %v627 = vrot.slane %v623, 4
        %v629 = vshrl.u32 %v498, 16
        %v631 = vrot.slane %v629, 7
        %v632 = vshll.u32 %v498, 16
        %v634 = vor.u32 %v631, %v632
        %v635 = vsel %vm500, %v627, %v634
        %v636 = vrot.slane %v631, 4
        %s661 = scalar_lea.vmem [#allocation2], 12
        %vm662 = vcmask 1043456
        %vm663 = vmand %vm662, %vm357
        %v664 = vld [vmem:[%s661] sm:$0xf]
        %v665 = vsel %vm663, %v507, %v664
        %666 = vst [vmem:[%s661] sm:$0xf] %v665
        %667 = vst [vmem:[%s661 + $0x4] sm:$0xf] %v516
        %v668 = vld [vmem:[%s661 + $0x8] sm:$0x1]
        %v669 = vsel %vm326, %v517, %v668
        %670 = vst [vmem:[%s661 + $0x8] sm:$0x1] %v669
        %v671 = vld [vmem:[%s661 + $0xc] sm:$0xf]
        %v672 = vsel %vm663, %v524, %v671
        %673 = vst [vmem:[%s661 + $0xc] sm:$0xf] %v672
        %674 = vst [vmem:[%s661 + $0x10] sm:$0xf] %v533
        %v675 = vld [vmem:[%s661 + $0x14] sm:$0x1]
        %v676 = vsel %vm326, %v534, %v675
        %677 = vst [vmem:[%s661 + $0x14] sm:$0x1] %v676
        %v678 = vld [vmem:[%s661 + $0x18] sm:$0xf]
        %v679 = vsel %vm663, %v541, %v678
        %680 = vst [vmem:[%s661 + $0x18] sm:$0xf] %v679
        %681 = vst [vmem:[%s661 + $0x1c] sm:$0xf] %v550
        %v682 = vld [vmem:[%s661 + $0x20] sm:$0x1]
        %v683 = vsel %vm326, %v551, %v682
        %684 = vst [vmem:[%s661 + $0x20] sm:$0x1] %v683
        %v685 = vld [vmem:[%s661 + $0x24] sm:$0xf]
        %v686 = vsel %vm663, %v558, %v685
        %687 = vst [vmem:[%s661 + $0x24] sm:$0xf] %v686
        %688 = vst [vmem:[%s661 + $0x28] sm:$0xf] %v567
        %v689 = vld [vmem:[%s661 + $0x2c] sm:$0x1]
        %v690 = vsel %vm326, %v568, %v689
        %691 = vst [vmem:[%s661 + $0x2c] sm:$0x1] %v690
        %v692 = vld [vmem:[%s661 + $0x30] sm:$0xf]
        %v693 = vsel %vm663, %v575, %v692
        %694 = vst [vmem:[%s661 + $0x30] sm:$0xf] %v693
        %695 = vst [vmem:[%s661 + $0x34] sm:$0xf] %v584
        %v696 = vld [vmem:[%s661 + $0x38] sm:$0x1]
        %v697 = vsel %vm326, %v585, %v696
        %698 = vst [vmem:[%s661 + $0x38] sm:$0x1] %v697
        %v699 = vld [vmem:[%s661 + $0x3c] sm:$0xf]
        %v700 = vsel %vm663, %v592, %v699
        %701 = vst [vmem:[%s661 + $0x3c] sm:$0xf] %v700
        %702 = vst [vmem:[%s661 + $0x40] sm:$0xf] %v601
        %v703 = vld [vmem:[%s661 + $0x44] sm:$0x1]
        %v704 = vsel %vm326, %v602, %v703
        %705 = vst [vmem:[%s661 + $0x44] sm:$0x1] %v704
        %v706 = vld [vmem:[%s661 + $0x48] sm:$0xf]
        %v707 = vsel %vm663, %v609, %v706
        %708 = vst [vmem:[%s661 + $0x48] sm:$0xf] %v707
        %709 = vst [vmem:[%s661 + $0x4c] sm:$0xf] %v618
        %v710 = vld [vmem:[%s661 + $0x50] sm:$0x1]
        %v711 = vsel %vm326, %v619, %v710
        %712 = vst [vmem:[%s661 + $0x50] sm:$0x1] %v711
        %v713 = vld [vmem:[%s661 + $0x54] sm:$0xf]
        %v714 = vsel %vm663, %v626, %v713
        %715 = vst [vmem:[%s661 + $0x54] sm:$0xf] %v714
        %716 = vst [vmem:[%s661 + $0x58] sm:$0xf] %v635
        %v717 = vld [vmem:[%s661 + $0x5c] sm:$0x1]
        %v718 = vsel %vm326, %v636, %v717
        %719 = vst [vmem:[%s661 + $0x5c] sm:$0x1] %v718
        %p720 = scmp.gt.s32.totalorder %s33, 0
        // Predicated region
        $region45: #{tpu_custom_call.1} parent=35 // pred_check
          %p721 = pneg %p720
        $region46: #{tpu_custom_call.1} parent=35 // pred_check_branch
          %723 = sbr.rel (%p721) target = $region48
        $region47: #{tpu_custom_call.1} parent=35 // pred_region
          %s724 = ssub.s32 %s323, 1
          %s725 = smul.u32 %s724, 16
          %s726 = scalar_lea.vmem %s278, %s725 [#allocation3]
          %v727 = vld [vmem:[%s726] sm:$0xff]
          %v728 = vld [vmem:[%s726 + $0x8] sm:$0xff]
          %v729 = vmul.f32 %v727, %v411
          %v730 = vmul.f32 %v728, %v411
          %v731 = vadd.f32 %v729, %v433
          %v732 = vadd.f32 %v730, %v433
          %v733 = vpack.c.bf16 %v732, %v731
          %v735 = vunpack.c.l.b16 %v733
          %v736 = vunpack.c.h.b16 %v733
          %v737 = vpack.c.b16 %v735, %v735
          %v738 = vpack.c.b16 %v736, %v736
          %v740 = vshrl.u32 %v737, 16
          %v742 = vrot.slane %v740, 7
          %v743 = vshll.u32 %v737, 16
          %v745 = vor.u32 %v742, %v743
          %v746 = vrot.slane %v742, 4
          %v748 = vshrl.u32 %v738, 16
          %v750 = vrot.slane %v748, 7
          %v751 = vshll.u32 %v738, 16
          %v753 = vor.u32 %v750, %v751
          %v754 = vsel %vm500, %v746, %v753
          %v755 = vrot.slane %v750, 4
          %v759 = vld [vmem:[#allocation2] sm:$0xf]
          %v760 = vsel %vm663, %v745, %v759
          %761 = vst [vmem:[#allocation2] sm:$0xf] %v760
          %762 = vst [vmem:[#allocation2 + $0x4] sm:$0xf] %v754
          %v763 = vld [vmem:[#allocation2 + $0x8] sm:$0x1]
          %v764 = vsel %vm326, %v755, %v763
          %765 = vst [vmem:[#allocation2 + $0x8] sm:$0x1] %v764
        $region48: #{tpu_custom_call.1} parent=35 // pred_fallthru
          _
        %p766 = scmp.eq.s32.totalorder %s33, 0
        // Predicated region
        $region49: #{tpu_custom_call.1} parent=35 // pred_check
          %p767 = pneg %p766
        $region50: #{tpu_custom_call.1} parent=35 // pred_check_branch
          %769 = sbr.rel (%p767) target = $region52
        $region51: #{tpu_custom_call.1} parent=35 // pred_region
          %v770 = vld [vmem:[#allocation2] sm:$0xf]
          %v771 = vsel %vm663, 0, %v770
          %772 = vst [vmem:[#allocation2] sm:$0xf] %v771
          %773 = vst [vmem:[#allocation2 + $0x4] sm:$0xf] 0
          %v774 = vld [vmem:[#allocation2 + $0x8] sm:$0x1]
          %v775 = vsel %vm326, 0, %v774
          %776 = vst [vmem:[#allocation2 + $0x8] sm:$0x1] %v775
        $region52: #{tpu_custom_call.1} parent=35 // pred_fallthru
          _
        %p777 = scmp.lt.s32.totalorder %s33, 1
        // Predicated region
        $region53: #{tpu_custom_call.1} parent=35 // pred_check
          %p778 = pneg %p777
        $region54: #{tpu_custom_call.1} parent=35 // pred_check_branch
          %780 = sbr.rel (%p778) target = $region56
        $region55: #{tpu_custom_call.1} parent=35 // pred_region
          %s781 = sadd.s32 %s323, 8
          %s782 = smul.u32 %s781, 16
          %s783 = scalar_lea.vmem %s278, %s782 [#allocation3]
          %v784 = vld [vmem:[%s783] sm:$0xff]
          %v785 = vld [vmem:[%s783 + $0x8] sm:$0xff]
          %v786 = vmul.f32 %v784, %v411
          %v787 = vmul.f32 %v785, %v411
          %v788 = vadd.f32 %v786, %v433
          %v789 = vadd.f32 %v787, %v433
          %v790 = vpack.c.bf16 %v789, %v788
          %v792 = vunpack.c.l.b16 %v790
          %v793 = vunpack.c.h.b16 %v790
          %v794 = vpack.c.b16 %v792, %v792
          %v795 = vpack.c.b16 %v793, %v793
          %v797 = vshrl.u32 %v794, 16
          %v799 = vrot.slane %v797, 7
          %v800 = vshll.u32 %v794, 16
          %v802 = vor.u32 %v799, %v800
          %v803 = vrot.slane %v799, 4
          %v805 = vshrl.u32 %v795, 16
          %v807 = vrot.slane %v805, 7
          %v808 = vshll.u32 %v795, 16
          %v810 = vor.u32 %v807, %v808
          %v811 = vsel %vm500, %v803, %v810
          %v812 = vrot.slane %v807, 4
          %s816 = scalar_lea.vmem [#allocation2], 108
          %v817 = vld [vmem:[%s816] sm:$0xf]
          %v818 = vsel %vm663, %v802, %v817
          %819 = vst [vmem:[%s816] sm:$0xf] %v818
          %820 = vst [vmem:[%s816 + $0x4] sm:$0xf] %v811
          %v821 = vld [vmem:[%s816 + $0x8] sm:$0x1]
          %v822 = vsel %vm326, %v812, %v821
          %823 = vst [vmem:[%s816 + $0x8] sm:$0x1] %v822
        $region56: #{tpu_custom_call.1} parent=35 // pred_fallthru
          _
        %p824 = scmp.eq.s32.totalorder %s33, 1
        // Predicated region
        $region57: #{tpu_custom_call.1} parent=35 // pred_check
          %p825 = pneg %p824
        $region58: #{tpu_custom_call.1} parent=35 // pred_check_branch
          %827 = sbr.rel (%p825) target = $region60
        $region59: #{tpu_custom_call.1} parent=35 // pred_region
          %s828 = scalar_lea.vmem [#allocation2], 108
          %v829 = vld [vmem:[%s828] sm:$0xf]
          %v830 = vsel %vm663, 0, %v829
          %831 = vst [vmem:[%s828] sm:$0xf] %v830
          %832 = vst [vmem:[%s828 + $0x4] sm:$0xf] 0
          %v833 = vld [vmem:[%s828 + $0x8] sm:$0x1]
          %v834 = vsel %vm326, 0, %v833
          %835 = vst [vmem:[%s828 + $0x8] sm:$0x1] %v834
        $region60: #{tpu_custom_call.1} parent=35 // pred_fallthru
          _
        %v836 = vld [vmem:[#allocation2] sm:$0xf]
        %v837 = vld [vmem:[#allocation2 + $0x4] sm:$0xf]
        %v838 = vld [vmem:[#allocation2 + $0xc] sm:$0xf]
        %v839 = vld [vmem:[#allocation2 + $0x10] sm:$0xf]
        %v840 = vld [vmem:[#allocation2 + $0x18] sm:$0xf]
        %v841 = vld [vmem:[#allocation2 + $0x1c] sm:$0xf]
        %v842 = vld [vmem:[#allocation2 + $0x24] sm:$0xf]
        %v843 = vld [vmem:[#allocation2 + $0x28] sm:$0xf]
        %v844 = vld [vmem:[#allocation2 + $0x30] sm:$0xf]
        %v845 = vld [vmem:[#allocation2 + $0x34] sm:$0xf]
        %v846 = vld [vmem:[#allocation2 + $0x3c] sm:$0xf]
        %v847 = vld [vmem:[#allocation2 + $0x40] sm:$0xf]
        %v848 = vld [vmem:[#allocation2 + $0x48] sm:$0xf]
        %v849 = vld [vmem:[#allocation2 + $0x4c] sm:$0xf]
        %v850 = vld [vmem:[#allocation2 + $0x54] sm:$0xf]
        %v851 = vld [vmem:[#allocation2 + $0x58] sm:$0xf]
        %v852 = vld [vmem:[#allocation6] sm:$0xf]
        %v853 = vld [vmem:[#allocation6 + $0x4] sm:$0xf]
        %v854 = vld [vmem:[#allocation6 + $0x8] sm:$0xf]
        %v855 = vld [vmem:[#allocation6 + $0xc] sm:$0xf]
        %v856 = vld [vmem:[#allocation6 + $0x10] sm:$0xf]
        %v857 = vld [vmem:[#allocation6 + $0x14] sm:$0xf]
        %v858 = vld [vmem:[#allocation6 + $0x18] sm:$0xf]
        %v859 = vld [vmem:[#allocation6 + $0x1c] sm:$0xf]
        %v860 = vld [vmem:[#allocation6 + $0x20] sm:$0xf]
        %v861 = vld [vmem:[#allocation6 + $0x24] sm:$0xf]
        %v862 = vld [vmem:[#allocation6 + $0x28] sm:$0xf]
        %v863 = vld [vmem:[#allocation6 + $0x2c] sm:$0xf]
        %v864 = vld [vmem:[#allocation6 + $0x30] sm:$0xf]
        %v865 = vld [vmem:[#allocation6 + $0x34] sm:$0xf]
        %v866 = vld [vmem:[#allocation6 + $0x38] sm:$0xf]
        %v867 = vld [vmem:[#allocation6 + $0x3c] sm:$0xf]
        %v868 = vld [vmem:[#allocation2 + $0x8] sm:$0x1]
        %v869 = vld [vmem:[#allocation2 + $0x14] sm:$0x1]
        %v870 = vld [vmem:[#allocation2 + $0x20] sm:$0x1]
        %v871 = vld [vmem:[#allocation2 + $0x2c] sm:$0x1]
        %v872 = vld [vmem:[#allocation2 + $0x38] sm:$0x1]
        %v873 = vld [vmem:[#allocation2 + $0x44] sm:$0x1]
        %v874 = vld [vmem:[#allocation2 + $0x50] sm:$0x1]
        %v875 = vld [vmem:[#allocation2 + $0x5c] sm:$0x1]
        %vm876 = vsmask.f32 3328
        %vm877 = vsmask.f32 7440
        %vm878 = vmor %vm876, %vm877
        %v880 = vshrl.u32 %v836, 16
        %v882 = vrot.slane %v880, 4
        %v883 = vshll.u32 %v836, 16
        %v885 = vrot.slane %v883, 5
        %v886 = vor.u32 %v882, %v885
        %v887 = vrot.slane %v886, 4
        %v889 = vshll.u32 %v837, 16
        %v891 = vrot.slane %v889, 5
        %v892 = vsel %vm878, %v887, %v891
        %v893 = vshrl.u32 %v837, 16
        %v895 = vrot.slane %v893, 4
        %v896 = vor.u32 %v895, %v891
        %v897 = vrot.slane %v896, 4
        %v899 = vshll.u32 %v868, 16
        %v901 = vrot.slane %v899, 5
        %v902 = vsel %vm878, %v897, %v901
        %v904 = vshrl.u32 %v838, 16
        %v906 = vrot.slane %v904, 4
        %v907 = vshll.u32 %v838, 16
        %v909 = vrot.slane %v907, 5
        %v910 = vor.u32 %v906, %v909
        %v911 = vrot.slane %v910, 4
        %v913 = vshll.u32 %v839, 16
        %v915 = vrot.slane %v913, 5
        %v916 = vsel %vm878, %v911, %v915
        %v917 = vshrl.u32 %v839, 16
        %v919 = vrot.slane %v917, 4
        %v920 = vor.u32 %v919, %v915
        %v921 = vrot.slane %v920, 4
        %v923 = vshll.u32 %v869, 16
        %v925 = vrot.slane %v923, 5
        %v926 = vsel %vm878, %v921, %v925
        %v928 = vshrl.u32 %v840, 16
        %v930 = vrot.slane %v928, 4
        %v931 = vshll.u32 %v840, 16
        %v933 = vrot.slane %v931, 5
        %v934 = vor.u32 %v930, %v933
        %v935 = vrot.slane %v934, 4
        %v937 = vshll.u32 %v841, 16
        %v939 = vrot.slane %v937, 5
        %v940 = vsel %vm878, %v935, %v939
        %v941 = vshrl.u32 %v841, 16
        %v943 = vrot.slane %v941, 4
        %v944 = vor.u32 %v943, %v939
        %v945 = vrot.slane %v944, 4
        %v947 = vshll.u32 %v870, 16
        %v949 = vrot.slane %v947, 5
        %v950 = vsel %vm878, %v945, %v949
        %v952 = vshrl.u32 %v842, 16
        %v954 = vrot.slane %v952, 4
        %v955 = vshll.u32 %v842, 16
        %v957 = vrot.slane %v955, 5
        %v958 = vor.u32 %v954, %v957
        %v959 = vrot.slane %v958, 4
        %v961 = vshll.u32 %v843, 16
        %v963 = vrot.slane %v961, 5
        %v964 = vsel %vm878, %v959, %v963
        %v965 = vshrl.u32 %v843, 16
        %v967 = vrot.slane %v965, 4
        %v968 = vor.u32 %v967, %v963
        %v969 = vrot.slane %v968, 4
        %v971 = vshll.u32 %v871, 16
        %v973 = vrot.slane %v971, 5
        %v974 = vsel %vm878, %v969, %v973
        %v976 = vshrl.u32 %v844, 16
        %v978 = vrot.slane %v976, 4
        %v979 = vshll.u32 %v844, 16
        %v981 = vrot.slane %v979, 5
        %v982 = vor.u32 %v978, %v981
        %v983 = vrot.slane %v982, 4
        %v985 = vshll.u32 %v845, 16
        %v987 = vrot.slane %v985, 5
        %v988 = vsel %vm878, %v983, %v987
        %v989 = vshrl.u32 %v845, 16
        %v991 = vrot.slane %v989, 4
        %v992 = vor.u32 %v991, %v987
        %v993 = vrot.slane %v992, 4
        %v995 = vshll.u32 %v872, 16
        %v997 = vrot.slane %v995, 5
        %v998 = vsel %vm878, %v993, %v997
        %v1000 = vshrl.u32 %v846, 16
        %v1002 = vrot.slane %v1000, 4
        %v1003 = vshll.u32 %v846, 16
        %v1005 = vrot.slane %v1003, 5
        %v1006 = vor.u32 %v1002, %v1005
        %v1007 = vrot.slane %v1006, 4
        %v1009 = vshll.u32 %v847, 16
        %v1011 = vrot.slane %v1009, 5
        %v1012 = vsel %vm878, %v1007, %v1011
        %v1013 = vshrl.u32 %v847, 16
        %v1015 = vrot.slane %v1013, 4
        %v1016 = vor.u32 %v1015, %v1011
        %v1017 = vrot.slane %v1016, 4
        %v1019 = vshll.u32 %v873, 16
        %v1021 = vrot.slane %v1019, 5
        %v1022 = vsel %vm878, %v1017, %v1021
        %v1024 = vshrl.u32 %v848, 16
        %v1026 = vrot.slane %v1024, 4
        %v1027 = vshll.u32 %v848, 16
        %v1029 = vrot.slane %v1027, 5
        %v1030 = vor.u32 %v1026, %v1029
        %v1031 = vrot.slane %v1030, 4
        %v1033 = vshll.u32 %v849, 16
        %v1035 = vrot.slane %v1033, 5
        %v1036 = vsel %vm878, %v1031, %v1035
        %v1037 = vshrl.u32 %v849, 16
        %v1039 = vrot.slane %v1037, 4
        %v1040 = vor.u32 %v1039, %v1035
        %v1041 = vrot.slane %v1040, 4
        %v1043 = vshll.u32 %v874, 16
        %v1045 = vrot.slane %v1043, 5
        %v1046 = vsel %vm878, %v1041, %v1045
        %v1048 = vshrl.u32 %v850, 16
        %v1050 = vrot.slane %v1048, 4
        %v1051 = vshll.u32 %v850, 16
        %v1053 = vrot.slane %v1051, 5
        %v1054 = vor.u32 %v1050, %v1053
        %v1055 = vrot.slane %v1054, 4
        %v1057 = vshll.u32 %v851, 16
        %v1059 = vrot.slane %v1057, 5
        %v1060 = vsel %vm878, %v1055, %v1059
        %v1061 = vshrl.u32 %v851, 16
        %v1063 = vrot.slane %v1061, 4
        %v1064 = vor.u32 %v1063, %v1059
        %v1065 = vrot.slane %v1064, 4
        %v1067 = vshll.u32 %v875, 16
        %v1069 = vrot.slane %v1067, 5
        %v1070 = vsel %vm878, %v1065, %v1069
        %s1071 = scalar_lea.vmem [#allocation6], 64
        %v1072 = vld [vmem:[%s1071] sm:$0xf]
        %v1073 = vld [vmem:[%s1071 + $0x4] sm:$0xf]
        %v1074 = vld [vmem:[%s1071 + $0x8] sm:$0xf]
        %v1075 = vld [vmem:[%s1071 + $0xc] sm:$0xf]
        %v1076 = vld [vmem:[%s1071 + $0x10] sm:$0xf]
        %v1077 = vld [vmem:[%s1071 + $0x14] sm:$0xf]
        %v1078 = vld [vmem:[%s1071 + $0x18] sm:$0xf]
        %v1079 = vld [vmem:[%s1071 + $0x1c] sm:$0xf]
        %v1080 = vld [vmem:[%s1071 + $0x20] sm:$0xf]
        %v1081 = vld [vmem:[%s1071 + $0x24] sm:$0xf]
        %v1082 = vld [vmem:[%s1071 + $0x28] sm:$0xf]
        %v1083 = vld [vmem:[%s1071 + $0x2c] sm:$0xf]
        %v1084 = vld [vmem:[%s1071 + $0x30] sm:$0xf]
        %v1085 = vld [vmem:[%s1071 + $0x34] sm:$0xf]
        %v1086 = vld [vmem:[%s1071 + $0x38] sm:$0xf]
        %v1087 = vld [vmem:[%s1071 + $0x3c] sm:$0xf]
        %v1088 = vunpack.c.l.b16 %v892
        %v1089 = vunpack.c.l.b16 %v902
        %v1090 = vunpack.c.l.b16 %v916
        %v1091 = vunpack.c.l.b16 %v926
        %v1092 = vunpack.c.l.b16 %v940
        %v1093 = vunpack.c.l.b16 %v950
        %v1094 = vunpack.c.l.b16 %v964
        %v1095 = vunpack.c.l.b16 %v974
        %v1096 = vunpack.c.l.b16 %v988
        %v1097 = vunpack.c.l.b16 %v998
        %v1098 = vunpack.c.l.b16 %v1012
        %v1099 = vunpack.c.l.b16 %v1022
        %v1100 = vunpack.c.l.b16 %v1036
        %v1101 = vunpack.c.l.b16 %v1046
        %v1102 = vunpack.c.l.b16 %v1060
        %v1103 = vunpack.c.l.b16 %v1070
        %v1104 = vpack.c.b16 %v1089, %v1088
        %v1105 = vpack.c.b16 %v1091, %v1090
        %v1106 = vpack.c.b16 %v1093, %v1092
        %v1107 = vpack.c.b16 %v1095, %v1094
        %v1108 = vpack.c.b16 %v1097, %v1096
        %v1109 = vpack.c.b16 %v1099, %v1098
        %v1110 = vpack.c.b16 %v1101, %v1100
        %v1111 = vpack.c.b16 %v1103, %v1102
        %v1136 = vunpack.c.l.b16 %v1072
        %v1137 = vunpack.c.l.b16 %v1073
        %v1138 = vunpack.c.l.b16 %v1074
        %v1139 = vunpack.c.l.b16 %v1075
        %v1140 = vunpack.c.l.b16 %v1076
        %v1141 = vunpack.c.l.b16 %v1077
        %v1142 = vunpack.c.l.b16 %v1078
        %v1143 = vunpack.c.l.b16 %v1079
        %v1144 = vunpack.c.l.b16 %v1080
        %v1145 = vunpack.c.l.b16 %v1081
        %v1146 = vunpack.c.l.b16 %v1082
        %v1147 = vunpack.c.l.b16 %v1083
        %v1148 = vunpack.c.l.b16 %v1084
        %v1149 = vunpack.c.l.b16 %v1085
        %v1150 = vunpack.c.l.b16 %v1086
        %v1151 = vunpack.c.l.b16 %v1087
        %v1152 = vpack.c.b16 %v1137, %v1136
        %v1153 = vpack.c.b16 %v1139, %v1138
        %v1154 = vpack.c.b16 %v1141, %v1140
        %v1155 = vpack.c.b16 %v1143, %v1142
        %v1156 = vpack.c.b16 %v1145, %v1144
        %v1157 = vpack.c.b16 %v1147, %v1146
        %v1158 = vpack.c.b16 %v1149, %v1148
        %v1159 = vpack.c.b16 %v1151, %v1150
        %1168 = vmatprep.subr.bf16.mxu0 0
        %1169 = vmatpush1.bf16.msra.mxu0 %v1152
        %1170 = vmatprep.subr.bf16.mxu0 0
        %1171 = vmatpush1.bf16.msra.mxu0 %v1153
        %1172 = vmatprep.subr.bf16.mxu0 0
        %1173 = vmatpush1.bf16.msra.mxu0 %v1154
        %1174 = vmatprep.subr.bf16.mxu0 0
        %1175 = vmatpush1.bf16.msra.mxu0 %v1155
        %1176 = vmatprep.subr.bf16.mxu0 0
        %1177 = vmatpush1.bf16.msra.mxu0 %v1156
        %1178 = vmatprep.subr.bf16.mxu0 0
        %1179 = vmatpush1.bf16.msra.mxu0 %v1157
        %1180 = vmatprep.subr.bf16.mxu0 0
        %1181 = vmatpush1.bf16.msra.mxu0 %v1158
        %1182 = vmatprep.subr.bf16.mxu0 0
        %1183 = vmatpush1.bf16.msra.mxu0 %v1159
        %1184 = vmatprep.subr.bf16.mxu0 0
        %1185 = vmatpush1.bf16.msra.mxu0 0
        %1186 = vmatprep.subr.bf16.mxu0 0
        %1187 = vmatpush1.bf16.msra.mxu0 0
        %1188 = vmatprep.subr.bf16.mxu0 0
        %1189 = vmatpush1.bf16.msra.mxu0 0
        %1190 = vmatprep.subr.bf16.mxu0 0
        %1191 = vmatpush1.bf16.msra.mxu0 0
        %1192 = vmatprep.subr.bf16.mxu0 0
        %1193 = vmatpush1.bf16.msra.mxu0 0
        %1194 = vmatprep.subr.bf16.mxu0 0
        %1195 = vmatpush1.bf16.msra.mxu0 0
        %1196 = vmatprep.subr.bf16.mxu0 0
        %1197 = vmatpush1.bf16.msra.mxu0 0
        %1198 = vmatprep.subr.bf16.mxu0 0
        %1199 = vmatpush1.bf16.msra.mxu0 0
        %1200 = vmatprep.mubr.bf16.mxu0 0
        %1201 = vmatmul.mubr.bf16.gmra.mrb[0].mxu0 %v1104
        %v1202 = vpop.f32.mrb[0].mxu0
        %v1203 = vadd.f32 0.0, %v1202
        %v1204 = vpop.f32.mrb[0].mxu0
        %v1205 = vpop.f32.mrb[0].mxu0
        %v1206 = vadd.f32 0.0, %v1205
        %v1207 = vpop.f32.mrb[0].mxu0
        %1208 = vmatprep.mubr.bf16.mxu0 0
        %1209 = vmatmul.mubr.bf16.gmra.mrb[0].mxu0 %v1105
        %v1210 = vpop.f32.mrb[0].mxu0
        %v1211 = vadd.f32 0.0, %v1210
        %v1212 = vpop.f32.mrb[0].mxu0
        %v1213 = vpop.f32.mrb[0].mxu0
        %v1214 = vadd.f32 0.0, %v1213
        %v1215 = vpop.f32.mrb[0].mxu0
        %1216 = vmatprep.mubr.bf16.mxu0 0
        %1217 = vmatmul.mubr.bf16.gmra.mrb[0].mxu0 %v1106
        %v1218 = vpop.f32.mrb[0].mxu0
        %v1219 = vadd.f32 0.0, %v1218
        %v1220 = vpop.f32.mrb[0].mxu0
        %v1221 = vpop.f32.mrb[0].mxu0
        %v1222 = vadd.f32 0.0, %v1221
        %v1223 = vpop.f32.mrb[0].mxu0
        %1224 = vmatprep.mubr.bf16.mxu0 0
        %1225 = vmatmul.mubr.bf16.gmra.mrb[0].mxu0 %v1107
        %v1226 = vpop.f32.mrb[0].mxu0
        %v1227 = vadd.f32 0.0, %v1226
        %v1228 = vpop.f32.mrb[0].mxu0
        %v1229 = vpop.f32.mrb[0].mxu0
        %v1230 = vadd.f32 0.0, %v1229
        %v1231 = vpop.f32.mrb[0].mxu0
        %1232 = vmatprep.mubr.bf16.mxu0 0
        %1233 = vmatmul.mubr.bf16.gmra.mrb[0].mxu0 %v1108
        %v1234 = vpop.f32.mrb[0].mxu0
        %v1235 = vadd.f32 0.0, %v1234
        %v1236 = vpop.f32.mrb[0].mxu0
        %v1237 = vpop.f32.mrb[0].mxu0
        %v1238 = vadd.f32 0.0, %v1237
        %v1239 = vpop.f32.mrb[0].mxu0
        %1240 = vmatprep.mubr.bf16.mxu0 0
        %1241 = vmatmul.mubr.bf16.gmra.mrb[0].mxu0 %v1109
        %v1242 = vpop.f32.mrb[0].mxu0
        %v1243 = vadd.f32 0.0, %v1242
        %v1244 = vpop.f32.mrb[0].mxu0
        %v1245 = vpop.f32.mrb[0].mxu0
        %v1246 = vadd.f32 0.0, %v1245
        %v1247 = vpop.f32.mrb[0].mxu0
        %1248 = vmatprep.mubr.bf16.mxu0 0
        %1249 = vmatmul.mubr.bf16.gmra.mrb[0].mxu0 %v1110
        %v1250 = vpop.f32.mrb[0].mxu0
        %v1251 = vadd.f32 0.0, %v1250
        %v1252 = vpop.f32.mrb[0].mxu0
        %v1253 = vpop.f32.mrb[0].mxu0
        %v1254 = vadd.f32 0.0, %v1253
        %v1255 = vpop.f32.mrb[0].mxu0
        %1256 = vmatprep.mubr.bf16.mxu0 0
        %1257 = vmatmul.mubr.bf16.gmra.mrb[0].mxu0 %v1111
        %v1258 = vpop.f32.mrb[0].mxu0
        %v1259 = vadd.f32 0.0, %v1258
        %v1260 = vpop.f32.mrb[0].mxu0
        %v1261 = vpop.f32.mrb[0].mxu0
        %v1262 = vadd.f32 0.0, %v1261
        %v1263 = vpop.f32.mrb[0].mxu0
        %1264 = vdwg.mxu0
        %v1281 = vunpack.c.l.b16 %v836
        %v1282 = vunpack.c.l.b16 %v837
        %v1283 = vunpack.c.l.b16 %v838
        %v1284 = vunpack.c.l.b16 %v839
        %v1285 = vunpack.c.l.b16 %v840
        %v1286 = vunpack.c.l.b16 %v841
        %v1287 = vunpack.c.l.b16 %v842
        %v1288 = vunpack.c.l.b16 %v843
        %v1289 = vunpack.c.l.b16 %v844
        %v1290 = vunpack.c.l.b16 %v845
        %v1291 = vunpack.c.l.b16 %v846
        %v1292 = vunpack.c.l.b16 %v847
        %v1293 = vunpack.c.l.b16 %v848
        %v1294 = vunpack.c.l.b16 %v849
        %v1295 = vunpack.c.l.b16 %v850
        %v1296 = vunpack.c.l.b16 %v851
        %v1297 = vpack.c.b16 %v1282, %v1281
        %v1298 = vpack.c.b16 %v1284, %v1283
        %v1299 = vpack.c.b16 %v1286, %v1285
        %v1300 = vpack.c.b16 %v1288, %v1287
        %v1301 = vpack.c.b16 %v1290, %v1289
        %v1302 = vpack.c.b16 %v1292, %v1291
        %v1303 = vpack.c.b16 %v1294, %v1293
        %v1304 = vpack.c.b16 %v1296, %v1295
        %v1329 = vunpack.c.l.b16 %v852
        %v1330 = vunpack.c.l.b16 %v853
        %v1331 = vunpack.c.l.b16 %v854
        %v1332 = vunpack.c.l.b16 %v855
        %v1333 = vunpack.c.l.b16 %v856
        %v1334 = vunpack.c.l.b16 %v857
        %v1335 = vunpack.c.l.b16 %v858
        %v1336 = vunpack.c.l.b16 %v859
        %v1337 = vunpack.c.l.b16 %v860
        %v1338 = vunpack.c.l.b16 %v861
        %v1339 = vunpack.c.l.b16 %v862
        %v1340 = vunpack.c.l.b16 %v863
        %v1341 = vunpack.c.l.b16 %v864
        %v1342 = vunpack.c.l.b16 %v865
        %v1343 = vunpack.c.l.b16 %v866
        %v1344 = vunpack.c.l.b16 %v867
        %v1345 = vpack.c.b16 %v1330, %v1329
        %v1346 = vpack.c.b16 %v1332, %v1331
        %v1347 = vpack.c.b16 %v1334, %v1333
        %v1348 = vpack.c.b16 %v1336, %v1335
        %v1349 = vpack.c.b16 %v1338, %v1337
        %v1350 = vpack.c.b16 %v1340, %v1339
        %v1351 = vpack.c.b16 %v1342, %v1341
        %v1352 = vpack.c.b16 %v1344, %v1343
        %1361 = vmatprep.subr.bf16.mxu0 0
        %1362 = vmatpush1.bf16.msra.mxu0 %v1345
        %1363 = vmatprep.subr.bf16.mxu0 0
        %1364 = vmatpush1.bf16.msra.mxu0 %v1346
        %1365 = vmatprep.subr.bf16.mxu0 0
        %1366 = vmatpush1.bf16.msra.mxu0 %v1347
        %1367 = vmatprep.subr.bf16.mxu0 0
        %1368 = vmatpush1.bf16.msra.mxu0 %v1348
        %1369 = vmatprep.subr.bf16.mxu0 0
        %1370 = vmatpush1.bf16.msra.mxu0 %v1349
        %1371 = vmatprep.subr.bf16.mxu0 0
        %1372 = vmatpush1.bf16.msra.mxu0 %v1350
        %1373 = vmatprep.subr.bf16.mxu0 0
        %1374 = vmatpush1.bf16.msra.mxu0 %v1351
        %1375 = vmatprep.subr.bf16.mxu0 0
        %1376 = vmatpush1.bf16.msra.mxu0 %v1352
        %1377 = vmatprep.subr.bf16.mxu0 0
        %1378 = vmatpush1.bf16.msra.mxu0 0
        %1379 = vmatprep.subr.bf16.mxu0 0
        %1380 = vmatpush1.bf16.msra.mxu0 0
        %1381 = vmatprep.subr.bf16.mxu0 0
        %1382 = vmatpush1.bf16.msra.mxu0 0
        %1383 = vmatprep.subr.bf16.mxu0 0
        %1384 = vmatpush1.bf16.msra.mxu0 0
        %1385 = vmatprep.subr.bf16.mxu0 0
        %1386 = vmatpush1.bf16.msra.mxu0 0
        %1387 = vmatprep.subr.bf16.mxu0 0
        %1388 = vmatpush1.bf16.msra.mxu0 0
        %1389 = vmatprep.subr.bf16.mxu0 0
        %1390 = vmatpush1.bf16.msra.mxu0 0
        %1391 = vmatprep.subr.bf16.mxu0 0
        %1392 = vmatpush1.bf16.msra.mxu0 0
        %1393 = vmatprep.mubr.bf16.mxu0 0
        %1394 = vmatmul.mubr.bf16.gmra.mrb[0].mxu0 %v1297
        %v1395 = vpop.f32.mrb[0].mxu0
        %v1396 = vadd.f32 %v1203, %v1395
        %v1397 = vpop.f32.mrb[0].mxu0
        %v1398 = vpop.f32.mrb[0].mxu0
        %v1399 = vadd.f32 %v1206, %v1398
        %v1400 = vpop.f32.mrb[0].mxu0
        %1401 = vmatprep.mubr.bf16.mxu0 0
        %1402 = vmatmul.mubr.bf16.gmra.mrb[0].mxu0 %v1298
        %v1403 = vpop.f32.mrb[0].mxu0
        %v1404 = vadd.f32 %v1211, %v1403
        %v1405 = vpop.f32.mrb[0].mxu0
        %v1406 = vpop.f32.mrb[0].mxu0
        %v1407 = vadd.f32 %v1214, %v1406
        %v1408 = vpop.f32.mrb[0].mxu0
        %1409 = vmatprep.mubr.bf16.mxu0 0
        %1410 = vmatmul.mubr.bf16.gmra.mrb[0].mxu0 %v1299
        %v1411 = vpop.f32.mrb[0].mxu0
        %v1412 = vadd.f32 %v1219, %v1411
        %v1413 = vpop.f32.mrb[0].mxu0
        %v1414 = vpop.f32.mrb[0].mxu0
        %v1415 = vadd.f32 %v1222, %v1414
        %v1416 = vpop.f32.mrb[0].mxu0
        %1417 = vmatprep.mubr.bf16.mxu0 0
        %1418 = vmatmul.mubr.bf16.gmra.mrb[0].mxu0 %v1300
        %v1419 = vpop.f32.mrb[0].mxu0
        %v1420 = vadd.f32 %v1227, %v1419
        %v1421 = vpop.f32.mrb[0].mxu0
        %v1422 = vpop.f32.mrb[0].mxu0
        %v1423 = vadd.f32 %v1230, %v1422
        %v1424 = vpop.f32.mrb[0].mxu0
        %1425 = vmatprep.mubr.bf16.mxu0 0
        %1426 = vmatmul.mubr.bf16.gmra.mrb[0].mxu0 %v1301
        %v1427 = vpop.f32.mrb[0].mxu0
        %v1428 = vadd.f32 %v1235, %v1427
        %v1429 = vpop.f32.mrb[0].mxu0
        %v1430 = vpop.f32.mrb[0].mxu0
        %v1431 = vadd.f32 %v1238, %v1430
        %v1432 = vpop.f32.mrb[0].mxu0
        %1433 = vmatprep.mubr.bf16.mxu0 0
        %1434 = vmatmul.mubr.bf16.gmra.mrb[0].mxu0 %v1302
        %v1435 = vpop.f32.mrb[0].mxu0
        %v1436 = vadd.f32 %v1243, %v1435
        %v1437 = vpop.f32.mrb[0].mxu0
        %v1438 = vpop.f32.mrb[0].mxu0
        %v1439 = vadd.f32 %v1246, %v1438
        %v1440 = vpop.f32.mrb[0].mxu0
        %1441 = vmatprep.mubr.bf16.mxu0 0
        %1442 = vmatmul.mubr.bf16.gmra.mrb[0].mxu0 %v1303
        %v1443 = vpop.f32.mrb[0].mxu0
        %v1444 = vadd.f32 %v1251, %v1443
        %v1445 = vpop.f32.mrb[0].mxu0
        %v1446 = vpop.f32.mrb[0].mxu0
        %v1447 = vadd.f32 %v1254, %v1446
        %v1448 = vpop.f32.mrb[0].mxu0
        %1449 = vmatprep.mubr.bf16.mxu0 0
        %1450 = vmatmul.mubr.bf16.gmra.mrb[0].mxu0 %v1304
        %v1451 = vpop.f32.mrb[0].mxu0
        %v1452 = vadd.f32 %v1259, %v1451
        %v1453 = vpop.f32.mrb[0].mxu0
        %v1454 = vpop.f32.mrb[0].mxu0
        %v1455 = vadd.f32 %v1262, %v1454
        %v1456 = vpop.f32.mrb[0].mxu0
        %1457 = vdwg.mxu0
        %v1458 = vld [vmem:[#allocation2] sm:$0xe]
        %v1459 = vld [vmem:[#allocation2 + $0xc] sm:$0xe]
        %v1460 = vld [vmem:[#allocation2 + $0x18] sm:$0xe]
        %v1461 = vld [vmem:[#allocation2 + $0x24] sm:$0xe]
        %v1462 = vld [vmem:[#allocation2 + $0x30] sm:$0xe]
        %v1463 = vld [vmem:[#allocation2 + $0x3c] sm:$0xe]
        %v1464 = vld [vmem:[#allocation2 + $0x48] sm:$0xe]
        %v1465 = vld [vmem:[#allocation2 + $0x54] sm:$0xe]
        %vm1482 = vcmask 1042432
        %vm1483 = vcmask 1046532
        %vm1484 = vmor %vm1482, %vm1483
        %v1485 = vrot.slane %v1458, 5
        %v1486 = vrot.slane %v1485, 4
        %v1487 = vrot.slane %v837, 5
        %v1488 = vsel %vm1484, %v1486, %v1487
        %v1489 = vrot.slane %v1487, 4
        %v1490 = vrot.slane %v868, 5
        %v1491 = vsel %vm1484, %v1489, %v1490
        %v1492 = vrot.slane %v1459, 5
        %v1493 = vrot.slane %v1492, 4
        %v1494 = vrot.slane %v839, 5
        %v1495 = vsel %vm1484, %v1493, %v1494
        %v1496 = vrot.slane %v1494, 4
        %v1497 = vrot.slane %v869, 5
        %v1498 = vsel %vm1484, %v1496, %v1497
        %v1499 = vrot.slane %v1460, 5
        %v1500 = vrot.slane %v1499, 4
        %v1501 = vrot.slane %v841, 5
        %v1502 = vsel %vm1484, %v1500, %v1501
        %v1503 = vrot.slane %v1501, 4
        %v1504 = vrot.slane %v870, 5
        %v1505 = vsel %vm1484, %v1503, %v1504
        %v1506 = vrot.slane %v1461, 5
        %v1507 = vrot.slane %v1506, 4
        %v1508 = vrot.slane %v843, 5
        %v1509 = vsel %vm1484, %v1507, %v1508
        %v1510 = vrot.slane %v1508, 4
        %v1511 = vrot.slane %v871, 5
        %v1512 = vsel %vm1484, %v1510, %v1511
        %v1513 = vrot.slane %v1462, 5
        %v1514 = vrot.slane %v1513, 4
        %v1515 = vrot.slane %v845, 5
        %v1516 = vsel %vm1484, %v1514, %v1515
        %v1517 = vrot.slane %v1515, 4
        %v1518 = vrot.slane %v872, 5
        %v1519 = vsel %vm1484, %v1517, %v1518
        %v1520 = vrot.slane %v1463, 5
        %v1521 = vrot.slane %v1520, 4
        %v1522 = vrot.slane %v847, 5
        %v1523 = vsel %vm1484, %v1521, %v1522
        %v1524 = vrot.slane %v1522, 4
        %v1525 = vrot.slane %v873, 5
        %v1526 = vsel %vm1484, %v1524, %v1525
        %v1527 = vrot.slane %v1464, 5
        %v1528 = vrot.slane %v1527, 4
        %v1529 = vrot.slane %v849, 5
        %v1530 = vsel %vm1484, %v1528, %v1529
        %v1531 = vrot.slane %v1529, 4
        %v1532 = vrot.slane %v874, 5
        %v1533 = vsel %vm1484, %v1531, %v1532
        %v1534 = vrot.slane %v1465, 5
        %v1535 = vrot.slane %v1534, 4
        %v1536 = vrot.slane %v851, 5
        %v1537 = vsel %vm1484, %v1535, %v1536
        %v1538 = vrot.slane %v1536, 4
        %v1539 = vrot.slane %v875, 5
        %v1540 = vsel %vm1484, %v1538, %v1539
        %s1541 = scalar_lea.vmem [#allocation6], 128
        %v1542 = vld [vmem:[%s1541] sm:$0xf]
        %v1543 = vld [vmem:[%s1541 + $0x4] sm:$0xf]
        %v1544 = vld [vmem:[%s1541 + $0x8] sm:$0xf]
        %v1545 = vld [vmem:[%s1541 + $0xc] sm:$0xf]
        %v1546 = vld [vmem:[%s1541 + $0x10] sm:$0xf]
        %v1547 = vld [vmem:[%s1541 + $0x14] sm:$0xf]
        %v1548 = vld [vmem:[%s1541 + $0x18] sm:$0xf]
        %v1549 = vld [vmem:[%s1541 + $0x1c] sm:$0xf]
        %v1550 = vld [vmem:[%s1541 + $0x20] sm:$0xf]
        %v1551 = vld [vmem:[%s1541 + $0x24] sm:$0xf]
        %v1552 = vld [vmem:[%s1541 + $0x28] sm:$0xf]
        %v1553 = vld [vmem:[%s1541 + $0x2c] sm:$0xf]
        %v1554 = vld [vmem:[%s1541 + $0x30] sm:$0xf]
        %v1555 = vld [vmem:[%s1541 + $0x34] sm:$0xf]
        %v1556 = vld [vmem:[%s1541 + $0x38] sm:$0xf]
        %v1557 = vld [vmem:[%s1541 + $0x3c] sm:$0xf]
        %v1558 = vunpack.c.l.b16 %v1488
        %v1559 = vunpack.c.l.b16 %v1491
        %v1560 = vunpack.c.l.b16 %v1495
        %v1561 = vunpack.c.l.b16 %v1498
        %v1562 = vunpack.c.l.b16 %v1502
        %v1563 = vunpack.c.l.b16 %v1505
        %v1564 = vunpack.c.l.b16 %v1509
        %v1565 = vunpack.c.l.b16 %v1512
        %v1566 = vunpack.c.l.b16 %v1516
        %v1567 = vunpack.c.l.b16 %v1519
        %v1568 = vunpack.c.l.b16 %v1523
        %v1569 = vunpack.c.l.b16 %v1526
        %v1570 = vunpack.c.l.b16 %v1530
        %v1571 = vunpack.c.l.b16 %v1533
        %v1572 = vunpack.c.l.b16 %v1537
        %v1573 = vunpack.c.l.b16 %v1540
        %v1574 = vpack.c.b16 %v1559, %v1558
        %v1575 = vpack.c.b16 %v1561, %v1560
        %v1576 = vpack.c.b16 %v1563, %v1562
        %v1577 = vpack.c.b16 %v1565, %v1564
        %v1578 = vpack.c.b16 %v1567, %v1566
        %v1579 = vpack.c.b16 %v1569, %v1568
        %v1580 = vpack.c.b16 %v1571, %v1570
        %v1581 = vpack.c.b16 %v1573, %v1572
        %v1606 = vunpack.c.l.b16 %v1542
        %v1607 = vunpack.c.l.b16 %v1543
        %v1608 = vunpack.c.l.b16 %v1544
        %v1609 = vunpack.c.l.b16 %v1545
        %v1610 = vunpack.c.l.b16 %v1546
        %v1611 = vunpack.c.l.b16 %v1547
        %v1612 = vunpack.c.l.b16 %v1548
        %v1613 = vunpack.c.l.b16 %v1549
        %v1614 = vunpack.c.l.b16 %v1550
        %v1615 = vunpack.c.l.b16 %v1551
        %v1616 = vunpack.c.l.b16 %v1552
        %v1617 = vunpack.c.l.b16 %v1553
        %v1618 = vunpack.c.l.b16 %v1554
        %v1619 = vunpack.c.l.b16 %v1555
        %v1620 = vunpack.c.l.b16 %v1556
        %v1621 = vunpack.c.l.b16 %v1557
        %v1622 = vpack.c.b16 %v1607, %v1606
        %v1623 = vpack.c.b16 %v1609, %v1608
        %v1624 = vpack.c.b16 %v1611, %v1610
        %v1625 = vpack.c.b16 %v1613, %v1612
        %v1626 = vpack.c.b16 %v1615, %v1614
        %v1627 = vpack.c.b16 %v1617, %v1616
        %v1628 = vpack.c.b16 %v1619, %v1618
        %v1629 = vpack.c.b16 %v1621, %v1620
        %1638 = vmatprep.subr.bf16.mxu0 0
        %1639 = vmatpush1.bf16.msra.mxu0 %v1622
        %1640 = vmatprep.subr.bf16.mxu0 0
        %1641 = vmatpush1.bf16.msra.mxu0 %v1623
        %1642 = vmatprep.subr.bf16.mxu0 0
        %1643 = vmatpush1.bf16.msra.mxu0 %v1624
        %1644 = vmatprep.subr.bf16.mxu0 0
        %1645 = vmatpush1.bf16.msra.mxu0 %v1625
        %1646 = vmatprep.subr.bf16.mxu0 0
        %1647 = vmatpush1.bf16.msra.mxu0 %v1626
        %1648 = vmatprep.subr.bf16.mxu0 0
        %1649 = vmatpush1.bf16.msra.mxu0 %v1627
        %1650 = vmatprep.subr.bf16.mxu0 0
        %1651 = vmatpush1.bf16.msra.mxu0 %v1628
        %1652 = vmatprep.subr.bf16.mxu0 0
        %1653 = vmatpush1.bf16.msra.mxu0 %v1629
        %1654 = vmatprep.subr.bf16.mxu0 0
        %1655 = vmatpush1.bf16.msra.mxu0 0
        %1656 = vmatprep.subr.bf16.mxu0 0
        %1657 = vmatpush1.bf16.msra.mxu0 0
        %1658 = vmatprep.subr.bf16.mxu0 0
        %1659 = vmatpush1.bf16.msra.mxu0 0
        %1660 = vmatprep.subr.bf16.mxu0 0
        %1661 = vmatpush1.bf16.msra.mxu0 0
        %1662 = vmatprep.subr.bf16.mxu0 0
        %1663 = vmatpush1.bf16.msra.mxu0 0
        %1664 = vmatprep.subr.bf16.mxu0 0
        %1665 = vmatpush1.bf16.msra.mxu0 0
        %1666 = vmatprep.subr.bf16.mxu0 0
        %1667 = vmatpush1.bf16.msra.mxu0 0
        %1668 = vmatprep.subr.bf16.mxu0 0
        %1669 = vmatpush1.bf16.msra.mxu0 0
        %1670 = vmatprep.mubr.bf16.mxu0 0
        %1671 = vmatmul.mubr.bf16.gmra.mrb[0].mxu0 %v1574
        %v1672 = vpop.f32.mrb[0].mxu0
        %v1673 = vadd.f32 0.0, %v1672
        %v1674 = vpop.f32.mrb[0].mxu0
        %v1675 = vpop.f32.mrb[0].mxu0
        %v1676 = vadd.f32 0.0, %v1675
        %v1677 = vpop.f32.mrb[0].mxu0
        %1678 = vmatprep.mubr.bf16.mxu0 0
        %1679 = vmatmul.mubr.bf16.gmra.mrb[0].mxu0 %v1575
        %v1680 = vpop.f32.mrb[0].mxu0
        %v1681 = vadd.f32 0.0, %v1680
        %v1682 = vpop.f32.mrb[0].mxu0
        %v1683 = vpop.f32.mrb[0].mxu0
        %v1684 = vadd.f32 0.0, %v1683
        %v1685 = vpop.f32.mrb[0].mxu0
        %1686 = vmatprep.mubr.bf16.mxu0 0
        %1687 = vmatmul.mubr.bf16.gmra.mrb[0].mxu0 %v1576
        %v1688 = vpop.f32.mrb[0].mxu0
        %v1689 = vadd.f32 0.0, %v1688
        %v1690 = vpop.f32.mrb[0].mxu0
        %v1691 = vpop.f32.mrb[0].mxu0
        %v1692 = vadd.f32 0.0, %v1691
        %v1693 = vpop.f32.mrb[0].mxu0
        %1694 = vmatprep.mubr.bf16.mxu0 0
        %1695 = vmatmul.mubr.bf16.gmra.mrb[0].mxu0 %v1577
        %v1696 = vpop.f32.mrb[0].mxu0
        %v1697 = vadd.f32 0.0, %v1696
        %v1698 = vpop.f32.mrb[0].mxu0
        %v1699 = vpop.f32.mrb[0].mxu0
        %v1700 = vadd.f32 0.0, %v1699
        %v1701 = vpop.f32.mrb[0].mxu0
        %1702 = vmatprep.mubr.bf16.mxu0 0
        %1703 = vmatmul.mubr.bf16.gmra.mrb[0].mxu0 %v1578
        %v1704 = vpop.f32.mrb[0].mxu0
        %v1705 = vadd.f32 0.0, %v1704
        %v1706 = vpop.f32.mrb[0].mxu0
        %v1707 = vpop.f32.mrb[0].mxu0
        %v1708 = vadd.f32 0.0, %v1707
        %v1709 = vpop.f32.mrb[0].mxu0
        %1710 = vmatprep.mubr.bf16.mxu0 0
        %1711 = vmatmul.mubr.bf16.gmra.mrb[0].mxu0 %v1579
        %v1712 = vpop.f32.mrb[0].mxu0
        %v1713 = vadd.f32 0.0, %v1712
        %v1714 = vpop.f32.mrb[0].mxu0
        %v1715 = vpop.f32.mrb[0].mxu0
        %v1716 = vadd.f32 0.0, %v1715
        %v1717 = vpop.f32.mrb[0].mxu0
        %1718 = vmatprep.mubr.bf16.mxu0 0
        %1719 = vmatmul.mubr.bf16.gmra.mrb[0].mxu0 %v1580
        %v1720 = vpop.f32.mrb[0].mxu0
        %v1721 = vadd.f32 0.0, %v1720
        %v1722 = vpop.f32.mrb[0].mxu0
        %v1723 = vpop.f32.mrb[0].mxu0
        %v1724 = vadd.f32 0.0, %v1723
        %v1725 = vpop.f32.mrb[0].mxu0
        %1726 = vmatprep.mubr.bf16.mxu0 0
        %1727 = vmatmul.mubr.bf16.gmra.mrb[0].mxu0 %v1581
        %v1728 = vpop.f32.mrb[0].mxu0
        %v1729 = vadd.f32 0.0, %v1728
        %v1730 = vpop.f32.mrb[0].mxu0
        %v1731 = vpop.f32.mrb[0].mxu0
        %v1732 = vadd.f32 0.0, %v1731
        %v1733 = vpop.f32.mrb[0].mxu0
        %1734 = vdwg.mxu0
        %v1735 = vadd.f32 %v1396, %v1673
        %v1736 = vadd.f32 %v1399, %v1676
        %v1737 = vadd.f32 %v1404, %v1681
        %v1738 = vadd.f32 %v1407, %v1684
        %v1739 = vadd.f32 %v1412, %v1689
        %v1740 = vadd.f32 %v1415, %v1692
        %v1741 = vadd.f32 %v1420, %v1697
        %v1742 = vadd.f32 %v1423, %v1700
        %v1743 = vadd.f32 %v1428, %v1705
        %v1744 = vadd.f32 %v1431, %v1708
        %v1745 = vadd.f32 %v1436, %v1713
        %v1746 = vadd.f32 %v1439, %v1716
        %v1747 = vadd.f32 %v1444, %v1721
        %v1748 = vadd.f32 %v1447, %v1724
        %v1749 = vadd.f32 %v1452, %v1729
        %v1750 = vadd.f32 %v1455, %v1732
        %v1751 = vld [vmem:[%s661] sm:$0xf]
        %v1752 = vld [vmem:[%s661 + $0x4] sm:$0xf]
        %v1753 = vld [vmem:[%s661 + $0xc] sm:$0xf]
        %v1754 = vld [vmem:[%s661 + $0x10] sm:$0xf]
        %v1755 = vld [vmem:[%s661 + $0x18] sm:$0xf]
        %v1756 = vld [vmem:[%s661 + $0x1c] sm:$0xf]
        %v1757 = vld [vmem:[%s661 + $0x24] sm:$0xf]
        %v1758 = vld [vmem:[%s661 + $0x28] sm:$0xf]
        %v1759 = vld [vmem:[%s661 + $0x30] sm:$0xf]
        %v1760 = vld [vmem:[%s661 + $0x34] sm:$0xf]
        %v1761 = vld [vmem:[%s661 + $0x3c] sm:$0xf]
        %v1762 = vld [vmem:[%s661 + $0x40] sm:$0xf]
        %v1763 = vld [vmem:[%s661 + $0x48] sm:$0xf]
        %v1764 = vld [vmem:[%s661 + $0x4c] sm:$0xf]
        %v1765 = vld [vmem:[%s661 + $0x54] sm:$0xf]
        %v1766 = vld [vmem:[%s661 + $0x58] sm:$0xf]
        %s1767 = scalar_lea.vmem [#allocation6], 192
        %v1768 = vld [vmem:[%s1767] sm:$0xf]
        %v1769 = vld [vmem:[%s1767 + $0x4] sm:$0xf]
        %v1770 = vld [vmem:[%s1767 + $0x8] sm:$0xf]
        %v1771 = vld [vmem:[%s1767 + $0xc] sm:$0xf]
        %v1772 = vld [vmem:[%s1767 + $0x10] sm:$0xf]
        %v1773 = vld [vmem:[%s1767 + $0x14] sm:$0xf]
        %v1774 = vld [vmem:[%s1767 + $0x18] sm:$0xf]
        %v1775 = vld [vmem:[%s1767 + $0x1c] sm:$0xf]
        %v1776 = vld [vmem:[%s1767 + $0x20] sm:$0xf]
        %v1777 = vld [vmem:[%s1767 + $0x24] sm:$0xf]
        %v1778 = vld [vmem:[%s1767 + $0x28] sm:$0xf]
        %v1779 = vld [vmem:[%s1767 + $0x2c] sm:$0xf]
        %v1780 = vld [vmem:[%s1767 + $0x30] sm:$0xf]
        %v1781 = vld [vmem:[%s1767 + $0x34] sm:$0xf]
        %v1782 = vld [vmem:[%s1767 + $0x38] sm:$0xf]
        %v1783 = vld [vmem:[%s1767 + $0x3c] sm:$0xf]
        %v1800 = vunpack.c.l.b16 %v1751
        %v1801 = vunpack.c.l.b16 %v1752
        %v1802 = vunpack.c.l.b16 %v1753
        %v1803 = vunpack.c.l.b16 %v1754
        %v1804 = vunpack.c.l.b16 %v1755
        %v1805 = vunpack.c.l.b16 %v1756
        %v1806 = vunpack.c.l.b16 %v1757
        %v1807 = vunpack.c.l.b16 %v1758
        %v1808 = vunpack.c.l.b16 %v1759
        %v1809 = vunpack.c.l.b16 %v1760
        %v1810 = vunpack.c.l.b16 %v1761
        %v1811 = vunpack.c.l.b16 %v1762
        %v1812 = vunpack.c.l.b16 %v1763
        %v1813 = vunpack.c.l.b16 %v1764
        %v1814 = vunpack.c.l.b16 %v1765
        %v1815 = vunpack.c.l.b16 %v1766
        %v1816 = vpack.c.b16 %v1801, %v1800
        %v1817 = vpack.c.b16 %v1803, %v1802
        %v1818 = vpack.c.b16 %v1805, %v1804
        %v1819 = vpack.c.b16 %v1807, %v1806
        %v1820 = vpack.c.b16 %v1809, %v1808
        %v1821 = vpack.c.b16 %v1811, %v1810
        %v1822 = vpack.c.b16 %v1813, %v1812
        %v1823 = vpack.c.b16 %v1815, %v1814
        %v1848 = vunpack.c.l.b16 %v1768
        %v1849 = vunpack.c.l.b16 %v1769
        %v1850 = vunpack.c.l.b16 %v1770
        %v1851 = vunpack.c.l.b16 %v1771
        %v1852 = vunpack.c.l.b16 %v1772
        %v1853 = vunpack.c.l.b16 %v1773
        %v1854 = vunpack.c.l.b16 %v1774
        %v1855 = vunpack.c.l.b16 %v1775
        %v1856 = vunpack.c.l.b16 %v1776
        %v1857 = vunpack.c.l.b16 %v1777
        %v1858 = vunpack.c.l.b16 %v1778
        %v1859 = vunpack.c.l.b16 %v1779
        %v1860 = vunpack.c.l.b16 %v1780
        %v1861 = vunpack.c.l.b16 %v1781
        %v1862 = vunpack.c.l.b16 %v1782
        %v1863 = vunpack.c.l.b16 %v1783
        %v1864 = vpack.c.b16 %v1849, %v1848
        %v1865 = vpack.c.b16 %v1851, %v1850
        %v1866 = vpack.c.b16 %v1853, %v1852
        %v1867 = vpack.c.b16 %v1855, %v1854
        %v1868 = vpack.c.b16 %v1857, %v1856
        %v1869 = vpack.c.b16 %v1859, %v1858
        %v1870 = vpack.c.b16 %v1861, %v1860
        %v1871 = vpack.c.b16 %v1863, %v1862
        %1880 = vmatprep.subr.bf16.mxu0 0
        %1881 = vmatpush1.bf16.msra.mxu0 %v1864
        %1882 = vmatprep.subr.bf16.mxu0 0
        %1883 = vmatpush1.bf16.msra.mxu0 %v1865
        %1884 = vmatprep.subr.bf16.mxu0 0
        %1885 = vmatpush1.bf16.msra.mxu0 %v1866
        %1886 = vmatprep.subr.bf16.mxu0 0
        %1887 = vmatpush1.bf16.msra.mxu0 %v1867
        %1888 = vmatprep.subr.bf16.mxu0 0
        %1889 = vmatpush1.bf16.msra.mxu0 %v1868
        %1890 = vmatprep.subr.bf16.mxu0 0
        %1891 = vmatpush1.bf16.msra.mxu0 %v1869
        %1892 = vmatprep.subr.bf16.mxu0 0
        %1893 = vmatpush1.bf16.msra.mxu0 %v1870
        %1894 = vmatprep.subr.bf16.mxu0 0
        %1895 = vmatpush1.bf16.msra.mxu0 %v1871
        %1896 = vmatprep.subr.bf16.mxu0 0
        %1897 = vmatpush1.bf16.msra.mxu0 0
        %1898 = vmatprep.subr.bf16.mxu0 0
        %1899 = vmatpush1.bf16.msra.mxu0 0
        %1900 = vmatprep.subr.bf16.mxu0 0
        %1901 = vmatpush1.bf16.msra.mxu0 0
        %1902 = vmatprep.subr.bf16.mxu0 0
        %1903 = vmatpush1.bf16.msra.mxu0 0
        %1904 = vmatprep.subr.bf16.mxu0 0
        %1905 = vmatpush1.bf16.msra.mxu0 0
        %1906 = vmatprep.subr.bf16.mxu0 0
        %1907 = vmatpush1.bf16.msra.mxu0 0
        %1908 = vmatprep.subr.bf16.mxu0 0
        %1909 = vmatpush1.bf16.msra.mxu0 0
        %1910 = vmatprep.subr.bf16.mxu0 0
        %1911 = vmatpush1.bf16.msra.mxu0 0
        %1912 = vmatprep.mubr.bf16.mxu0 0
        %1913 = vmatmul.mubr.bf16.gmra.mrb[0].mxu0 %v1816
        %v1914 = vpop.f32.mrb[0].mxu0
        %v1915 = vadd.f32 0.0, %v1914
        %v1916 = vpop.f32.mrb[0].mxu0
        %v1917 = vpop.f32.mrb[0].mxu0
        %v1918 = vadd.f32 0.0, %v1917
        %v1919 = vpop.f32.mrb[0].mxu0
        %1920 = vmatprep.mubr.bf16.mxu0 0
        %1921 = vmatmul.mubr.bf16.gmra.mrb[0].mxu0 %v1817
        %v1922 = vpop.f32.mrb[0].mxu0
        %v1923 = vadd.f32 0.0, %v1922
        %v1924 = vpop.f32.mrb[0].mxu0
        %v1925 = vpop.f32.mrb[0].mxu0
        %v1926 = vadd.f32 0.0, %v1925
        %v1927 = vpop.f32.mrb[0].mxu0
        %1928 = vmatprep.mubr.bf16.mxu0 0
        %1929 = vmatmul.mubr.bf16.gmra.mrb[0].mxu0 %v1818
        %v1930 = vpop.f32.mrb[0].mxu0
        %v1931 = vadd.f32 0.0, %v1930
        %v1932 = vpop.f32.mrb[0].mxu0
        %v1933 = vpop.f32.mrb[0].mxu0
        %v1934 = vadd.f32 0.0, %v1933
        %v1935 = vpop.f32.mrb[0].mxu0
        %1936 = vmatprep.mubr.bf16.mxu0 0
        %1937 = vmatmul.mubr.bf16.gmra.mrb[0].mxu0 %v1819
        %v1938 = vpop.f32.mrb[0].mxu0
        %v1939 = vadd.f32 0.0, %v1938
        %v1940 = vpop.f32.mrb[0].mxu0
        %v1941 = vpop.f32.mrb[0].mxu0
        %v1942 = vadd.f32 0.0, %v1941
        %v1943 = vpop.f32.mrb[0].mxu0
        %1944 = vmatprep.mubr.bf16.mxu0 0
        %1945 = vmatmul.mubr.bf16.gmra.mrb[0].mxu0 %v1820
        %v1946 = vpop.f32.mrb[0].mxu0
        %v1947 = vadd.f32 0.0, %v1946
        %v1948 = vpop.f32.mrb[0].mxu0
        %v1949 = vpop.f32.mrb[0].mxu0
        %v1950 = vadd.f32 0.0, %v1949
        %v1951 = vpop.f32.mrb[0].mxu0
        %1952 = vmatprep.mubr.bf16.mxu0 0
        %1953 = vmatmul.mubr.bf16.gmra.mrb[0].mxu0 %v1821
        %v1954 = vpop.f32.mrb[0].mxu0
        %v1955 = vadd.f32 0.0, %v1954
        %v1956 = vpop.f32.mrb[0].mxu0
        %v1957 = vpop.f32.mrb[0].mxu0
        %v1958 = vadd.f32 0.0, %v1957
        %v1959 = vpop.f32.mrb[0].mxu0
        %1960 = vmatprep.mubr.bf16.mxu0 0
        %1961 = vmatmul.mubr.bf16.gmra.mrb[0].mxu0 %v1822
        %v1962 = vpop.f32.mrb[0].mxu0
        %v1963 = vadd.f32 0.0, %v1962
        %v1964 = vpop.f32.mrb[0].mxu0
        %v1965 = vpop.f32.mrb[0].mxu0
        %v1966 = vadd.f32 0.0, %v1965
        %v1967 = vpop.f32.mrb[0].mxu0
        %1968 = vmatprep.mubr.bf16.mxu0 0
        %1969 = vmatmul.mubr.bf16.gmra.mrb[0].mxu0 %v1823
        %v1970 = vpop.f32.mrb[0].mxu0
        %v1971 = vadd.f32 0.0, %v1970
        %v1972 = vpop.f32.mrb[0].mxu0
        %v1973 = vpop.f32.mrb[0].mxu0
        %v1974 = vadd.f32 0.0, %v1973
        %v1975 = vpop.f32.mrb[0].mxu0
        %1976 = vdwg.mxu0
        %v1977 = vadd.f32 %v1735, %v1915
        %v1978 = vadd.f32 %v1736, %v1918
        %v1979 = vadd.f32 %v1737, %v1923
        %v1980 = vadd.f32 %v1738, %v1926
        %v1981 = vadd.f32 %v1739, %v1931
        %v1982 = vadd.f32 %v1740, %v1934
        %v1983 = vadd.f32 %v1741, %v1939
        %v1984 = vadd.f32 %v1742, %v1942
        %v1985 = vadd.f32 %v1743, %v1947
        %v1986 = vadd.f32 %v1744, %v1950
        %v1987 = vadd.f32 %v1745, %v1955
        %v1988 = vadd.f32 %v1746, %v1958
        %v1989 = vadd.f32 %v1747, %v1963
        %v1990 = vadd.f32 %v1748, %v1966
        %v1991 = vadd.f32 %v1749, %v1971
        %v1992 = vadd.f32 %v1750, %v1974
        %v1993 = vld [vmem:[%s661] sm:$0xf]
        %v1994 = vld [vmem:[%s661 + $0x4] sm:$0xf]
        %v1995 = vld [vmem:[%s661 + $0x8] sm:$0x1]
        %v1996 = vld [vmem:[%s661 + $0xc] sm:$0xf]
        %v1997 = vld [vmem:[%s661 + $0x10] sm:$0xf]
        %v1998 = vld [vmem:[%s661 + $0x14] sm:$0x1]
        %v1999 = vld [vmem:[%s661 + $0x18] sm:$0xf]
        %v2000 = vld [vmem:[%s661 + $0x1c] sm:$0xf]
        %v2001 = vld [vmem:[%s661 + $0x20] sm:$0x1]
        %v2002 = vld [vmem:[%s661 + $0x24] sm:$0xf]
        %v2003 = vld [vmem:[%s661 + $0x28] sm:$0xf]
        %v2004 = vld [vmem:[%s661 + $0x2c] sm:$0x1]
        %v2005 = vld [vmem:[%s661 + $0x30] sm:$0xf]
        %v2006 = vld [vmem:[%s661 + $0x34] sm:$0xf]
        %v2007 = vld [vmem:[%s661 + $0x38] sm:$0x1]
        %v2008 = vld [vmem:[%s661 + $0x3c] sm:$0xf]
        %v2009 = vld [vmem:[%s661 + $0x40] sm:$0xf]
        %v2010 = vld [vmem:[%s661 + $0x44] sm:$0x1]
        %v2011 = vld [vmem:[%s661 + $0x48] sm:$0xf]
        %v2012 = vld [vmem:[%s661 + $0x4c] sm:$0xf]
        %v2013 = vld [vmem:[%s661 + $0x50] sm:$0x1]
        %v2014 = vld [vmem:[%s661 + $0x54] sm:$0xf]
        %v2015 = vld [vmem:[%s661 + $0x58] sm:$0xf]
        %v2016 = vld [vmem:[%s661 + $0x5c] sm:$0x1]
        %v2018 = vshrl.u32 %v1993, 16
        %v2020 = vrot.slane %v2018, 4
        %v2021 = vshll.u32 %v1993, 16
        %v2023 = vrot.slane %v2021, 5
        %v2024 = vor.u32 %v2020, %v2023
        %v2025 = vrot.slane %v2024, 4
        %v2027 = vshll.u32 %v1994, 16
        %v2029 = vrot.slane %v2027, 5
        %v2030 = vsel %vm878, %v2025, %v2029
        %v2031 = vshrl.u32 %v1994, 16
        %v2033 = vrot.slane %v2031, 4
        %v2034 = vor.u32 %v2033, %v2029
        %v2035 = vrot.slane %v2034, 4
        %v2037 = vshll.u32 %v1995, 16
        %v2039 = vrot.slane %v2037, 5
        %v2040 = vsel %vm878, %v2035, %v2039
        %v2042 = vshrl.u32 %v1996, 16
        %v2044 = vrot.slane %v2042, 4
        %v2045 = vshll.u32 %v1996, 16
        %v2047 = vrot.slane %v2045, 5
        %v2048 = vor.u32 %v2044, %v2047
        %v2049 = vrot.slane %v2048, 4
        %v2051 = vshll.u32 %v1997, 16
        %v2053 = vrot.slane %v2051, 5
        %v2054 = vsel %vm878, %v2049, %v2053
        %v2055 = vshrl.u32 %v1997, 16
        %v2057 = vrot.slane %v2055, 4
        %v2058 = vor.u32 %v2057, %v2053
        %v2059 = vrot.slane %v2058, 4
        %v2061 = vshll.u32 %v1998, 16
        %v2063 = vrot.slane %v2061, 5
        %v2064 = vsel %vm878, %v2059, %v2063
        %v2066 = vshrl.u32 %v1999, 16
        %v2068 = vrot.slane %v2066, 4
        %v2069 = vshll.u32 %v1999, 16
        %v2071 = vrot.slane %v2069, 5
        %v2072 = vor.u32 %v2068, %v2071
        %v2073 = vrot.slane %v2072, 4
        %v2075 = vshll.u32 %v2000, 16
        %v2077 = vrot.slane %v2075, 5
        %v2078 = vsel %vm878, %v2073, %v2077
        %v2079 = vshrl.u32 %v2000, 16
        %v2081 = vrot.slane %v2079, 4
        %v2082 = vor.u32 %v2081, %v2077
        %v2083 = vrot.slane %v2082, 4
        %v2085 = vshll.u32 %v2001, 16
        %v2087 = vrot.slane %v2085, 5
        %v2088 = vsel %vm878, %v2083, %v2087
        %v2090 = vshrl.u32 %v2002, 16
        %v2092 = vrot.slane %v2090, 4
        %v2093 = vshll.u32 %v2002, 16
        %v2095 = vrot.slane %v2093, 5
        %v2096 = vor.u32 %v2092, %v2095
        %v2097 = vrot.slane %v2096, 4
        %v2099 = vshll.u32 %v2003, 16
        %v2101 = vrot.slane %v2099, 5
        %v2102 = vsel %vm878, %v2097, %v2101
        %v2103 = vshrl.u32 %v2003, 16
        %v2105 = vrot.slane %v2103, 4
        %v2106 = vor.u32 %v2105, %v2101
        %v2107 = vrot.slane %v2106, 4
        %v2109 = vshll.u32 %v2004, 16
        %v2111 = vrot.slane %v2109, 5
        %v2112 = vsel %vm878, %v2107, %v2111
        %v2114 = vshrl.u32 %v2005, 16
        %v2116 = vrot.slane %v2114, 4
        %v2117 = vshll.u32 %v2005, 16
        %v2119 = vrot.slane %v2117, 5
        %v2120 = vor.u32 %v2116, %v2119
        %v2121 = vrot.slane %v2120, 4
        %v2123 = vshll.u32 %v2006, 16
        %v2125 = vrot.slane %v2123, 5
        %v2126 = vsel %vm878, %v2121, %v2125
        %v2127 = vshrl.u32 %v2006, 16
        %v2129 = vrot.slane %v2127, 4
        %v2130 = vor.u32 %v2129, %v2125
        %v2131 = vrot.slane %v2130, 4
        %v2133 = vshll.u32 %v2007, 16
        %v2135 = vrot.slane %v2133, 5
        %v2136 = vsel %vm878, %v2131, %v2135
        %v2138 = vshrl.u32 %v2008, 16
        %v2140 = vrot.slane %v2138, 4
        %v2141 = vshll.u32 %v2008, 16
        %v2143 = vrot.slane %v2141, 5
        %v2144 = vor.u32 %v2140, %v2143
        %v2145 = vrot.slane %v2144, 4
        %v2147 = vshll.u32 %v2009, 16
        %v2149 = vrot.slane %v2147, 5
        %v2150 = vsel %vm878, %v2145, %v2149
        %v2151 = vshrl.u32 %v2009, 16
        %v2153 = vrot.slane %v2151, 4
        %v2154 = vor.u32 %v2153, %v2149
        %v2155 = vrot.slane %v2154, 4
        %v2157 = vshll.u32 %v2010, 16
        %v2159 = vrot.slane %v2157, 5
        %v2160 = vsel %vm878, %v2155, %v2159
        %v2162 = vshrl.u32 %v2011, 16
        %v2164 = vrot.slane %v2162, 4
        %v2165 = vshll.u32 %v2011, 16
        %v2167 = vrot.slane %v2165, 5
        %v2168 = vor.u32 %v2164, %v2167
        %v2169 = vrot.slane %v2168, 4
        %v2171 = vshll.u32 %v2012, 16
        %v2173 = vrot.slane %v2171, 5
        %v2174 = vsel %vm878, %v2169, %v2173
        %v2175 = vshrl.u32 %v2012, 16
        %v2177 = vrot.slane %v2175, 4
        %v2178 = vor.u32 %v2177, %v2173
        %v2179 = vrot.slane %v2178, 4
        %v2181 = vshll.u32 %v2013, 16
        %v2183 = vrot.slane %v2181, 5
        %v2184 = vsel %vm878, %v2179, %v2183
        %v2186 = vshrl.u32 %v2014, 16
        %v2188 = vrot.slane %v2186, 4
        %v2189 = vshll.u32 %v2014, 16
        %v2191 = vrot.slane %v2189, 5
        %v2192 = vor.u32 %v2188, %v2191
        %v2193 = vrot.slane %v2192, 4
        %v2195 = vshll.u32 %v2015, 16
        %v2197 = vrot.slane %v2195, 5
        %v2198 = vsel %vm878, %v2193, %v2197
        %v2199 = vshrl.u32 %v2015, 16
        %v2201 = vrot.slane %v2199, 4
        %v2202 = vor.u32 %v2201, %v2197
        %v2203 = vrot.slane %v2202, 4
        %v2205 = vshll.u32 %v2016, 16
        %v2207 = vrot.slane %v2205, 5
        %v2208 = vsel %vm878, %v2203, %v2207
        %s2209 = scalar_lea.vmem [#allocation6], 256
        %v2210 = vld [vmem:[%s2209] sm:$0xf]
        %v2211 = vld [vmem:[%s2209 + $0x4] sm:$0xf]
        %v2212 = vld [vmem:[%s2209 + $0x8] sm:$0xf]
        %v2213 = vld [vmem:[%s2209 + $0xc] sm:$0xf]
        %v2214 = vld [vmem:[%s2209 + $0x10] sm:$0xf]
        %v2215 = vld [vmem:[%s2209 + $0x14] sm:$0xf]
        %v2216 = vld [vmem:[%s2209 + $0x18] sm:$0xf]
        %v2217 = vld [vmem:[%s2209 + $0x1c] sm:$0xf]
        %v2218 = vld [vmem:[%s2209 + $0x20] sm:$0xf]
        %v2219 = vld [vmem:[%s2209 + $0x24] sm:$0xf]
        %v2220 = vld [vmem:[%s2209 + $0x28] sm:$0xf]
        %v2221 = vld [vmem:[%s2209 + $0x2c] sm:$0xf]
        %v2222 = vld [vmem:[%s2209 + $0x30] sm:$0xf]
        %v2223 = vld [vmem:[%s2209 + $0x34] sm:$0xf]
        %v2224 = vld [vmem:[%s2209 + $0x38] sm:$0xf]
        %v2225 = vld [vmem:[%s2209 + $0x3c] sm:$0xf]
        %v2226 = vunpack.c.l.b16 %v2030
        %v2227 = vunpack.c.l.b16 %v2040
        %v2228 = vunpack.c.l.b16 %v2054
        %v2229 = vunpack.c.l.b16 %v2064
        %v2230 = vunpack.c.l.b16 %v2078
        %v2231 = vunpack.c.l.b16 %v2088
        %v2232 = vunpack.c.l.b16 %v2102
        %v2233 = vunpack.c.l.b16 %v2112
        %v2234 = vunpack.c.l.b16 %v2126
        %v2235 = vunpack.c.l.b16 %v2136
        %v2236 = vunpack.c.l.b16 %v2150
        %v2237 = vunpack.c.l.b16 %v2160
        %v2238 = vunpack.c.l.b16 %v2174
        %v2239 = vunpack.c.l.b16 %v2184
        %v2240 = vunpack.c.l.b16 %v2198
        %v2241 = vunpack.c.l.b16 %v2208
        %v2242 = vpack.c.b16 %v2227, %v2226
        %v2243 = vpack.c.b16 %v2229, %v2228
        %v2244 = vpack.c.b16 %v2231, %v2230
        %v2245 = vpack.c.b16 %v2233, %v2232
        %v2246 = vpack.c.b16 %v2235, %v2234
        %v2247 = vpack.c.b16 %v2237, %v2236
        %v2248 = vpack.c.b16 %v2239, %v2238
        %v2249 = vpack.c.b16 %v2241, %v2240
        %v2274 = vunpack.c.l.b16 %v2210
        %v2275 = vunpack.c.l.b16 %v2211
        %v2276 = vunpack.c.l.b16 %v2212
        %v2277 = vunpack.c.l.b16 %v2213
        %v2278 = vunpack.c.l.b16 %v2214
        %v2279 = vunpack.c.l.b16 %v2215
        %v2280 = vunpack.c.l.b16 %v2216
        %v2281 = vunpack.c.l.b16 %v2217
        %v2282 = vunpack.c.l.b16 %v2218
        %v2283 = vunpack.c.l.b16 %v2219
        %v2284 = vunpack.c.l.b16 %v2220
        %v2285 = vunpack.c.l.b16 %v2221
        %v2286 = vunpack.c.l.b16 %v2222
        %v2287 = vunpack.c.l.b16 %v2223
        %v2288 = vunpack.c.l.b16 %v2224
        %v2289 = vunpack.c.l.b16 %v2225
        %v2290 = vpack.c.b16 %v2275, %v2274
        %v2291 = vpack.c.b16 %v2277, %v2276
        %v2292 = vpack.c.b16 %v2279, %v2278
        %v2293 = vpack.c.b16 %v2281, %v2280
        %v2294 = vpack.c.b16 %v2283, %v2282
        %v2295 = vpack.c.b16 %v2285, %v2284
        %v2296 = vpack.c.b16 %v2287, %v2286
        %v2297 = vpack.c.b16 %v2289, %v2288
        %2306 = vmatprep.subr.bf16.mxu0 0
        %2307 = vmatpush1.bf16.msra.mxu0 %v2290
        %2308 = vmatprep.subr.bf16.mxu0 0
        %2309 = vmatpush1.bf16.msra.mxu0 %v2291
        %2310 = vmatprep.subr.bf16.mxu0 0
        %2311 = vmatpush1.bf16.msra.mxu0 %v2292
        %2312 = vmatprep.subr.bf16.mxu0 0
        %2313 = vmatpush1.bf16.msra.mxu0 %v2293
        %2314 = vmatprep.subr.bf16.mxu0 0
        %2315 = vmatpush1.bf16.msra.mxu0 %v2294
        %2316 = vmatprep.subr.bf16.mxu0 0
        %2317 = vmatpush1.bf16.msra.mxu0 %v2295
        %2318 = vmatprep.subr.bf16.mxu0 0
        %2319 = vmatpush1.bf16.msra.mxu0 %v2296
        %2320 = vmatprep.subr.bf16.mxu0 0
        %2321 = vmatpush1.bf16.msra.mxu0 %v2297
        %2322 = vmatprep.subr.bf16.mxu0 0
        %2323 = vmatpush1.bf16.msra.mxu0 0
        %2324 = vmatprep.subr.bf16.mxu0 0
        %2325 = vmatpush1.bf16.msra.mxu0 0
        %2326 = vmatprep.subr.bf16.mxu0 0
        %2327 = vmatpush1.bf16.msra.mxu0 0
        %2328 = vmatprep.subr.bf16.mxu0 0
        %2329 = vmatpush1.bf16.msra.mxu0 0
        %2330 = vmatprep.subr.bf16.mxu0 0
        %2331 = vmatpush1.bf16.msra.mxu0 0
        %2332 = vmatprep.subr.bf16.mxu0 0
        %2333 = vmatpush1.bf16.msra.mxu0 0
        %2334 = vmatprep.subr.bf16.mxu0 0
        %2335 = vmatpush1.bf16.msra.mxu0 0
        %2336 = vmatprep.subr.bf16.mxu0 0
        %2337 = vmatpush1.bf16.msra.mxu0 0
        %2338 = vmatprep.mubr.bf16.mxu0 0
        %2339 = vmatmul.mubr.bf16.gmra.mrb[0].mxu0 %v2242
        %v2340 = vpop.f32.mrb[0].mxu0
        %v2341 = vadd.f32 0.0, %v2340
        %v2342 = vpop.f32.mrb[0].mxu0
        %v2343 = vpop.f32.mrb[0].mxu0
        %v2344 = vadd.f32 0.0, %v2343
        %v2345 = vpop.f32.mrb[0].mxu0
        %2346 = vmatprep.mubr.bf16.mxu0 0
        %2347 = vmatmul.mubr.bf16.gmra.mrb[0].mxu0 %v2243
        %v2348 = vpop.f32.mrb[0].mxu0
        %v2349 = vadd.f32 0.0, %v2348
        %v2350 = vpop.f32.mrb[0].mxu0
        %v2351 = vpop.f32.mrb[0].mxu0
        %v2352 = vadd.f32 0.0, %v2351
        %v2353 = vpop.f32.mrb[0].mxu0
        %2354 = vmatprep.mubr.bf16.mxu0 0
        %2355 = vmatmul.mubr.bf16.gmra.mrb[0].mxu0 %v2244
        %v2356 = vpop.f32.mrb[0].mxu0
        %v2357 = vadd.f32 0.0, %v2356
        %v2358 = vpop.f32.mrb[0].mxu0
        %v2359 = vpop.f32.mrb[0].mxu0
        %v2360 = vadd.f32 0.0, %v2359
        %v2361 = vpop.f32.mrb[0].mxu0
        %2362 = vmatprep.mubr.bf16.mxu0 0
        %2363 = vmatmul.mubr.bf16.gmra.mrb[0].mxu0 %v2245
        %v2364 = vpop.f32.mrb[0].mxu0
        %v2365 = vadd.f32 0.0, %v2364
        %v2366 = vpop.f32.mrb[0].mxu0
        %v2367 = vpop.f32.mrb[0].mxu0
        %v2368 = vadd.f32 0.0, %v2367
        %v2369 = vpop.f32.mrb[0].mxu0
        %2370 = vmatprep.mubr.bf16.mxu0 0
        %2371 = vmatmul.mubr.bf16.gmra.mrb[0].mxu0 %v2246
        %v2372 = vpop.f32.mrb[0].mxu0
        %v2373 = vadd.f32 0.0, %v2372
        %v2374 = vpop.f32.mrb[0].mxu0
        %v2375 = vpop.f32.mrb[0].mxu0
        %v2376 = vadd.f32 0.0, %v2375
        %v2377 = vpop.f32.mrb[0].mxu0
        %2378 = vmatprep.mubr.bf16.mxu0 0
        %2379 = vmatmul.mubr.bf16.gmra.mrb[0].mxu0 %v2247
        %v2380 = vpop.f32.mrb[0].mxu0
        %v2381 = vadd.f32 0.0, %v2380
        %v2382 = vpop.f32.mrb[0].mxu0
        %v2383 = vpop.f32.mrb[0].mxu0
        %v2384 = vadd.f32 0.0, %v2383
        %v2385 = vpop.f32.mrb[0].mxu0
        %2386 = vmatprep.mubr.bf16.mxu0 0
        %2387 = vmatmul.mubr.bf16.gmra.mrb[0].mxu0 %v2248
        %v2388 = vpop.f32.mrb[0].mxu0
        %v2389 = vadd.f32 0.0, %v2388
        %v2390 = vpop.f32.mrb[0].mxu0
        %v2391 = vpop.f32.mrb[0].mxu0
        %v2392 = vadd.f32 0.0, %v2391
        %v2393 = vpop.f32.mrb[0].mxu0
        %2394 = vmatprep.mubr.bf16.mxu0 0
        %2395 = vmatmul.mubr.bf16.gmra.mrb[0].mxu0 %v2249
        %v2396 = vpop.f32.mrb[0].mxu0
        %v2397 = vadd.f32 0.0, %v2396
        %v2398 = vpop.f32.mrb[0].mxu0
        %v2399 = vpop.f32.mrb[0].mxu0
        %v2400 = vadd.f32 0.0, %v2399
        %v2401 = vpop.f32.mrb[0].mxu0
        %2402 = vdwg.mxu0
        %v2403 = vadd.f32 %v1977, %v2341
        %v2404 = vadd.f32 %v1978, %v2344
        %v2405 = vadd.f32 %v1979, %v2349
        %v2406 = vadd.f32 %v1980, %v2352
        %v2407 = vadd.f32 %v1981, %v2357
        %v2408 = vadd.f32 %v1982, %v2360
        %v2409 = vadd.f32 %v1983, %v2365
        %v2410 = vadd.f32 %v1984, %v2368
        %v2411 = vadd.f32 %v1985, %v2373
        %v2412 = vadd.f32 %v1986, %v2376
        %v2413 = vadd.f32 %v1987, %v2381
        %v2414 = vadd.f32 %v1988, %v2384
        %v2415 = vadd.f32 %v1989, %v2389
        %v2416 = vadd.f32 %v1990, %v2392
        %v2417 = vadd.f32 %v1991, %v2397
        %v2418 = vadd.f32 %v1992, %v2400
        %v2419 = vld [vmem:[%s661] sm:$0xe]
        %v2420 = vld [vmem:[%s661 + $0xc] sm:$0xe]
        %v2421 = vld [vmem:[%s661 + $0x18] sm:$0xe]
        %v2422 = vld [vmem:[%s661 + $0x24] sm:$0xe]
        %v2423 = vld [vmem:[%s661 + $0x30] sm:$0xe]
        %v2424 = vld [vmem:[%s661 + $0x3c] sm:$0xe]
        %v2425 = vld [vmem:[%s661 + $0x48] sm:$0xe]
        %v2426 = vld [vmem:[%s661 + $0x54] sm:$0xe]
        %v2451 = vrot.slane %v2419, 5
        %v2452 = vrot.slane %v2451, 4
        %v2453 = vrot.slane %v1994, 5
        %v2454 = vsel %vm1484, %v2452, %v2453
        %v2455 = vrot.slane %v2453, 4
        %v2456 = vrot.slane %v1995, 5
        %v2457 = vsel %vm1484, %v2455, %v2456
        %v2458 = vrot.slane %v2420, 5
        %v2459 = vrot.slane %v2458, 4
        %v2460 = vrot.slane %v1997, 5
        %v2461 = vsel %vm1484, %v2459, %v2460
        %v2462 = vrot.slane %v2460, 4
        %v2463 = vrot.slane %v1998, 5
        %v2464 = vsel %vm1484, %v2462, %v2463
        %v2465 = vrot.slane %v2421, 5
        %v2466 = vrot.slane %v2465, 4
        %v2467 = vrot.slane %v2000, 5
        %v2468 = vsel %vm1484, %v2466, %v2467
        %v2469 = vrot.slane %v2467, 4
        %v2470 = vrot.slane %v2001, 5
        %v2471 = vsel %vm1484, %v2469, %v2470
        %v2472 = vrot.slane %v2422, 5
        %v2473 = vrot.slane %v2472, 4
        %v2474 = vrot.slane %v2003, 5
        %v2475 = vsel %vm1484, %v2473, %v2474
        %v2476 = vrot.slane %v2474, 4
        %v2477 = vrot.slane %v2004, 5
        %v2478 = vsel %vm1484, %v2476, %v2477
        %v2479 = vrot.slane %v2423, 5
        %v2480 = vrot.slane %v2479, 4
        %v2481 = vrot.slane %v2006, 5
        %v2482 = vsel %vm1484, %v2480, %v2481
        %v2483 = vrot.slane %v2481, 4
        %v2484 = vrot.slane %v2007, 5
        %v2485 = vsel %vm1484, %v2483, %v2484
        %v2486 = vrot.slane %v2424, 5
        %v2487 = vrot.slane %v2486, 4
        %v2488 = vrot.slane %v2009, 5
        %v2489 = vsel %vm1484, %v2487, %v2488
        %v2490 = vrot.slane %v2488, 4
        %v2491 = vrot.slane %v2010, 5
        %v2492 = vsel %vm1484, %v2490, %v2491
        %v2493 = vrot.slane %v2425, 5
        %v2494 = vrot.slane %v2493, 4
        %v2495 = vrot.slane %v2012, 5
        %v2496 = vsel %vm1484, %v2494, %v2495
        %v2497 = vrot.slane %v2495, 4
        %v2498 = vrot.slane %v2013, 5
        %v2499 = vsel %vm1484, %v2497, %v2498
        %v2500 = vrot.slane %v2426, 5
        %v2501 = vrot.slane %v2500, 4
        %v2502 = vrot.slane %v2015, 5
        %v2503 = vsel %vm1484, %v2501, %v2502
        %v2504 = vrot.slane %v2502, 4
        %v2505 = vrot.slane %v2016, 5
        %v2506 = vsel %vm1484, %v2504, %v2505
        %s2507 = scalar_lea.vmem [#allocation6], 320
        %v2508 = vld [vmem:[%s2507] sm:$0xf]
        %v2509 = vld [vmem:[%s2507 + $0x4] sm:$0xf]
        %v2510 = vld [vmem:[%s2507 + $0x8] sm:$0xf]
        %v2511 = vld [vmem:[%s2507 + $0xc] sm:$0xf]
        %v2512 = vld [vmem:[%s2507 + $0x10] sm:$0xf]
        %v2513 = vld [vmem:[%s2507 + $0x14] sm:$0xf]
        %v2514 = vld [vmem:[%s2507 + $0x18] sm:$0xf]
        %v2515 = vld [vmem:[%s2507 + $0x1c] sm:$0xf]
        %v2516 = vld [vmem:[%s2507 + $0x20] sm:$0xf]
        %v2517 = vld [vmem:[%s2507 + $0x24] sm:$0xf]
        %v2518 = vld [vmem:[%s2507 + $0x28] sm:$0xf]
        %v2519 = vld [vmem:[%s2507 + $0x2c] sm:$0xf]
        %v2520 = vld [vmem:[%s2507 + $0x30] sm:$0xf]
        %v2521 = vld [vmem:[%s2507 + $0x34] sm:$0xf]
        %v2522 = vld [vmem:[%s2507 + $0x38] sm:$0xf]
        %v2523 = vld [vmem:[%s2507 + $0x3c] sm:$0xf]
        %v2524 = vunpack.c.l.b16 %v2454
        %v2525 = vunpack.c.l.b16 %v2457
        %v2526 = vunpack.c.l.b16 %v2461
        %v2527 = vunpack.c.l.b16 %v2464
        %v2528 = vunpack.c.l.b16 %v2468
        %v2529 = vunpack.c.l.b16 %v2471
        %v2530 = vunpack.c.l.b16 %v2475
        %v2531 = vunpack.c.l.b16 %v2478
        %v2532 = vunpack.c.l.b16 %v2482
        %v2533 = vunpack.c.l.b16 %v2485
        %v2534 = vunpack.c.l.b16 %v2489
        %v2535 = vunpack.c.l.b16 %v2492
        %v2536 = vunpack.c.l.b16 %v2496
        %v2537 = vunpack.c.l.b16 %v2499
        %v2538 = vunpack.c.l.b16 %v2503
        %v2539 = vunpack.c.l.b16 %v2506
        %v2540 = vpack.c.b16 %v2525, %v2524
        %v2541 = vpack.c.b16 %v2527, %v2526
        %v2542 = vpack.c.b16 %v2529, %v2528
        %v2543 = vpack.c.b16 %v2531, %v2530
        %v2544 = vpack.c.b16 %v2533, %v2532
        %v2545 = vpack.c.b16 %v2535, %v2534
        %v2546 = vpack.c.b16 %v2537, %v2536
        %v2547 = vpack.c.b16 %v2539, %v2538
        %v2572 = vunpack.c.l.b16 %v2508
        %v2573 = vunpack.c.l.b16 %v2509
        %v2574 = vunpack.c.l.b16 %v2510
        %v2575 = vunpack.c.l.b16 %v2511
        %v2576 = vunpack.c.l.b16 %v2512
        %v2577 = vunpack.c.l.b16 %v2513
        %v2578 = vunpack.c.l.b16 %v2514
        %v2579 = vunpack.c.l.b16 %v2515
        %v2580 = vunpack.c.l.b16 %v2516
        %v2581 = vunpack.c.l.b16 %v2517
        %v2582 = vunpack.c.l.b16 %v2518
        %v2583 = vunpack.c.l.b16 %v2519
        %v2584 = vunpack.c.l.b16 %v2520
        %v2585 = vunpack.c.l.b16 %v2521
        %v2586 = vunpack.c.l.b16 %v2522
        %v2587 = vunpack.c.l.b16 %v2523
        %v2588 = vpack.c.b16 %v2573, %v2572
        %v2589 = vpack.c.b16 %v2575, %v2574
        %v2590 = vpack.c.b16 %v2577, %v2576
        %v2591 = vpack.c.b16 %v2579, %v2578
        %v2592 = vpack.c.b16 %v2581, %v2580
        %v2593 = vpack.c.b16 %v2583, %v2582
        %v2594 = vpack.c.b16 %v2585, %v2584
        %v2595 = vpack.c.b16 %v2587, %v2586
        %2604 = vmatprep.subr.bf16.mxu0 0
        %2605 = vmatpush1.bf16.msra.mxu0 %v2588
        %2606 = vmatprep.subr.bf16.mxu0 0
        %2607 = vmatpush1.bf16.msra.mxu0 %v2589
        %2608 = vmatprep.subr.bf16.mxu0 0
        %2609 = vmatpush1.bf16.msra.mxu0 %v2590
        %2610 = vmatprep.subr.bf16.mxu0 0
        %2611 = vmatpush1.bf16.msra.mxu0 %v2591
        %2612 = vmatprep.subr.bf16.mxu0 0
        %2613 = vmatpush1.bf16.msra.mxu0 %v2592
        %2614 = vmatprep.subr.bf16.mxu0 0
        %2615 = vmatpush1.bf16.msra.mxu0 %v2593
        %2616 = vmatprep.subr.bf16.mxu0 0
        %2617 = vmatpush1.bf16.msra.mxu0 %v2594
        %2618 = vmatprep.subr.bf16.mxu0 0
        %2619 = vmatpush1.bf16.msra.mxu0 %v2595
        %2620 = vmatprep.subr.bf16.mxu0 0
        %2621 = vmatpush1.bf16.msra.mxu0 0
        %2622 = vmatprep.subr.bf16.mxu0 0
        %2623 = vmatpush1.bf16.msra.mxu0 0
        %2624 = vmatprep.subr.bf16.mxu0 0
        %2625 = vmatpush1.bf16.msra.mxu0 0
        %2626 = vmatprep.subr.bf16.mxu0 0
        %2627 = vmatpush1.bf16.msra.mxu0 0
        %2628 = vmatprep.subr.bf16.mxu0 0
        %2629 = vmatpush1.bf16.msra.mxu0 0
        %2630 = vmatprep.subr.bf16.mxu0 0
        %2631 = vmatpush1.bf16.msra.mxu0 0
        %2632 = vmatprep.subr.bf16.mxu0 0
        %2633 = vmatpush1.bf16.msra.mxu0 0
        %2634 = vmatprep.subr.bf16.mxu0 0
        %2635 = vmatpush1.bf16.msra.mxu0 0
        %2636 = vmatprep.mubr.bf16.mxu0 0
        %2637 = vmatmul.mubr.bf16.gmra.mrb[0].mxu0 %v2540
        %v2638 = vpop.f32.mrb[0].mxu0
        %v2639 = vadd.f32 0.0, %v2638
        %v2640 = vpop.f32.mrb[0].mxu0
        %v2641 = vpop.f32.mrb[0].mxu0
        %v2642 = vadd.f32 0.0, %v2641
        %v2643 = vpop.f32.mrb[0].mxu0
        %2644 = vmatprep.mubr.bf16.mxu0 0
        %2645 = vmatmul.mubr.bf16.gmra.mrb[0].mxu0 %v2541
        %v2646 = vpop.f32.mrb[0].mxu0
        %v2647 = vadd.f32 0.0, %v2646
        %v2648 = vpop.f32.mrb[0].mxu0
        %v2649 = vpop.f32.mrb[0].mxu0
        %v2650 = vadd.f32 0.0, %v2649
        %v2651 = vpop.f32.mrb[0].mxu0
        %2652 = vmatprep.mubr.bf16.mxu0 0
        %2653 = vmatmul.mubr.bf16.gmra.mrb[0].mxu0 %v2542
        %v2654 = vpop.f32.mrb[0].mxu0
        %v2655 = vadd.f32 0.0, %v2654
        %v2656 = vpop.f32.mrb[0].mxu0
        %v2657 = vpop.f32.mrb[0].mxu0
        %v2658 = vadd.f32 0.0, %v2657
        %v2659 = vpop.f32.mrb[0].mxu0
        %2660 = vmatprep.mubr.bf16.mxu0 0
        %2661 = vmatmul.mubr.bf16.gmra.mrb[0].mxu0 %v2543
        %v2662 = vpop.f32.mrb[0].mxu0
        %v2663 = vadd.f32 0.0, %v2662
        %v2664 = vpop.f32.mrb[0].mxu0
        %v2665 = vpop.f32.mrb[0].mxu0
        %v2666 = vadd.f32 0.0, %v2665
        %v2667 = vpop.f32.mrb[0].mxu0
        %2668 = vmatprep.mubr.bf16.mxu0 0
        %2669 = vmatmul.mubr.bf16.gmra.mrb[0].mxu0 %v2544
        %v2670 = vpop.f32.mrb[0].mxu0
        %v2671 = vadd.f32 0.0, %v2670
        %v2672 = vpop.f32.mrb[0].mxu0
        %v2673 = vpop.f32.mrb[0].mxu0
        %v2674 = vadd.f32 0.0, %v2673
        %v2675 = vpop.f32.mrb[0].mxu0
        %2676 = vmatprep.mubr.bf16.mxu0 0
        %2677 = vmatmul.mubr.bf16.gmra.mrb[0].mxu0 %v2545
        %v2678 = vpop.f32.mrb[0].mxu0
        %v2679 = vadd.f32 0.0, %v2678
        %v2680 = vpop.f32.mrb[0].mxu0
        %v2681 = vpop.f32.mrb[0].mxu0
        %v2682 = vadd.f32 0.0, %v2681
        %v2683 = vpop.f32.mrb[0].mxu0
        %2684 = vmatprep.mubr.bf16.mxu0 0
        %2685 = vmatmul.mubr.bf16.gmra.mrb[0].mxu0 %v2546
        %v2686 = vpop.f32.mrb[0].mxu0
        %v2687 = vadd.f32 0.0, %v2686
        %v2688 = vpop.f32.mrb[0].mxu0
        %v2689 = vpop.f32.mrb[0].mxu0
        %v2690 = vadd.f32 0.0, %v2689
        %v2691 = vpop.f32.mrb[0].mxu0
        %2692 = vmatprep.mubr.bf16.mxu0 0
        %2693 = vmatmul.mubr.bf16.gmra.mrb[0].mxu0 %v2547
        %v2694 = vpop.f32.mrb[0].mxu0
        %v2695 = vadd.f32 0.0, %v2694
        %v2696 = vpop.f32.mrb[0].mxu0
        %v2697 = vpop.f32.mrb[0].mxu0
        %v2698 = vadd.f32 0.0, %v2697
        %v2699 = vpop.f32.mrb[0].mxu0
        %2700 = vdwg.mxu0
        %v2701 = vadd.f32 %v2403, %v2639
        %v2702 = vadd.f32 %v2404, %v2642
        %v2703 = vadd.f32 %v2405, %v2647
        %v2704 = vadd.f32 %v2406, %v2650
        %v2705 = vadd.f32 %v2407, %v2655
        %v2706 = vadd.f32 %v2408, %v2658
        %v2707 = vadd.f32 %v2409, %v2663
        %v2708 = vadd.f32 %v2410, %v2666
        %v2709 = vadd.f32 %v2411, %v2671
        %v2710 = vadd.f32 %v2412, %v2674
        %v2711 = vadd.f32 %v2413, %v2679
        %v2712 = vadd.f32 %v2414, %v2682
        %v2713 = vadd.f32 %v2415, %v2687
        %v2714 = vadd.f32 %v2416, %v2690
        %v2715 = vadd.f32 %v2417, %v2695
        %v2716 = vadd.f32 %v2418, %v2698
        %s2717 = scalar_lea.vmem [#allocation2], 24
        %v2718 = vld [vmem:[%s2717] sm:$0xf]
        %v2719 = vld [vmem:[%s2717 + $0x4] sm:$0xf]
        %v2720 = vld [vmem:[%s2717 + $0xc] sm:$0xf]
        %v2721 = vld [vmem:[%s2717 + $0x10] sm:$0xf]
        %v2722 = vld [vmem:[%s2717 + $0x18] sm:$0xf]
        %v2723 = vld [vmem:[%s2717 + $0x1c] sm:$0xf]
        %v2724 = vld [vmem:[%s2717 + $0x24] sm:$0xf]
        %v2725 = vld [vmem:[%s2717 + $0x28] sm:$0xf]
        %v2726 = vld [vmem:[%s2717 + $0x30] sm:$0xf]
        %v2727 = vld [vmem:[%s2717 + $0x34] sm:$0xf]
        %v2728 = vld [vmem:[%s2717 + $0x3c] sm:$0xf]
        %v2729 = vld [vmem:[%s2717 + $0x40] sm:$0xf]
        %v2730 = vld [vmem:[%s2717 + $0x48] sm:$0xf]
        %v2731 = vld [vmem:[%s2717 + $0x4c] sm:$0xf]
        %v2732 = vld [vmem:[%s2717 + $0x54] sm:$0xf]
        %v2733 = vld [vmem:[%s2717 + $0x58] sm:$0xf]
        %s2734 = scalar_lea.vmem [#allocation6], 384
        %v2735 = vld [vmem:[%s2734] sm:$0xf]
        %v2736 = vld [vmem:[%s2734 + $0x4] sm:$0xf]
        %v2737 = vld [vmem:[%s2734 + $0x8] sm:$0xf]
        %v2738 = vld [vmem:[%s2734 + $0xc] sm:$0xf]
        %v2739 = vld [vmem:[%s2734 + $0x10] sm:$0xf]
        %v2740 = vld [vmem:[%s2734 + $0x14] sm:$0xf]
        %v2741 = vld [vmem:[%s2734 + $0x18] sm:$0xf]
        %v2742 = vld [vmem:[%s2734 + $0x1c] sm:$0xf]
        %v2743 = vld [vmem:[%s2734 + $0x20] sm:$0xf]
        %v2744 = vld [vmem:[%s2734 + $0x24] sm:$0xf]
        %v2745 = vld [vmem:[%s2734 + $0x28] sm:$0xf]
        %v2746 = vld [vmem:[%s2734 + $0x2c] sm:$0xf]
        %v2747 = vld [vmem:[%s2734 + $0x30] sm:$0xf]
        %v2748 = vld [vmem:[%s2734 + $0x34] sm:$0xf]
        %v2749 = vld [vmem:[%s2734 + $0x38] sm:$0xf]
        %v2750 = vld [vmem:[%s2734 + $0x3c] sm:$0xf]
        %v2767 = vunpack.c.l.b16 %v2718
        %v2768 = vunpack.c.l.b16 %v2719
        %v2769 = vunpack.c.l.b16 %v2720
        %v2770 = vunpack.c.l.b16 %v2721
        %v2771 = vunpack.c.l.b16 %v2722
        %v2772 = vunpack.c.l.b16 %v2723
        %v2773 = vunpack.c.l.b16 %v2724
        %v2774 = vunpack.c.l.b16 %v2725
        %v2775 = vunpack.c.l.b16 %v2726
        %v2776 = vunpack.c.l.b16 %v2727
        %v2777 = vunpack.c.l.b16 %v2728
        %v2778 = vunpack.c.l.b16 %v2729
        %v2779 = vunpack.c.l.b16 %v2730
        %v2780 = vunpack.c.l.b16 %v2731
        %v2781 = vunpack.c.l.b16 %v2732
        %v2782 = vunpack.c.l.b16 %v2733
        %v2783 = vpack.c.b16 %v2768, %v2767
        %v2784 = vpack.c.b16 %v2770, %v2769
        %v2785 = vpack.c.b16 %v2772, %v2771
        %v2786 = vpack.c.b16 %v2774, %v2773
        %v2787 = vpack.c.b16 %v2776, %v2775
        %v2788 = vpack.c.b16 %v2778, %v2777
        %v2789 = vpack.c.b16 %v2780, %v2779
        %v2790 = vpack.c.b16 %v2782, %v2781
        %v2815 = vunpack.c.l.b16 %v2735
        %v2816 = vunpack.c.l.b16 %v2736
        %v2817 = vunpack.c.l.b16 %v2737
        %v2818 = vunpack.c.l.b16 %v2738
        %v2819 = vunpack.c.l.b16 %v2739
        %v2820 = vunpack.c.l.b16 %v2740
        %v2821 = vunpack.c.l.b16 %v2741
        %v2822 = vunpack.c.l.b16 %v2742
        %v2823 = vunpack.c.l.b16 %v2743
        %v2824 = vunpack.c.l.b16 %v2744
        %v2825 = vunpack.c.l.b16 %v2745
        %v2826 = vunpack.c.l.b16 %v2746
        %v2827 = vunpack.c.l.b16 %v2747
        %v2828 = vunpack.c.l.b16 %v2748
        %v2829 = vunpack.c.l.b16 %v2749
        %v2830 = vunpack.c.l.b16 %v2750
        %v2831 = vpack.c.b16 %v2816, %v2815
        %v2832 = vpack.c.b16 %v2818, %v2817
        %v2833 = vpack.c.b16 %v2820, %v2819
        %v2834 = vpack.c.b16 %v2822, %v2821
        %v2835 = vpack.c.b16 %v2824, %v2823
        %v2836 = vpack.c.b16 %v2826, %v2825
        %v2837 = vpack.c.b16 %v2828, %v2827
        %v2838 = vpack.c.b16 %v2830, %v2829
        %2847 = vmatprep.subr.bf16.mxu0 0
        %2848 = vmatpush1.bf16.msra.mxu0 %v2831
        %2849 = vmatprep.subr.bf16.mxu0 0
        %2850 = vmatpush1.bf16.msra.mxu0 %v2832
        %2851 = vmatprep.subr.bf16.mxu0 0
        %2852 = vmatpush1.bf16.msra.mxu0 %v2833
        %2853 = vmatprep.subr.bf16.mxu0 0
        %2854 = vmatpush1.bf16.msra.mxu0 %v2834
        %2855 = vmatprep.subr.bf16.mxu0 0
        %2856 = vmatpush1.bf16.msra.mxu0 %v2835
        %2857 = vmatprep.subr.bf16.mxu0 0
        %2858 = vmatpush1.bf16.msra.mxu0 %v2836
        %2859 = vmatprep.subr.bf16.mxu0 0
        %2860 = vmatpush1.bf16.msra.mxu0 %v2837
        %2861 = vmatprep.subr.bf16.mxu0 0
        %2862 = vmatpush1.bf16.msra.mxu0 %v2838
        %2863 = vmatprep.subr.bf16.mxu0 0
        %2864 = vmatpush1.bf16.msra.mxu0 0
        %2865 = vmatprep.subr.bf16.mxu0 0
        %2866 = vmatpush1.bf16.msra.mxu0 0
        %2867 = vmatprep.subr.bf16.mxu0 0
        %2868 = vmatpush1.bf16.msra.mxu0 0
        %2869 = vmatprep.subr.bf16.mxu0 0
        %2870 = vmatpush1.bf16.msra.mxu0 0
        %2871 = vmatprep.subr.bf16.mxu0 0
        %2872 = vmatpush1.bf16.msra.mxu0 0
        %2873 = vmatprep.subr.bf16.mxu0 0
        %2874 = vmatpush1.bf16.msra.mxu0 0
        %2875 = vmatprep.subr.bf16.mxu0 0
        %2876 = vmatpush1.bf16.msra.mxu0 0
        %2877 = vmatprep.subr.bf16.mxu0 0
        %2878 = vmatpush1.bf16.msra.mxu0 0
        %2879 = vmatprep.mubr.bf16.mxu0 0
        %2880 = vmatmul.mubr.bf16.gmra.mrb[0].mxu0 %v2783
        %v2881 = vpop.f32.mrb[0].mxu0
        %v2882 = vadd.f32 0.0, %v2881
        %v2883 = vpop.f32.mrb[0].mxu0
        %v2884 = vpop.f32.mrb[0].mxu0
        %v2885 = vadd.f32 0.0, %v2884
        %v2886 = vpop.f32.mrb[0].mxu0
        %2887 = vmatprep.mubr.bf16.mxu0 0
        %2888 = vmatmul.mubr.bf16.gmra.mrb[0].mxu0 %v2784
        %v2889 = vpop.f32.mrb[0].mxu0
        %v2890 = vadd.f32 0.0, %v2889
        %v2891 = vpop.f32.mrb[0].mxu0
        %v2892 = vpop.f32.mrb[0].mxu0
        %v2893 = vadd.f32 0.0, %v2892
        %v2894 = vpop.f32.mrb[0].mxu0
        %2895 = vmatprep.mubr.bf16.mxu0 0
        %2896 = vmatmul.mubr.bf16.gmra.mrb[0].mxu0 %v2785
        %v2897 = vpop.f32.mrb[0].mxu0
        %v2898 = vadd.f32 0.0, %v2897
        %v2899 = vpop.f32.mrb[0].mxu0
        %v2900 = vpop.f32.mrb[0].mxu0
        %v2901 = vadd.f32 0.0, %v2900
        %v2902 = vpop.f32.mrb[0].mxu0
        %2903 = vmatprep.mubr.bf16.mxu0 0
        %2904 = vmatmul.mubr.bf16.gmra.mrb[0].mxu0 %v2786
        %v2905 = vpop.f32.mrb[0].mxu0
        %v2906 = vadd.f32 0.0, %v2905
        %v2907 = vpop.f32.mrb[0].mxu0
        %v2908 = vpop.f32.mrb[0].mxu0
        %v2909 = vadd.f32 0.0, %v2908
        %v2910 = vpop.f32.mrb[0].mxu0
        %2911 = vmatprep.mubr.bf16.mxu0 0
        %2912 = vmatmul.mubr.bf16.gmra.mrb[0].mxu0 %v2787
        %v2913 = vpop.f32.mrb[0].mxu0
        %v2914 = vadd.f32 0.0, %v2913
        %v2915 = vpop.f32.mrb[0].mxu0
        %v2916 = vpop.f32.mrb[0].mxu0
        %v2917 = vadd.f32 0.0, %v2916
        %v2918 = vpop.f32.mrb[0].mxu0
        %2919 = vmatprep.mubr.bf16.mxu0 0
        %2920 = vmatmul.mubr.bf16.gmra.mrb[0].mxu0 %v2788
        %v2921 = vpop.f32.mrb[0].mxu0
        %v2922 = vadd.f32 0.0, %v2921
        %v2923 = vpop.f32.mrb[0].mxu0
        %v2924 = vpop.f32.mrb[0].mxu0
        %v2925 = vadd.f32 0.0, %v2924
        %v2926 = vpop.f32.mrb[0].mxu0
        %2927 = vmatprep.mubr.bf16.mxu0 0
        %2928 = vmatmul.mubr.bf16.gmra.mrb[0].mxu0 %v2789
        %v2929 = vpop.f32.mrb[0].mxu0
        %v2930 = vadd.f32 0.0, %v2929
        %v2931 = vpop.f32.mrb[0].mxu0
        %v2932 = vpop.f32.mrb[0].mxu0
        %v2933 = vadd.f32 0.0, %v2932
        %v2934 = vpop.f32.mrb[0].mxu0
        %2935 = vmatprep.mubr.bf16.mxu0 0
        %2936 = vmatmul.mubr.bf16.gmra.mrb[0].mxu0 %v2790
        %v2937 = vpop.f32.mrb[0].mxu0
        %v2938 = vadd.f32 0.0, %v2937
        %v2939 = vpop.f32.mrb[0].mxu0
        %v2940 = vpop.f32.mrb[0].mxu0
        %v2941 = vadd.f32 0.0, %v2940
        %v2942 = vpop.f32.mrb[0].mxu0
        %2943 = vdwg.mxu0
        %v2944 = vadd.f32 %v2701, %v2882
        %v2945 = vadd.f32 %v2702, %v2885
        %v2946 = vadd.f32 %v2703, %v2890
        %v2947 = vadd.f32 %v2704, %v2893
        %v2948 = vadd.f32 %v2705, %v2898
        %v2949 = vadd.f32 %v2706, %v2901
        %v2950 = vadd.f32 %v2707, %v2906
        %v2951 = vadd.f32 %v2708, %v2909
        %v2952 = vadd.f32 %v2709, %v2914
        %v2953 = vadd.f32 %v2710, %v2917
        %v2954 = vadd.f32 %v2711, %v2922
        %v2955 = vadd.f32 %v2712, %v2925
        %v2956 = vadd.f32 %v2713, %v2930
        %v2957 = vadd.f32 %v2714, %v2933
        %v2958 = vadd.f32 %v2715, %v2938
        %v2959 = vadd.f32 %v2716, %v2941
        %v2960 = vld [vmem:[%s2717] sm:$0xf]
        %v2961 = vld [vmem:[%s2717 + $0x4] sm:$0xf]
        %v2962 = vld [vmem:[%s2717 + $0x8] sm:$0x1]
        %v2963 = vld [vmem:[%s2717 + $0xc] sm:$0xf]
        %v2964 = vld [vmem:[%s2717 + $0x10] sm:$0xf]
        %v2965 = vld [vmem:[%s2717 + $0x14] sm:$0x1]
        %v2966 = vld [vmem:[%s2717 + $0x18] sm:$0xf]
        %v2967 = vld [vmem:[%s2717 + $0x1c] sm:$0xf]
        %v2968 = vld [vmem:[%s2717 + $0x20] sm:$0x1]
        %v2969 = vld [vmem:[%s2717 + $0x24] sm:$0xf]
        %v2970 = vld [vmem:[%s2717 + $0x28] sm:$0xf]
        %v2971 = vld [vmem:[%s2717 + $0x2c] sm:$0x1]
        %v2972 = vld [vmem:[%s2717 + $0x30] sm:$0xf]
        %v2973 = vld [vmem:[%s2717 + $0x34] sm:$0xf]
        %v2974 = vld [vmem:[%s2717 + $0x38] sm:$0x1]
        %v2975 = vld [vmem:[%s2717 + $0x3c] sm:$0xf]
        %v2976 = vld [vmem:[%s2717 + $0x40] sm:$0xf]
        %v2977 = vld [vmem:[%s2717 + $0x44] sm:$0x1]
        %v2978 = vld [vmem:[%s2717 + $0x48] sm:$0xf]
        %v2979 = vld [vmem:[%s2717 + $0x4c] sm:$0xf]
        %v2980 = vld [vmem:[%s2717 + $0x50] sm:$0x1]
        %v2981 = vld [vmem:[%s2717 + $0x54] sm:$0xf]
        %v2982 = vld [vmem:[%s2717 + $0x58] sm:$0xf]
        %v2983 = vld [vmem:[%s2717 + $0x5c] sm:$0x1]
        %v2985 = vshrl.u32 %v2960, 16
        %v2987 = vrot.slane %v2985, 4
        %v2988 = vshll.u32 %v2960, 16
        %v2990 = vrot.slane %v2988, 5
        %v2991 = vor.u32 %v2987, %v2990
        %v2992 = vrot.slane %v2991, 4
        %v2994 = vshll.u32 %v2961, 16
        %v2996 = vrot.slane %v2994, 5
        %v2997 = vsel %vm878, %v2992, %v2996
        %v2998 = vshrl.u32 %v2961, 16
        %v3000 = vrot.slane %v2998, 4
        %v3001 = vor.u32 %v3000, %v2996
        %v3002 = vrot.slane %v3001, 4
        %v3004 = vshll.u32 %v2962, 16
        %v3006 = vrot.slane %v3004, 5
        %v3007 = vsel %vm878, %v3002, %v3006
        %v3009 = vshrl.u32 %v2963, 16
        %v3011 = vrot.slane %v3009, 4
        %v3012 = vshll.u32 %v2963, 16
        %v3014 = vrot.slane %v3012, 5
        %v3015 = vor.u32 %v3011, %v3014
        %v3016 = vrot.slane %v3015, 4
        %v3018 = vshll.u32 %v2964, 16
        %v3020 = vrot.slane %v3018, 5
        %v3021 = vsel %vm878, %v3016, %v3020
        %v3022 = vshrl.u32 %v2964, 16
        %v3024 = vrot.slane %v3022, 4
        %v3025 = vor.u32 %v3024, %v3020
        %v3026 = vrot.slane %v3025, 4
        %v3028 = vshll.u32 %v2965, 16
        %v3030 = vrot.slane %v3028, 5
        %v3031 = vsel %vm878, %v3026, %v3030
        %v3033 = vshrl.u32 %v2966, 16
        %v3035 = vrot.slane %v3033, 4
        %v3036 = vshll.u32 %v2966, 16
        %v3038 = vrot.slane %v3036, 5
        %v3039 = vor.u32 %v3035, %v3038
        %v3040 = vrot.slane %v3039, 4
        %v3042 = vshll.u32 %v2967, 16
        %v3044 = vrot.slane %v3042, 5
        %v3045 = vsel %vm878, %v3040, %v3044
        %v3046 = vshrl.u32 %v2967, 16
        %v3048 = vrot.slane %v3046, 4
        %v3049 = vor.u32 %v3048, %v3044
        %v3050 = vrot.slane %v3049, 4
        %v3052 = vshll.u32 %v2968, 16
        %v3054 = vrot.slane %v3052, 5
        %v3055 = vsel %vm878, %v3050, %v3054
        %v3057 = vshrl.u32 %v2969, 16
        %v3059 = vrot.slane %v3057, 4
        %v3060 = vshll.u32 %v2969, 16
        %v3062 = vrot.slane %v3060, 5
        %v3063 = vor.u32 %v3059, %v3062
        %v3064 = vrot.slane %v3063, 4
        %v3066 = vshll.u32 %v2970, 16
        %v3068 = vrot.slane %v3066, 5
        %v3069 = vsel %vm878, %v3064, %v3068
        %v3070 = vshrl.u32 %v2970, 16
        %v3072 = vrot.slane %v3070, 4
        %v3073 = vor.u32 %v3072, %v3068
        %v3074 = vrot.slane %v3073, 4
        %v3076 = vshll.u32 %v2971, 16
        %v3078 = vrot.slane %v3076, 5
        %v3079 = vsel %vm878, %v3074, %v3078
        %v3081 = vshrl.u32 %v2972, 16
        %v3083 = vrot.slane %v3081, 4
        %v3084 = vshll.u32 %v2972, 16
        %v3086 = vrot.slane %v3084, 5
        %v3087 = vor.u32 %v3083, %v3086
        %v3088 = vrot.slane %v3087, 4
        %v3090 = vshll.u32 %v2973, 16
        %v3092 = vrot.slane %v3090, 5
        %v3093 = vsel %vm878, %v3088, %v3092
        %v3094 = vshrl.u32 %v2973, 16
        %v3096 = vrot.slane %v3094, 4
        %v3097 = vor.u32 %v3096, %v3092
        %v3098 = vrot.slane %v3097, 4
        %v3100 = vshll.u32 %v2974, 16
        %v3102 = vrot.slane %v3100, 5
        %v3103 = vsel %vm878, %v3098, %v3102
        %v3105 = vshrl.u32 %v2975, 16
        %v3107 = vrot.slane %v3105, 4
        %v3108 = vshll.u32 %v2975, 16
        %v3110 = vrot.slane %v3108, 5
        %v3111 = vor.u32 %v3107, %v3110
        %v3112 = vrot.slane %v3111, 4
        %v3114 = vshll.u32 %v2976, 16
        %v3116 = vrot.slane %v3114, 5
        %v3117 = vsel %vm878, %v3112, %v3116
        %v3118 = vshrl.u32 %v2976, 16
        %v3120 = vrot.slane %v3118, 4
        %v3121 = vor.u32 %v3120, %v3116
        %v3122 = vrot.slane %v3121, 4
        %v3124 = vshll.u32 %v2977, 16
        %v3126 = vrot.slane %v3124, 5
        %v3127 = vsel %vm878, %v3122, %v3126
        %v3129 = vshrl.u32 %v2978, 16
        %v3131 = vrot.slane %v3129, 4
        %v3132 = vshll.u32 %v2978, 16
        %v3134 = vrot.slane %v3132, 5
        %v3135 = vor.u32 %v3131, %v3134
        %v3136 = vrot.slane %v3135, 4
        %v3138 = vshll.u32 %v2979, 16
        %v3140 = vrot.slane %v3138, 5
        %v3141 = vsel %vm878, %v3136, %v3140
        %v3142 = vshrl.u32 %v2979, 16
        %v3144 = vrot.slane %v3142, 4
        %v3145 = vor.u32 %v3144, %v3140
        %v3146 = vrot.slane %v3145, 4
        %v3148 = vshll.u32 %v2980, 16
        %v3150 = vrot.slane %v3148, 5
        %v3151 = vsel %vm878, %v3146, %v3150
        %v3153 = vshrl.u32 %v2981, 16
        %v3155 = vrot.slane %v3153, 4
        %v3156 = vshll.u32 %v2981, 16
        %v3158 = vrot.slane %v3156, 5
        %v3159 = vor.u32 %v3155, %v3158
        %v3160 = vrot.slane %v3159, 4
        %v3162 = vshll.u32 %v2982, 16
        %v3164 = vrot.slane %v3162, 5
        %v3165 = vsel %vm878, %v3160, %v3164
        %v3166 = vshrl.u32 %v2982, 16
        %v3168 = vrot.slane %v3166, 4
        %v3169 = vor.u32 %v3168, %v3164
        %v3170 = vrot.slane %v3169, 4
        %v3172 = vshll.u32 %v2983, 16
        %v3174 = vrot.slane %v3172, 5
        %v3175 = vsel %vm878, %v3170, %v3174
        %s3176 = scalar_lea.vmem [#allocation6], 448
        %v3177 = vld [vmem:[%s3176] sm:$0xf]
        %v3178 = vld [vmem:[%s3176 + $0x4] sm:$0xf]
        %v3179 = vld [vmem:[%s3176 + $0x8] sm:$0xf]
        %v3180 = vld [vmem:[%s3176 + $0xc] sm:$0xf]
        %v3181 = vld [vmem:[%s3176 + $0x10] sm:$0xf]
        %v3182 = vld [vmem:[%s3176 + $0x14] sm:$0xf]
        %v3183 = vld [vmem:[%s3176 + $0x18] sm:$0xf]
        %v3184 = vld [vmem:[%s3176 + $0x1c] sm:$0xf]
        %v3185 = vld [vmem:[%s3176 + $0x20] sm:$0xf]
        %v3186 = vld [vmem:[%s3176 + $0x24] sm:$0xf]
        %v3187 = vld [vmem:[%s3176 + $0x28] sm:$0xf]
        %v3188 = vld [vmem:[%s3176 + $0x2c] sm:$0xf]
        %v3189 = vld [vmem:[%s3176 + $0x30] sm:$0xf]
        %v3190 = vld [vmem:[%s3176 + $0x34] sm:$0xf]
        %v3191 = vld [vmem:[%s3176 + $0x38] sm:$0xf]
        %v3192 = vld [vmem:[%s3176 + $0x3c] sm:$0xf]
        %v3193 = vunpack.c.l.b16 %v2997
        %v3194 = vunpack.c.l.b16 %v3007
        %v3195 = vunpack.c.l.b16 %v3021
        %v3196 = vunpack.c.l.b16 %v3031
        %v3197 = vunpack.c.l.b16 %v3045
        %v3198 = vunpack.c.l.b16 %v3055
        %v3199 = vunpack.c.l.b16 %v3069
        %v3200 = vunpack.c.l.b16 %v3079
        %v3201 = vunpack.c.l.b16 %v3093
        %v3202 = vunpack.c.l.b16 %v3103
        %v3203 = vunpack.c.l.b16 %v3117
        %v3204 = vunpack.c.l.b16 %v3127
        %v3205 = vunpack.c.l.b16 %v3141
        %v3206 = vunpack.c.l.b16 %v3151
        %v3207 = vunpack.c.l.b16 %v3165
        %v3208 = vunpack.c.l.b16 %v3175
        %v3209 = vpack.c.b16 %v3194, %v3193
        %v3210 = vpack.c.b16 %v3196, %v3195
        %v3211 = vpack.c.b16 %v3198, %v3197
        %v3212 = vpack.c.b16 %v3200, %v3199
        %v3213 = vpack.c.b16 %v3202, %v3201
        %v3214 = vpack.c.b16 %v3204, %v3203
        %v3215 = vpack.c.b16 %v3206, %v3205
        %v3216 = vpack.c.b16 %v3208, %v3207
        %v3241 = vunpack.c.l.b16 %v3177
        %v3242 = vunpack.c.l.b16 %v3178
        %v3243 = vunpack.c.l.b16 %v3179
        %v3244 = vunpack.c.l.b16 %v3180
        %v3245 = vunpack.c.l.b16 %v3181
        %v3246 = vunpack.c.l.b16 %v3182
        %v3247 = vunpack.c.l.b16 %v3183
        %v3248 = vunpack.c.l.b16 %v3184
        %v3249 = vunpack.c.l.b16 %v3185
        %v3250 = vunpack.c.l.b16 %v3186
        %v3251 = vunpack.c.l.b16 %v3187
        %v3252 = vunpack.c.l.b16 %v3188
        %v3253 = vunpack.c.l.b16 %v3189
        %v3254 = vunpack.c.l.b16 %v3190
        %v3255 = vunpack.c.l.b16 %v3191
        %v3256 = vunpack.c.l.b16 %v3192
        %v3257 = vpack.c.b16 %v3242, %v3241
        %v3258 = vpack.c.b16 %v3244, %v3243
        %v3259 = vpack.c.b16 %v3246, %v3245
        %v3260 = vpack.c.b16 %v3248, %v3247
        %v3261 = vpack.c.b16 %v3250, %v3249
        %v3262 = vpack.c.b16 %v3252, %v3251
        %v3263 = vpack.c.b16 %v3254, %v3253
        %v3264 = vpack.c.b16 %v3256, %v3255
        %3273 = vmatprep.subr.bf16.mxu0 0
        %3274 = vmatpush1.bf16.msra.mxu0 %v3257
        %3275 = vmatprep.subr.bf16.mxu0 0
        %3276 = vmatpush1.bf16.msra.mxu0 %v3258
        %3277 = vmatprep.subr.bf16.mxu0 0
        %3278 = vmatpush1.bf16.msra.mxu0 %v3259
        %3279 = vmatprep.subr.bf16.mxu0 0
        %3280 = vmatpush1.bf16.msra.mxu0 %v3260
        %3281 = vmatprep.subr.bf16.mxu0 0
        %3282 = vmatpush1.bf16.msra.mxu0 %v3261
        %3283 = vmatprep.subr.bf16.mxu0 0
        %3284 = vmatpush1.bf16.msra.mxu0 %v3262
        %3285 = vmatprep.subr.bf16.mxu0 0
        %3286 = vmatpush1.bf16.msra.mxu0 %v3263
        %3287 = vmatprep.subr.bf16.mxu0 0
        %3288 = vmatpush1.bf16.msra.mxu0 %v3264
        %3289 = vmatprep.subr.bf16.mxu0 0
        %3290 = vmatpush1.bf16.msra.mxu0 0
        %3291 = vmatprep.subr.bf16.mxu0 0
        %3292 = vmatpush1.bf16.msra.mxu0 0
        %3293 = vmatprep.subr.bf16.mxu0 0
        %3294 = vmatpush1.bf16.msra.mxu0 0
        %3295 = vmatprep.subr.bf16.mxu0 0
        %3296 = vmatpush1.bf16.msra.mxu0 0
        %3297 = vmatprep.subr.bf16.mxu0 0
        %3298 = vmatpush1.bf16.msra.mxu0 0
        %3299 = vmatprep.subr.bf16.mxu0 0
        %3300 = vmatpush1.bf16.msra.mxu0 0
        %3301 = vmatprep.subr.bf16.mxu0 0
        %3302 = vmatpush1.bf16.msra.mxu0 0
        %3303 = vmatprep.subr.bf16.mxu0 0
        %3304 = vmatpush1.bf16.msra.mxu0 0
        %3305 = vmatprep.mubr.bf16.mxu0 0
        %3306 = vmatmul.mubr.bf16.gmra.mrb[0].mxu0 %v3209
        %v3307 = vpop.f32.mrb[0].mxu0
        %v3308 = vadd.f32 0.0, %v3307
        %v3309 = vpop.f32.mrb[0].mxu0
        %v3310 = vpop.f32.mrb[0].mxu0
        %v3311 = vadd.f32 0.0, %v3310
        %v3312 = vpop.f32.mrb[0].mxu0
        %3313 = vmatprep.mubr.bf16.mxu0 0
        %3314 = vmatmul.mubr.bf16.gmra.mrb[0].mxu0 %v3210
        %v3315 = vpop.f32.mrb[0].mxu0
        %v3316 = vadd.f32 0.0, %v3315
        %v3317 = vpop.f32.mrb[0].mxu0
        %v3318 = vpop.f32.mrb[0].mxu0
        %v3319 = vadd.f32 0.0, %v3318
        %v3320 = vpop.f32.mrb[0].mxu0
        %3321 = vmatprep.mubr.bf16.mxu0 0
        %3322 = vmatmul.mubr.bf16.gmra.mrb[0].mxu0 %v3211
        %v3323 = vpop.f32.mrb[0].mxu0
        %v3324 = vadd.f32 0.0, %v3323
        %v3325 = vpop.f32.mrb[0].mxu0
        %v3326 = vpop.f32.mrb[0].mxu0
        %v3327 = vadd.f32 0.0, %v3326
        %v3328 = vpop.f32.mrb[0].mxu0
        %3329 = vmatprep.mubr.bf16.mxu0 0
        %3330 = vmatmul.mubr.bf16.gmra.mrb[0].mxu0 %v3212
        %v3331 = vpop.f32.mrb[0].mxu0
        %v3332 = vadd.f32 0.0, %v3331
        %v3333 = vpop.f32.mrb[0].mxu0
        %v3334 = vpop.f32.mrb[0].mxu0
        %v3335 = vadd.f32 0.0, %v3334
        %v3336 = vpop.f32.mrb[0].mxu0
        %3337 = vmatprep.mubr.bf16.mxu0 0
        %3338 = vmatmul.mubr.bf16.gmra.mrb[0].mxu0 %v3213
        %v3339 = vpop.f32.mrb[0].mxu0
        %v3340 = vadd.f32 0.0, %v3339
        %v3341 = vpop.f32.mrb[0].mxu0
        %v3342 = vpop.f32.mrb[0].mxu0
        %v3343 = vadd.f32 0.0, %v3342
        %v3344 = vpop.f32.mrb[0].mxu0
        %3345 = vmatprep.mubr.bf16.mxu0 0
        %3346 = vmatmul.mubr.bf16.gmra.mrb[0].mxu0 %v3214
        %v3347 = vpop.f32.mrb[0].mxu0
        %v3348 = vadd.f32 0.0, %v3347
        %v3349 = vpop.f32.mrb[0].mxu0
        %v3350 = vpop.f32.mrb[0].mxu0
        %v3351 = vadd.f32 0.0, %v3350
        %v3352 = vpop.f32.mrb[0].mxu0
        %3353 = vmatprep.mubr.bf16.mxu0 0
        %3354 = vmatmul.mubr.bf16.gmra.mrb[0].mxu0 %v3215
        %v3355 = vpop.f32.mrb[0].mxu0
        %v3356 = vadd.f32 0.0, %v3355
        %v3357 = vpop.f32.mrb[0].mxu0
        %v3358 = vpop.f32.mrb[0].mxu0
        %v3359 = vadd.f32 0.0, %v3358
        %v3360 = vpop.f32.mrb[0].mxu0
        %3361 = vmatprep.mubr.bf16.mxu0 0
        %3362 = vmatmul.mubr.bf16.gmra.mrb[0].mxu0 %v3216
        %v3363 = vpop.f32.mrb[0].mxu0
        %v3364 = vadd.f32 0.0, %v3363
        %v3365 = vpop.f32.mrb[0].mxu0
        %v3366 = vpop.f32.mrb[0].mxu0
        %v3367 = vadd.f32 0.0, %v3366
        %v3368 = vpop.f32.mrb[0].mxu0
        %3369 = vdwg.mxu0
        %v3370 = vadd.f32 %v2944, %v3308
        %v3371 = vadd.f32 %v2945, %v3311
        %v3372 = vadd.f32 %v2946, %v3316
        %v3373 = vadd.f32 %v2947, %v3319
        %v3374 = vadd.f32 %v2948, %v3324
        %v3375 = vadd.f32 %v2949, %v3327
        %v3376 = vadd.f32 %v2950, %v3332
        %v3377 = vadd.f32 %v2951, %v3335
        %v3378 = vadd.f32 %v2952, %v3340
        %v3379 = vadd.f32 %v2953, %v3343
        %v3380 = vadd.f32 %v2954, %v3348
        %v3381 = vadd.f32 %v2955, %v3351
        %v3382 = vadd.f32 %v2956, %v3356
        %v3383 = vadd.f32 %v2957, %v3359
        %v3384 = vadd.f32 %v2958, %v3364
        %v3385 = vadd.f32 %v2959, %v3367
        %v3386 = vld [vmem:[%s2717] sm:$0xe]
        %v3387 = vld [vmem:[%s2717 + $0xc] sm:$0xe]
        %v3388 = vld [vmem:[%s2717 + $0x18] sm:$0xe]
        %v3389 = vld [vmem:[%s2717 + $0x24] sm:$0xe]
        %v3390 = vld [vmem:[%s2717 + $0x30] sm:$0xe]
        %v3391 = vld [vmem:[%s2717 + $0x3c] sm:$0xe]
        %v3392 = vld [vmem:[%s2717 + $0x48] sm:$0xe]
        %v3393 = vld [vmem:[%s2717 + $0x54] sm:$0xe]
        %v3418 = vrot.slane %v3386, 5
        %v3419 = vrot.slane %v3418, 4
        %v3420 = vrot.slane %v2961, 5
        %v3421 = vsel %vm1484, %v3419, %v3420
        %v3422 = vrot.slane %v3420, 4
        %v3423 = vrot.slane %v2962, 5
        %v3424 = vsel %vm1484, %v3422, %v3423
        %v3425 = vrot.slane %v3387, 5
        %v3426 = vrot.slane %v3425, 4
        %v3427 = vrot.slane %v2964, 5
        %v3428 = vsel %vm1484, %v3426, %v3427
        %v3429 = vrot.slane %v3427, 4
        %v3430 = vrot.slane %v2965, 5
        %v3431 = vsel %vm1484, %v3429, %v3430
        %v3432 = vrot.slane %v3388, 5
        %v3433 = vrot.slane %v3432, 4
        %v3434 = vrot.slane %v2967, 5
        %v3435 = vsel %vm1484, %v3433, %v3434
        %v3436 = vrot.slane %v3434, 4
        %v3437 = vrot.slane %v2968, 5
        %v3438 = vsel %vm1484, %v3436, %v3437
        %v3439 = vrot.slane %v3389, 5
        %v3440 = vrot.slane %v3439, 4
        %v3441 = vrot.slane %v2970, 5
        %v3442 = vsel %vm1484, %v3440, %v3441
        %v3443 = vrot.slane %v3441, 4
        %v3444 = vrot.slane %v2971, 5
        %v3445 = vsel %vm1484, %v3443, %v3444
        %v3446 = vrot.slane %v3390, 5
        %v3447 = vrot.slane %v3446, 4
        %v3448 = vrot.slane %v2973, 5
        %v3449 = vsel %vm1484, %v3447, %v3448
        %v3450 = vrot.slane %v3448, 4
        %v3451 = vrot.slane %v2974, 5
        %v3452 = vsel %vm1484, %v3450, %v3451
        %v3453 = vrot.slane %v3391, 5
        %v3454 = vrot.slane %v3453, 4
        %v3455 = vrot.slane %v2976, 5
        %v3456 = vsel %vm1484, %v3454, %v3455
        %v3457 = vrot.slane %v3455, 4
        %v3458 = vrot.slane %v2977, 5
        %v3459 = vsel %vm1484, %v3457, %v3458
        %v3460 = vrot.slane %v3392, 5
        %v3461 = vrot.slane %v3460, 4
        %v3462 = vrot.slane %v2979, 5
        %v3463 = vsel %vm1484, %v3461, %v3462
        %v3464 = vrot.slane %v3462, 4
        %v3465 = vrot.slane %v2980, 5
        %v3466 = vsel %vm1484, %v3464, %v3465
        %v3467 = vrot.slane %v3393, 5
        %v3468 = vrot.slane %v3467, 4
        %v3469 = vrot.slane %v2982, 5
        %v3470 = vsel %vm1484, %v3468, %v3469
        %v3471 = vrot.slane %v3469, 4
        %v3472 = vrot.slane %v2983, 5
        %v3473 = vsel %vm1484, %v3471, %v3472
        %s3474 = scalar_lea.vmem [#allocation6], 512
        %v3475 = vld [vmem:[%s3474] sm:$0xf]
        %v3476 = vld [vmem:[%s3474 + $0x4] sm:$0xf]
        %v3477 = vld [vmem:[%s3474 + $0x8] sm:$0xf]
        %v3478 = vld [vmem:[%s3474 + $0xc] sm:$0xf]
        %v3479 = vld [vmem:[%s3474 + $0x10] sm:$0xf]
        %v3480 = vld [vmem:[%s3474 + $0x14] sm:$0xf]
        %v3481 = vld [vmem:[%s3474 + $0x18] sm:$0xf]
        %v3482 = vld [vmem:[%s3474 + $0x1c] sm:$0xf]
        %v3483 = vld [vmem:[%s3474 + $0x20] sm:$0xf]
        %v3484 = vld [vmem:[%s3474 + $0x24] sm:$0xf]
        %v3485 = vld [vmem:[%s3474 + $0x28] sm:$0xf]
        %v3486 = vld [vmem:[%s3474 + $0x2c] sm:$0xf]
        %v3487 = vld [vmem:[%s3474 + $0x30] sm:$0xf]
        %v3488 = vld [vmem:[%s3474 + $0x34] sm:$0xf]
        %v3489 = vld [vmem:[%s3474 + $0x38] sm:$0xf]
        %v3490 = vld [vmem:[%s3474 + $0x3c] sm:$0xf]
        %v3491 = vunpack.c.l.b16 %v3421
        %v3492 = vunpack.c.l.b16 %v3424
        %v3493 = vunpack.c.l.b16 %v3428
        %v3494 = vunpack.c.l.b16 %v3431
        %v3495 = vunpack.c.l.b16 %v3435
        %v3496 = vunpack.c.l.b16 %v3438
        %v3497 = vunpack.c.l.b16 %v3442
        %v3498 = vunpack.c.l.b16 %v3445
        %v3499 = vunpack.c.l.b16 %v3449
        %v3500 = vunpack.c.l.b16 %v3452
        %v3501 = vunpack.c.l.b16 %v3456
        %v3502 = vunpack.c.l.b16 %v3459
        %v3503 = vunpack.c.l.b16 %v3463
        %v3504 = vunpack.c.l.b16 %v3466
        %v3505 = vunpack.c.l.b16 %v3470
        %v3506 = vunpack.c.l.b16 %v3473
        %v3507 = vpack.c.b16 %v3492, %v3491
        %v3508 = vpack.c.b16 %v3494, %v3493
        %v3509 = vpack.c.b16 %v3496, %v3495
        %v3510 = vpack.c.b16 %v3498, %v3497
        %v3511 = vpack.c.b16 %v3500, %v3499
        %v3512 = vpack.c.b16 %v3502, %v3501
        %v3513 = vpack.c.b16 %v3504, %v3503
        %v3514 = vpack.c.b16 %v3506, %v3505
        %v3539 = vunpack.c.l.b16 %v3475
        %v3540 = vunpack.c.l.b16 %v3476
        %v3541 = vunpack.c.l.b16 %v3477
        %v3542 = vunpack.c.l.b16 %v3478
        %v3543 = vunpack.c.l.b16 %v3479
        %v3544 = vunpack.c.l.b16 %v3480
        %v3545 = vunpack.c.l.b16 %v3481
        %v3546 = vunpack.c.l.b16 %v3482
        %v3547 = vunpack.c.l.b16 %v3483
        %v3548 = vunpack.c.l.b16 %v3484
        %v3549 = vunpack.c.l.b16 %v3485
        %v3550 = vunpack.c.l.b16 %v3486
        %v3551 = vunpack.c.l.b16 %v3487
        %v3552 = vunpack.c.l.b16 %v3488
        %v3553 = vunpack.c.l.b16 %v3489
        %v3554 = vunpack.c.l.b16 %v3490
        %v3555 = vpack.c.b16 %v3540, %v3539
        %v3556 = vpack.c.b16 %v3542, %v3541
        %v3557 = vpack.c.b16 %v3544, %v3543
        %v3558 = vpack.c.b16 %v3546, %v3545
        %v3559 = vpack.c.b16 %v3548, %v3547
        %v3560 = vpack.c.b16 %v3550, %v3549
        %v3561 = vpack.c.b16 %v3552, %v3551
        %v3562 = vpack.c.b16 %v3554, %v3553
        %3571 = vmatprep.subr.bf16.mxu0 0
        %3572 = vmatpush1.bf16.msra.mxu0 %v3555
        %3573 = vmatprep.subr.bf16.mxu0 0
        %3574 = vmatpush1.bf16.msra.mxu0 %v3556
        %3575 = vmatprep.subr.bf16.mxu0 0
        %3576 = vmatpush1.bf16.msra.mxu0 %v3557
        %3577 = vmatprep.subr.bf16.mxu0 0
        %3578 = vmatpush1.bf16.msra.mxu0 %v3558
        %3579 = vmatprep.subr.bf16.mxu0 0
        %3580 = vmatpush1.bf16.msra.mxu0 %v3559
        %3581 = vmatprep.subr.bf16.mxu0 0
        %3582 = vmatpush1.bf16.msra.mxu0 %v3560
        %3583 = vmatprep.subr.bf16.mxu0 0
        %3584 = vmatpush1.bf16.msra.mxu0 %v3561
        %3585 = vmatprep.subr.bf16.mxu0 0
        %3586 = vmatpush1.bf16.msra.mxu0 %v3562
        %3587 = vmatprep.subr.bf16.mxu0 0
        %3588 = vmatpush1.bf16.msra.mxu0 0
        %3589 = vmatprep.subr.bf16.mxu0 0
        %3590 = vmatpush1.bf16.msra.mxu0 0
        %3591 = vmatprep.subr.bf16.mxu0 0
        %3592 = vmatpush1.bf16.msra.mxu0 0
        %3593 = vmatprep.subr.bf16.mxu0 0
        %3594 = vmatpush1.bf16.msra.mxu0 0
        %3595 = vmatprep.subr.bf16.mxu0 0
        %3596 = vmatpush1.bf16.msra.mxu0 0
        %3597 = vmatprep.subr.bf16.mxu0 0
        %3598 = vmatpush1.bf16.msra.mxu0 0
        %3599 = vmatprep.subr.bf16.mxu0 0
        %3600 = vmatpush1.bf16.msra.mxu0 0
        %3601 = vmatprep.subr.bf16.mxu0 0
        %3602 = vmatpush1.bf16.msra.mxu0 0
        %3603 = vmatprep.mubr.bf16.mxu0 0
        %3604 = vmatmul.mubr.bf16.gmra.mrb[0].mxu0 %v3507
        %v3605 = vpop.f32.mrb[0].mxu0
        %v3606 = vadd.f32 0.0, %v3605
        %v3607 = vpop.f32.mrb[0].mxu0
        %v3608 = vpop.f32.mrb[0].mxu0
        %v3609 = vadd.f32 0.0, %v3608
        %v3610 = vpop.f32.mrb[0].mxu0
        %3611 = vmatprep.mubr.bf16.mxu0 0
        %3612 = vmatmul.mubr.bf16.gmra.mrb[0].mxu0 %v3508
        %v3613 = vpop.f32.mrb[0].mxu0
        %v3614 = vadd.f32 0.0, %v3613
        %v3615 = vpop.f32.mrb[0].mxu0
        %v3616 = vpop.f32.mrb[0].mxu0
        %v3617 = vadd.f32 0.0, %v3616
        %v3618 = vpop.f32.mrb[0].mxu0
        %3619 = vmatprep.mubr.bf16.mxu0 0
        %3620 = vmatmul.mubr.bf16.gmra.mrb[0].mxu0 %v3509
        %v3621 = vpop.f32.mrb[0].mxu0
        %v3622 = vadd.f32 0.0, %v3621
        %v3623 = vpop.f32.mrb[0].mxu0
        %v3624 = vpop.f32.mrb[0].mxu0
        %v3625 = vadd.f32 0.0, %v3624
        %v3626 = vpop.f32.mrb[0].mxu0
        %3627 = vmatprep.mubr.bf16.mxu0 0
        %3628 = vmatmul.mubr.bf16.gmra.mrb[0].mxu0 %v3510
        %v3629 = vpop.f32.mrb[0].mxu0
        %v3630 = vadd.f32 0.0, %v3629
        %v3631 = vpop.f32.mrb[0].mxu0
        %v3632 = vpop.f32.mrb[0].mxu0
        %v3633 = vadd.f32 0.0, %v3632
        %v3634 = vpop.f32.mrb[0].mxu0
        %3635 = vmatprep.mubr.bf16.mxu0 0
        %3636 = vmatmul.mubr.bf16.gmra.mrb[0].mxu0 %v3511
        %v3637 = vpop.f32.mrb[0].mxu0
        %v3638 = vadd.f32 0.0, %v3637
        %v3639 = vpop.f32.mrb[0].mxu0
        %v3640 = vpop.f32.mrb[0].mxu0
        %v3641 = vadd.f32 0.0, %v3640
        %v3642 = vpop.f32.mrb[0].mxu0
        %3643 = vmatprep.mubr.bf16.mxu0 0
        %3644 = vmatmul.mubr.bf16.gmra.mrb[0].mxu0 %v3512
        %v3645 = vpop.f32.mrb[0].mxu0
        %v3646 = vadd.f32 0.0, %v3645
        %v3647 = vpop.f32.mrb[0].mxu0
        %v3648 = vpop.f32.mrb[0].mxu0
        %v3649 = vadd.f32 0.0, %v3648
        %v3650 = vpop.f32.mrb[0].mxu0
        %3651 = vmatprep.mubr.bf16.mxu0 0
        %3652 = vmatmul.mubr.bf16.gmra.mrb[0].mxu0 %v3513
        %v3653 = vpop.f32.mrb[0].mxu0
        %v3654 = vadd.f32 0.0, %v3653
        %v3655 = vpop.f32.mrb[0].mxu0
        %v3656 = vpop.f32.mrb[0].mxu0
        %v3657 = vadd.f32 0.0, %v3656
        %v3658 = vpop.f32.mrb[0].mxu0
        %3659 = vmatprep.mubr.bf16.mxu0 0
        %3660 = vmatmul.mubr.bf16.gmra.mrb[0].mxu0 %v3514
        %v3661 = vpop.f32.mrb[0].mxu0
        %v3662 = vadd.f32 0.0, %v3661
        %v3663 = vpop.f32.mrb[0].mxu0
        %v3664 = vpop.f32.mrb[0].mxu0
        %v3665 = vadd.f32 0.0, %v3664
        %v3666 = vpop.f32.mrb[0].mxu0
        %3667 = vdwg.mxu0
        %v3668 = vadd.f32 %v3370, %v3606
        %v3669 = vadd.f32 %v3371, %v3609
        %v3670 = vadd.f32 %v3372, %v3614
        %v3671 = vadd.f32 %v3373, %v3617
        %v3672 = vadd.f32 %v3374, %v3622
        %v3673 = vadd.f32 %v3375, %v3625
        %v3674 = vadd.f32 %v3376, %v3630
        %v3675 = vadd.f32 %v3377, %v3633
        %v3676 = vadd.f32 %v3378, %v3638
        %v3677 = vadd.f32 %v3379, %v3641
        %v3678 = vadd.f32 %v3380, %v3646
        %v3679 = vadd.f32 %v3381, %v3649
        %v3680 = vadd.f32 %v3382, %v3654
        %v3681 = vadd.f32 %v3383, %v3657
        %v3682 = vadd.f32 %v3384, %v3662
        %v3683 = vadd.f32 %v3385, %v3665
        %v3684 = vadd.f32 %v3668, %v3669
        %v3685 = vadd.f32 %v3684, %v3670
        %v3686 = vadd.f32 %v3685, %v3671
        %v3687 = vadd.f32 %v3686, %v3672
        %v3688 = vadd.f32 %v3687, %v3673
        %v3689 = vadd.f32 %v3688, %v3674
        %v3690 = vadd.f32 %v3689, %v3675
        %v3691 = vadd.f32 %v3690, %v3676
        %v3692 = vadd.f32 %v3691, %v3677
        %v3693 = vadd.f32 %v3692, %v3678
        %v3694 = vadd.f32 %v3693, %v3679
        %v3695 = vadd.f32 %v3694, %v3680
        %v3696 = vadd.f32 %v3695, %v3681
        %v3697 = vadd.f32 %v3696, %v3682
        %v3698 = vadd.f32 %v3697, %v3683
        %v3699 = vrot.slane %v3698, 4
        %v3700 = vadd.f32 %v3698, %v3699
        %v3701 = vrot.slane %v3700, 2
        %v3702 = vadd.f32 %v3700, %v3701
        %v3703 = vrot.slane %v3702, 1
        %v3704 = vadd.f32 %v3702, %v3703
        %3705 = vst [vmem:[%s312] sm:$0x1] %v3704
        %v3706 = vmul.f32 %v3668, %v3668
        %v3707 = vmul.f32 %v3669, %v3669
        %v3708 = vmul.f32 %v3670, %v3670
        %v3709 = vmul.f32 %v3671, %v3671
        %v3710 = vmul.f32 %v3672, %v3672
        %v3711 = vmul.f32 %v3673, %v3673
        %v3712 = vmul.f32 %v3674, %v3674
        %v3713 = vmul.f32 %v3675, %v3675
        %v3714 = vmul.f32 %v3676, %v3676
        %v3715 = vmul.f32 %v3677, %v3677
        %v3716 = vmul.f32 %v3678, %v3678
        %v3717 = vmul.f32 %v3679, %v3679
        %v3718 = vmul.f32 %v3680, %v3680
        %v3719 = vmul.f32 %v3681, %v3681
        %v3720 = vmul.f32 %v3682, %v3682
        %v3721 = vmul.f32 %v3683, %v3683
        %v3722 = vadd.f32 %v3706, %v3707
        %v3723 = vadd.f32 %v3722, %v3708
        %v3724 = vadd.f32 %v3723, %v3709
        %v3725 = vadd.f32 %v3724, %v3710
        %v3726 = vadd.f32 %v3725, %v3711
        %v3727 = vadd.f32 %v3726, %v3712
        %v3728 = vadd.f32 %v3727, %v3713
        %v3729 = vadd.f32 %v3728, %v3714
        %v3730 = vadd.f32 %v3729, %v3715
        %v3731 = vadd.f32 %v3730, %v3716
        %v3732 = vadd.f32 %v3731, %v3717
        %v3733 = vadd.f32 %v3732, %v3718
        %v3734 = vadd.f32 %v3733, %v3719
        %v3735 = vadd.f32 %v3734, %v3720
        %v3736 = vadd.f32 %v3735, %v3721
        %v3737 = vrot.slane %v3736, 4
        %v3738 = vadd.f32 %v3736, %v3737
        %v3739 = vrot.slane %v3738, 2
        %v3740 = vadd.f32 %v3738, %v3739
        %v3741 = vrot.slane %v3740, 1
        %v3742 = vadd.f32 %v3740, %v3741
        %3743 = vst [vmem:[%s318] sm:$0x1] %v3742
        %v3744 = vpack.c.bf16 %v3669, %v3668
        %v3745 = vpack.c.bf16 %v3671, %v3670
        %v3746 = vpack.c.bf16 %v3673, %v3672
        %v3747 = vpack.c.bf16 %v3675, %v3674
        %v3748 = vpack.c.bf16 %v3677, %v3676
        %v3749 = vpack.c.bf16 %v3679, %v3678
        %v3750 = vpack.c.bf16 %v3681, %v3680
        %v3751 = vpack.c.bf16 %v3683, %v3682
        %v3760 = vunpack.c.l.b16 %v3744
        %v3761 = vunpack.c.h.b16 %v3744
        %v3762 = vunpack.c.l.b16 %v3745
        %v3763 = vunpack.c.h.b16 %v3745
        %v3764 = vunpack.c.l.b16 %v3746
        %v3765 = vunpack.c.h.b16 %v3746
        %v3766 = vunpack.c.l.b16 %v3747
        %v3767 = vunpack.c.h.b16 %v3747
        %v3768 = vunpack.c.l.b16 %v3748
        %v3769 = vunpack.c.h.b16 %v3748
        %v3770 = vunpack.c.l.b16 %v3749
        %v3771 = vunpack.c.h.b16 %v3749
        %v3772 = vunpack.c.l.b16 %v3750
        %v3773 = vunpack.c.h.b16 %v3750
        %v3774 = vunpack.c.l.b16 %v3751
        %v3775 = vunpack.c.h.b16 %v3751
        %v3776 = vpack.c.b16 %v3760, %v3760
        %v3777 = vpack.c.b16 %v3761, %v3761
        %v3778 = vpack.c.b16 %v3762, %v3762
        %v3779 = vpack.c.b16 %v3763, %v3763
        %v3780 = vpack.c.b16 %v3764, %v3764
        %v3781 = vpack.c.b16 %v3765, %v3765
        %v3782 = vpack.c.b16 %v3766, %v3766
        %v3783 = vpack.c.b16 %v3767, %v3767
        %v3784 = vpack.c.b16 %v3768, %v3768
        %v3785 = vpack.c.b16 %v3769, %v3769
        %v3786 = vpack.c.b16 %v3770, %v3770
        %v3787 = vpack.c.b16 %v3771, %v3771
        %v3788 = vpack.c.b16 %v3772, %v3772
        %v3789 = vpack.c.b16 %v3773, %v3773
        %v3790 = vpack.c.b16 %v3774, %v3774
        %v3791 = vpack.c.b16 %v3775, %v3775
        %3808 = vst [vmem:[%s306] sm:$0xf] %v3776
        %3809 = vst [vmem:[%s306 + $0x4] sm:$0xf] %v3777
        %3810 = vst [vmem:[%s306 + $0x8] sm:$0xf] %v3778
        %3811 = vst [vmem:[%s306 + $0xc] sm:$0xf] %v3779
        %3812 = vst [vmem:[%s306 + $0x10] sm:$0xf] %v3780
        %3813 = vst [vmem:[%s306 + $0x14] sm:$0xf] %v3781
        %3814 = vst [vmem:[%s306 + $0x18] sm:$0xf] %v3782
        %3815 = vst [vmem:[%s306 + $0x1c] sm:$0xf] %v3783
        %3816 = vst [vmem:[%s306 + $0x20] sm:$0xf] %v3784
        %3817 = vst [vmem:[%s306 + $0x24] sm:$0xf] %v3785
        %3818 = vst [vmem:[%s306 + $0x28] sm:$0xf] %v3786
        %3819 = vst [vmem:[%s306 + $0x2c] sm:$0xf] %v3787
        %3820 = vst [vmem:[%s306 + $0x30] sm:$0xf] %v3788
        %3821 = vst [vmem:[%s306 + $0x34] sm:$0xf] %v3789
        %3822 = vst [vmem:[%s306 + $0x38] sm:$0xf] %v3790
        %3823 = vst [vmem:[%s306 + $0x3c] sm:$0xf] %v3791
        %s3824 = sand.u32 %s139, 1
        %s3825 = scalar_lea.sflag [#allocation5], %s3824
        %s3826 = sand.u32 %s139, 1
        %s3827 = smul.addr %s3826, 64
        %s3828 = scalar_lea.vmem [#allocation8], %s3827
        %s3829 = sand.u32 %s28, 1
        %s3830 = scalar_lea.sflag [#allocation10], %s3829
        %s3831 = sand.u32 %s167, 1
        %s3832 = scalar_lea.vmem [#allocation9], %s3831
        %s3833 = sand.u32 %s28, 1
        %s3834 = scalar_lea.sflag [#allocation10], %s3833
        %s3835 = sand.u32 %s195, 1
        %s3836 = scalar_lea.vmem [#allocation11], %s3835
        // Predicated region
        $region61: #{tpu_custom_call.1} parent=35 // pred_check
          %p3837 = pneg %p149
        $region62: #{tpu_custom_call.1} parent=35 // pred_check_branch
          %3839 = sbr.rel (%p3837) target = $region64
        $region63: #{tpu_custom_call.1} parent=35 // pred_region
          %s3840 = smul.u32 8, %s33
          %s3842 = ssub.s32 1024, 1024
          %3843 = vsyncadd %s3825, %s3842
          %s3844 = smul.addr %s3840, 2
          %s3845 = smul.addr %s32, 32
          %s3846 = sadd.s32 %s3844, %s3845
          %s3847 = smul.addr %s3846, 64
          %s3848 = scalar_lea.hbm %s4, %s3847
          %s3849 = sshll.u32 %s3828, 4
          %s3850 = int_to_ptr.vmem [resolvable:$true] %s3849
          %3855 = dma.vmem_to_hbm [thread:$0]  %s3850, 1024, %s3848, %s3825, 64, 64, 4
        $region64: #{tpu_custom_call.1} parent=35 // pred_fallthru
          _
        // Predicated region
        $region65: #{tpu_custom_call.1} parent=35 // pred_check
          %p3856 = pneg %p177
        $region66: #{tpu_custom_call.1} parent=35 // pred_check_branch
          %3858 = sbr.rel (%p3856) target = $region68
        $region67: #{tpu_custom_call.1} parent=35 // pred_region
          %s3860 = ssub.s32 16, 16
          %3861 = vsyncadd %s3830, %s3860
          %s3862 = smul.addr %s32, 2
          %s3863 = sadd.s32 %s33, %s3862
          %s3864 = smul.addr %s3863, 16
          %s3865 = scalar_lea.hbm %s5, %s3864
          %s3867 = sshll.u32 %s3832, 4
          %s3868 = int_to_ptr.vmem [resolvable:$true] %s3867
          %3870 = dma.vmem_to_hbm [thread:$0]  %s3868, 16, %s3865, %s3830
        $region68: #{tpu_custom_call.1} parent=35 // pred_fallthru
          _
        // Predicated region
        $region69: #{tpu_custom_call.1} parent=35 // pred_check
          %p3871 = pneg %p205
        $region70: #{tpu_custom_call.1} parent=35 // pred_check_branch
          %3873 = sbr.rel (%p3871) target = $region72
        $region71: #{tpu_custom_call.1} parent=35 // pred_region
          %s3875 = ssub.s32 16, 16
          %3876 = vsyncadd %s3834, %s3875
          %s3877 = smul.addr %s32, 2
          %s3878 = sadd.s32 %s33, %s3877
          %s3879 = smul.addr %s3878, 16
          %s3880 = scalar_lea.hbm %s6, %s3879
          %s3882 = sshll.u32 %s3836, 4
          %s3883 = int_to_ptr.vmem [resolvable:$true] %s3882
          %3885 = dma.vmem_to_hbm [thread:$0]  %s3883, 16, %s3880, %s3834
        $region72: #{tpu_custom_call.1} parent=35 // pred_fallthru
          _
      $region36: #{tpu_custom_call.1} parent=5 // pred_fallthru
        _
      %p3886 = scmp.le.s32.totalorder 2, %s23
      // Predicated region
      $region73: #{tpu_custom_call.1} parent=5 // pred_check
        %p3887 = pneg %p3886
      $region74: #{tpu_custom_call.1} parent=5 // pred_check_branch
        %3889 = sbr.rel (%p3887) target = $region76
      $region75: #{tpu_custom_call.1} parent=5 // pred_region
        %s3890 = ssub.s32 %s23, 2
        // Predicated region
        $region77: #{tpu_custom_call.1} parent=75 // pred_check
          %p3891 = pneg %p155
        $region78: #{tpu_custom_call.1} parent=75 // pred_check_branch
          %3893 = sbr.rel (%p3891) target = $region80
        $region79: #{tpu_custom_call.1} parent=75 // pred_region
          %s3894 = sand.u32 %s140, 1
          %s3895 = scalar_lea.sflag [#allocation5], %s3894
          %s3896 = sand.u32 %s140, 1
          %s3897 = smul.addr %s3896, 64
          %s3898 = scalar_lea.vmem [#allocation8], %s3897
          %3899 = dma.done %s3895, 1024
        $region80: #{tpu_custom_call.1} parent=75 // pred_fallthru
          _
        // Predicated region
        $region81: #{tpu_custom_call.1} parent=75 // pred_check
          %p3900 = pneg %p183
        $region82: #{tpu_custom_call.1} parent=75 // pred_check_branch
          %3902 = sbr.rel (%p3900) target = $region84
        $region83: #{tpu_custom_call.1} parent=75 // pred_region
          %s3903 = sand.u32 %s29, 1
          %s3904 = scalar_lea.sflag [#allocation10], %s3903
          %s3905 = sand.u32 %s168, 1
          %s3906 = scalar_lea.vmem [#allocation9], %s3905
          %3907 = dma.done %s3904, 16
        $region84: #{tpu_custom_call.1} parent=75 // pred_fallthru
          _
        // Predicated region
        $region85: #{tpu_custom_call.1} parent=75 // pred_check
          %p3908 = pneg %p211
        $region86: #{tpu_custom_call.1} parent=75 // pred_check_branch
          %3910 = sbr.rel (%p3908) target = $region88
        $region87: #{tpu_custom_call.1} parent=75 // pred_region
          %s3911 = sand.u32 %s29, 1
          %s3912 = scalar_lea.sflag [#allocation10], %s3911
          %s3913 = sand.u32 %s196, 1
          %s3914 = scalar_lea.vmem [#allocation11], %s3913
          %3915 = dma.done %s3912, 16
        $region88: #{tpu_custom_call.1} parent=75 // pred_fallthru
          _
      $region76: #{tpu_custom_call.1} parent=5 // pred_fallthru
        _
    $region6: #{tpu_custom_call.1} parent=1 // loop_footer
      %s27 = sadd.s32 1, %s23
    $region7: #{tpu_custom_call.1} parent=1 // loop_footer_branch
      %22 = sbr.rel target = $region3
    $region8: #{tpu_custom_call.1} parent=1 // loop_exit
      _
    %3916 = vsyncpa [#allocation4], 1
    %s3917 = scalar_lea.sflag [#allocation4], 1
    %3918 = vsyncpa %s3917, 1
    %3919 = vsyncpa [#allocation7], 1
    %3920 = vsyncpa [#allocation5], 1
    %s3921 = scalar_lea.sflag [#allocation5], 1
    %3922 = vsyncpa %s3921, 1
    %3923 = vsyncpa [#allocation10], 1
    %s3924 = scalar_lea.sflag [#allocation10], 1
    %3925 = vsyncpa %s3924, 1

</llo_original>
